<compile_context>
chip_gen: v7x
topology: tpu7x:2x2x1
jax: 0.10.0
libtpu: 0.0.40
codegen_flags: <defaults>
</compile_context>

<pallas_src>
import jax
import jax.numpy as jnp
from jax.experimental import pallas as pl
from jax.experimental.pallas import tpu as pltpu

# ---------------- config ----------------
IMG = 224            # aug resize target (as in the module)
PATCH = 32           # ViT-B-32 patch size
KPP = 3 * PATCH * PATCH   # 3072 = flattened (C, kh, kw) patch vector
WIDTH = 256          # reduced encoder width (ViT-B uses 768) -- synthetic
EMBED = 512          # CLIP image embedding dim (as in the module)
HID = 128            # Linear(512, 128)
NCLS = 4             # Linear(128, 4)
BN_EPS = 1e-5
L2_EPS = 1e-12       # eps for L2 normalize (avoids NaN on zero embeddings)

CLIP_MEAN = (0.48145466, 0.4578275, 0.40821073)
CLIP_STD = (0.26862954, 0.26130258, 0.27577711)


# ---------------- kernel ----------------
def clip_fused_kernel(mp_ref, wpat_ref, bpat_ref, wproj_ref, bproj_ref,
                      w1_ref, b1_ref, gamma_ref, beta_ref, w2_ref, b2_ref,
                      o_ref):
    # mp_ref:   (B, KPP)  bf16  mean-over-tokens patch vector (Normalize folded
    #                            into wpat/bpat at init)
    # wpat:     (KPP, WIDTH) bf16   bpat: (1, WIDTH) f32
    # wproj:    (WIDTH, EMBED) bf16 bproj:(1, EMBED) f32
    # w1:       (EMBED, HID) bf16   b1:   (1, HID) f32
    # gamma/beta: (1, HID) f32
    # w2:       (HID, NCLS) bf16    b2:   (1, NCLS) f32
    # o_ref:    (B, NCLS) f32
    #
    # Whole batch resident in one block: train-mode BatchNorm statistics are
    # exact (do not tile this kernel over B).

    # Patch embed + (commuted) mean token pool.
    pooled = jnp.dot(mp_ref[...], wpat_ref[...],
                     preferred_element_type=jnp.float32) + bpat_ref[...]   # (B, WIDTH)

    # CLIP projection to 512-d embedding.
    z = jnp.dot(pooled.astype(jnp.bfloat16), wproj_ref[...],
                preferred_element_type=jnp.float32) + bproj_ref[...]       # (B, EMBED)

    # image_z / ||image_z|| (L2 norm along dim=-1) via EUP rsqrt.
    z = z * jax.lax.rsqrt(jnp.sum(z * z, axis=-1, keepdims=True) + L2_EPS)

    # Linear(512, 128)
    h = jnp.dot(z.astype(jnp.bfloat16), w1_ref[...],
                preferred_element_type=jnp.float32) + b1_ref[...]          # (B, HID)

    # BatchNorm1d(128), train-mode batch statistics (biased variance), eps=1e-5.
    mu = jnp.mean(h, axis=0, keepdims=True)
    var = jnp.mean((h - mu) ** 2, axis=0, keepdims=True)
    hb = (h - mu) * jax.lax.rsqrt(var + BN_EPS) * gamma_ref[...] + beta_ref[...]

    # ReLU
    hr = jnp.maximum(hb, 0.0)

    # Linear(128, 4)
    logits = jnp.dot(hr.astype(jnp.bfloat16), w2_ref[...],
                     preferred_element_type=jnp.float32) + b2_ref[...]     # (B, NCLS)

    # Softmax(dim=1), exact reciprocal so rows sum to 1 (calibrated probs).
    # NOTE: (B, NCLS) output is lane-sparse (NCLS=4 < 128); negligible at this
    # size, pad to 128 lanes if the head ever widens.
    m = jnp.max(logits, axis=1, keepdims=True)
    e = jnp.exp(logits - m)
    o_ref[...] = (e / jnp.sum(e, axis=1, keepdims=True)).astype(o_ref.dtype)


# ---------------- wrapper ----------------
def clip_fused_pallas(mean_patch, p):
    # mean_patch: (B, KPP) bf16 — whole batch in a single block.
    B = mean_patch.shape[0]
    full = lambda shape: pl.BlockSpec(shape, lambda i: (0, 0))
    return pl.pallas_call(
        clip_fused_kernel,
        out_shape=jax.ShapeDtypeStruct((B, NCLS), jnp.float32),
        grid=(1,),
        in_specs=[full((B, KPP)),
                  full((KPP, WIDTH)), full((1, WIDTH)),
                  full((WIDTH, EMBED)), full((1, EMBED)),
                  full((EMBED, HID)), full((1, HID)),
                  full((1, HID)), full((1, HID)),
                  full((HID, NCLS)), full((1, NCLS))],
        out_specs=full((B, NCLS)),
        compiler_params=pltpu.CompilerParams(
            dimension_semantics=("arbitrary",)),
    )(mean_patch, p["w_patch"], p["b_patch"], p["w_proj"], p["b_proj"],
      p["w1"], p["b1"], p["gamma"], p["beta"], p["w2"], p["b2"])


# ---------------- full forward ----------------
def clip_forward(params, pred_rgb):
    B = pred_rgb.shape[0]
    # aug: Resize((224, 224)) -- bilinear (plain-JAX glue).
    # aug: Normalize(mean, std) is folded into w_patch/b_patch (see init_params).
    x = jax.image.resize(pred_rgb.astype(jnp.float32), (B, 3, IMG, IMG),
                         method="bilinear")
    g = IMG // PATCH
    # Mean token pool commuted through the (linear) patch embed: average each
    # (c, kh, kw) patch position over the g x g patch grid, flattened in the
    # same (C, kh, kw) order as nn.Conv2d weights. This strided spatial mean
    # fuses with the resize in XLA — no (B, 49, 3072) unfold copy, and the
    # Pallas matmul shrinks to (B, 3072) @ (3072, 256).
    # TODO(synk): for a fixed input resolution the bilinear resize (also
    # linear) could be folded into an effective (3*H*W -> WIDTH) matrix too.
    mean_patch = (x.reshape(B, 3, g, PATCH, g, PATCH)
                   .mean(axis=(2, 4))
                   .reshape(B, KPP)
                   .astype(jnp.bfloat16))
    # Fused patch-embed -> pool -> proj -> L2 norm -> Linear/BN/ReLU/Linear
    # -> Softmax: one kernel, one launch, whole batch resident.
    return clip_fused_pallas(mean_patch, params)


# ---------------- params ----------------
def init_params(key):
    ks = jax.random.split(key, 8)

    def u(k, shape, fan_in):
        bound = 1.0 / jnp.sqrt(jnp.float32(fan_in))
        return jax.random.uniform(k, shape, jnp.float32, -bound, bound)

    w_patch = u(ks[0], (KPP, WIDTH), KPP)
    b_patch = u(ks[1], (1, WIDTH), KPP)

    # Fold aug Normalize(mean, std) into the patch-embed conv:
    #   conv((x - mean_c) * inv_std_c) == conv'(x) with
    #   w'[k, :] = w[k, :] * inv_std[c(k)]
    #   b'       = b - sum_k mean[c(k)] * inv_std[c(k)] * w[k, :]
    inv_std = 1.0 / jnp.asarray(CLIP_STD, jnp.float32)            # (3,)
    mean = jnp.asarray(CLIP_MEAN, jnp.float32)                    # (3,)
    scale_k = jnp.repeat(inv_std, PATCH * PATCH)                  # (KPP,)
    shift_k = jnp.repeat(mean * inv_std, PATCH * PATCH)           # (KPP,)
    w_folded = w_patch * scale_k[:, None]
    b_folded = b_patch - shift_k[None, :] @ w_patch

    p = {}
    # Weights stored (in, out) == PyTorch weight.T; matmul operands in bf16
    # (f32 accumulation inside the kernel), biases/BN params in f32.
    p["w_patch"] = w_folded.astype(jnp.bfloat16)
    p["b_patch"] = b_folded
    p["w_proj"] = u(ks[2], (WIDTH, EMBED), WIDTH).astype(jnp.bfloat16)
    p["b_proj"] = u(ks[3], (1, EMBED), WIDTH)
    p["w1"] = u(ks[4], (EMBED, HID), EMBED).astype(jnp.bfloat16)
    p["b1"] = u(ks[5], (1, HID), EMBED)
    p["gamma"] = jnp.ones((1, HID), jnp.float32)
    p["beta"] = jnp.zeros((1, HID), jnp.float32)
    p["w2"] = u(ks[6], (HID, NCLS), HID).astype(jnp.bfloat16)
    p["b2"] = u(ks[7], (1, NCLS), HID)
    return p


if __name__ == "__main__":
    key = jax.random.PRNGKey(0)
    k_param, k_img = jax.random.split(key)
    params = init_params(k_param)
    # small NCHW input image batch, values in [0, 1]
    pred_rgb = jax.random.uniform(k_img, (2, 3, 16, 16), jnp.float32)

    fwd = jax.jit(clip_forward)
    out = fwd(params, pred_rgb)
    out = jax.block_until_ready(out)

    assert out.shape == (2, NCLS)
    # softmax rows must sum to 1 (exact reciprocal on the denominator)
    assert bool(jnp.allclose(jnp.sum(out, axis=1), 1.0, atol=1e-5))
    assert bool(jnp.all(jnp.isfinite(out)))
    print("KERNEL_OK")
</pallas_src>

<mosaic_0001>
module attributes {stable_mosaic.version = 11 : i64} {
  func.func @clip_fused_kernel(%arg0: i32, %arg1: memref<2x3072xbf16, #tpu.memory_space<vmem>>, %arg2: memref<3072x256xbf16, #tpu.memory_space<vmem>>, %arg3: memref<1x256xf32, #tpu.memory_space<vmem>>, %arg4: memref<256x512xbf16, #tpu.memory_space<vmem>>, %arg5: memref<1x512xf32, #tpu.memory_space<vmem>>, %arg6: memref<512x128xbf16, #tpu.memory_space<vmem>>, %arg7: memref<1x128xf32, #tpu.memory_space<vmem>>, %arg8: memref<1x128xf32, #tpu.memory_space<vmem>>, %arg9: memref<1x128xf32, #tpu.memory_space<vmem>>, %arg10: memref<128x4xbf16, #tpu.memory_space<vmem>>, %arg11: memref<1x4xf32, #tpu.memory_space<vmem>>, %arg12: memref<2x4xf32, #tpu.memory_space<vmem>>) attributes {dimension_semantics = [#tpu.dimension_semantics<arbitrary>], iteration_bounds = array<i64: 1>, scalar_prefetch = 0 : i64, scratch_operands = 0 : i64, tpu.core_type = #tpu.core_type<tc>, window_params = [{pipeline_mode = #tpu.pipeline_mode<synchronous>, transform_indices = @transform_0, window_bounds = array<i64: 2, 3072>}, {pipeline_mode = #tpu.pipeline_mode<synchronous>, transform_indices = @transform_1, window_bounds = array<i64: 3072, 256>}, {pipeline_mode = #tpu.pipeline_mode<synchronous>, transform_indices = @transform_2, window_bounds = array<i64: 1, 256>}, {pipeline_mode = #tpu.pipeline_mode<synchronous>, transform_indices = @transform_3, window_bounds = array<i64: 256, 512>}, {pipeline_mode = #tpu.pipeline_mode<synchronous>, transform_indices = @transform_4, window_bounds = array<i64: 1, 512>}, {pipeline_mode = #tpu.pipeline_mode<synchronous>, transform_indices = @transform_5, window_bounds = array<i64: 512, 128>}, {pipeline_mode = #tpu.pipeline_mode<synchronous>, transform_indices = @transform_6, window_bounds = array<i64: 1, 128>}, {pipeline_mode = #tpu.pipeline_mode<synchronous>, transform_indices = @transform_7, window_bounds = array<i64: 1, 128>}, {pipeline_mode = #tpu.pipeline_mode<synchronous>, transform_indices = @transform_8, window_bounds = array<i64: 1, 128>}, {pipeline_mode = #tpu.pipeline_mode<synchronous>, transform_indices = @transform_9, window_bounds = array<i64: 128, 4>}, {pipeline_mode = #tpu.pipeline_mode<synchronous>, transform_indices = @transform_10, window_bounds = array<i64: 1, 4>}, {pipeline_mode = #tpu.pipeline_mode<synchronous>, transform_indices = @transform_11, window_bounds = array<i64: 2, 4>}]} {
    %c0 = arith.constant 0 : index
    %c0_0 = arith.constant 0 : index
    %0 = vector.load %arg1[%c0, %c0_0] : memref<2x3072xbf16, #tpu.memory_space<vmem>>, vector<2x3072xbf16>
    %c0_1 = arith.constant 0 : index
    %c0_2 = arith.constant 0 : index
    %1 = vector.load %arg2[%c0_1, %c0_2] : memref<3072x256xbf16, #tpu.memory_space<vmem>>, vector<3072x256xbf16>
    %cst = arith.constant dense<0.000000e+00> : vector<2x256xf32>
    %2 = tpu.matmul %0, %1, %cst {dimension_numbers = #tpu.dot_dimension_numbers<[1], [0], [0], [1], [0, 0, 1, 1], [], []>} : vector<2x3072xbf16>, vector<3072x256xbf16>, vector<2x256xf32> -> vector<2x256xf32>
    %c0_3 = arith.constant 0 : index
    %c0_4 = arith.constant 0 : index
    %3 = vector.load %arg3[%c0_3, %c0_4] : memref<1x256xf32, #tpu.memory_space<vmem>>, vector<1x256xf32>
    %4 = vector.broadcast %3 : vector<1x256xf32> to vector<2x256xf32>
    %5 = arith.addf %2, %4 : vector<2x256xf32>
    %6 = arith.truncf %5 : vector<2x256xf32> to vector<2x256xbf16>
    %c0_5 = arith.constant 0 : index
    %c0_6 = arith.constant 0 : index
    %7 = vector.load %arg4[%c0_5, %c0_6] : memref<256x512xbf16, #tpu.memory_space<vmem>>, vector<256x512xbf16>
    %cst_7 = arith.constant dense<0.000000e+00> : vector<2x512xf32>
    %8 = tpu.matmul %6, %7, %cst_7 {dimension_numbers = #tpu.dot_dimension_numbers<[1], [0], [0], [1], [0, 0, 1, 1], [], []>} : vector<2x256xbf16>, vector<256x512xbf16>, vector<2x512xf32> -> vector<2x512xf32>
    %c0_8 = arith.constant 0 : index
    %c0_9 = arith.constant 0 : index
    %9 = vector.load %arg5[%c0_8, %c0_9] : memref<1x512xf32, #tpu.memory_space<vmem>>, vector<1x512xf32>
    %10 = vector.broadcast %9 : vector<1x512xf32> to vector<2x512xf32>
    %11 = arith.addf %8, %10 : vector<2x512xf32>
    %12 = arith.mulf %11, %11 : vector<2x512xf32>
    %cst_10 = arith.constant dense<0.000000e+00> : vector<2xf32>
    %13 = vector.multi_reduction <add>, %12, %cst_10 [1] : vector<2x512xf32> to vector<2xf32>
    %14 = vector.shape_cast %13 : vector<2xf32> to vector<2x1xf32>
    %cst_11 = arith.constant 9.99999996E-13 : f32
    %15 = vector.broadcast %cst_11 : f32 to vector<2x1xf32>
    %16 = arith.addf %14, %15 : vector<2x1xf32>
    %17 = math.rsqrt %16 : vector<2x1xf32>
    %18 = vector.broadcast %17 : vector<2x1xf32> to vector<2x512xf32>
    %19 = arith.mulf %11, %18 : vector<2x512xf32>
    %20 = arith.truncf %19 : vector<2x512xf32> to vector<2x512xbf16>
    %c0_12 = arith.constant 0 : index
    %c0_13 = arith.constant 0 : index
    %21 = vector.load %arg6[%c0_12, %c0_13] : memref<512x128xbf16, #tpu.memory_space<vmem>>, vector<512x128xbf16>
    %cst_14 = arith.constant dense<0.000000e+00> : vector<2x128xf32>
    %22 = tpu.matmul %20, %21, %cst_14 {dimension_numbers = #tpu.dot_dimension_numbers<[1], [0], [0], [1], [0, 0, 1, 1], [], []>} : vector<2x512xbf16>, vector<512x128xbf16>, vector<2x128xf32> -> vector<2x128xf32>
    %c0_15 = arith.constant 0 : index
    %c0_16 = arith.constant 0 : index
    %23 = vector.load %arg7[%c0_15, %c0_16] : memref<1x128xf32, #tpu.memory_space<vmem>>, vector<1x128xf32>
    %24 = vector.broadcast %23 : vector<1x128xf32> to vector<2x128xf32>
    %25 = arith.addf %22, %24 : vector<2x128xf32>
    %cst_17 = arith.constant dense<0.000000e+00> : vector<128xf32>
    %26 = vector.multi_reduction <add>, %25, %cst_17 [0] : vector<2x128xf32> to vector<128xf32>
    %27 = vector.shape_cast %26 : vector<128xf32> to vector<1x128xf32>
    %cst_18 = arith.constant 2.000000e+00 : f32
    %28 = vector.broadcast %cst_18 : f32 to vector<1x128xf32>
    %29 = arith.divf %27, %28 : vector<1x128xf32>
    %30 = vector.broadcast %29 : vector<1x128xf32> to vector<2x128xf32>
    %31 = arith.subf %25, %30 : vector<2x128xf32>
    %32 = arith.mulf %31, %31 : vector<2x128xf32>
    %cst_19 = arith.constant dense<0.000000e+00> : vector<128xf32>
    %33 = vector.multi_reduction <add>, %32, %cst_19 [0] : vector<2x128xf32> to vector<128xf32>
    %34 = vector.shape_cast %33 : vector<128xf32> to vector<1x128xf32>
    %cst_20 = arith.constant 2.000000e+00 : f32
    %35 = vector.broadcast %cst_20 : f32 to vector<1x128xf32>
    %36 = arith.divf %34, %35 : vector<1x128xf32>
    %37 = vector.broadcast %29 : vector<1x128xf32> to vector<2x128xf32>
    %38 = arith.subf %25, %37 : vector<2x128xf32>
    %cst_21 = arith.constant 9.99999974E-6 : f32
    %39 = vector.broadcast %cst_21 : f32 to vector<1x128xf32>
    %40 = arith.addf %36, %39 : vector<1x128xf32>
    %41 = math.rsqrt %40 : vector<1x128xf32>
    %42 = vector.broadcast %41 : vector<1x128xf32> to vector<2x128xf32>
    %43 = arith.mulf %38, %42 : vector<2x128xf32>
    %c0_22 = arith.constant 0 : index
    %c0_23 = arith.constant 0 : index
    %44 = vector.load %arg8[%c0_22, %c0_23] : memref<1x128xf32, #tpu.memory_space<vmem>>, vector<1x128xf32>
    %45 = vector.broadcast %44 : vector<1x128xf32> to vector<2x128xf32>
    %46 = arith.mulf %43, %45 : vector<2x128xf32>
    %c0_24 = arith.constant 0 : index
    %c0_25 = arith.constant 0 : index
    %47 = vector.load %arg9[%c0_24, %c0_25] : memref<1x128xf32, #tpu.memory_space<vmem>>, vector<1x128xf32>
    %48 = vector.broadcast %47 : vector<1x128xf32> to vector<2x128xf32>
    %49 = arith.addf %46, %48 : vector<2x128xf32>
    %cst_26 = arith.constant 0.000000e+00 : f32
    %50 = vector.broadcast %cst_26 : f32 to vector<2x128xf32>
    %51 = arith.maximumf %49, %50 : vector<2x128xf32>
    %52 = arith.truncf %51 : vector<2x128xf32> to vector<2x128xbf16>
    %c0_27 = arith.constant 0 : index
    %c0_28 = arith.constant 0 : index
    %53 = vector.load %arg10[%c0_27, %c0_28] : memref<128x4xbf16, #tpu.memory_space<vmem>>, vector<128x4xbf16>
    %cst_29 = arith.constant dense<0.000000e+00> : vector<2x4xf32>
    %54 = tpu.matmul %52, %53, %cst_29 {dimension_numbers = #tpu.dot_dimension_numbers<[1], [0], [0], [1], [0, 0, 1, 1], [], []>} : vector<2x128xbf16>, vector<128x4xbf16>, vector<2x4xf32> -> vector<2x4xf32>
    %c0_30 = arith.constant 0 : index
    %c0_31 = arith.constant 0 : index
    %55 = vector.load %arg11[%c0_30, %c0_31] : memref<1x4xf32, #tpu.memory_space<vmem>>, vector<1x4xf32>
    %56 = vector.broadcast %55 : vector<1x4xf32> to vector<2x4xf32>
    %57 = arith.addf %54, %56 : vector<2x4xf32>
    %cst_32 = arith.constant dense<0xFF800000> : vector<2xf32>
    %58 = vector.multi_reduction <maximumf>, %57, %cst_32 [1] : vector<2x4xf32> to vector<2xf32>
    %59 = vector.shape_cast %58 : vector<2xf32> to vector<2x1xf32>
    %60 = vector.broadcast %59 : vector<2x1xf32> to vector<2x4xf32>
    %61 = arith.subf %57, %60 : vector<2x4xf32>
    %62 = math.exp %61 : vector<2x4xf32>
    %cst_33 = arith.constant dense<0.000000e+00> : vector<2xf32>
    %63 = vector.multi_reduction <add>, %62, %cst_33 [1] : vector<2x4xf32> to vector<2xf32>
    %64 = vector.shape_cast %63 : vector<2xf32> to vector<2x1xf32>
    %65 = vector.broadcast %64 : vector<2x1xf32> to vector<2x4xf32>
    %66 = arith.divf %62, %65 : vector<2x4xf32>
    %c0_34 = arith.constant 0 : index
    %c0_35 = arith.constant 0 : index
    %67 = vector.load %arg12[%c0_34, %c0_35] : memref<2x4xf32, #tpu.memory_space<vmem>>, vector<2x4xf32>
    tpu.vector_store %arg12[%c0_34, %c0_35], %66 {strides = array<i32>} : memref<2x4xf32, #tpu.memory_space<vmem>>, vector<2x4xf32>,
    return
  }
  func.func @transform_0(%arg0: i32) -> (i32, i32) {
    %c0_i32 = arith.constant 0 : i32
    %c0_i32_0 = arith.constant 0 : i32
    %c0_i32_1 = arith.constant 0 : i32
    return %c0_i32, %c0_i32_0 : i32, i32
  }
  func.func @transform_1(%arg0: i32) -> (i32, i32) {
    %c0_i32 = arith.constant 0 : i32
    %c0_i32_0 = arith.constant 0 : i32
    %c0_i32_1 = arith.constant 0 : i32
    return %c0_i32, %c0_i32_0 : i32, i32
  }
  func.func @transform_2(%arg0: i32) -> (i32, i32) {
    %c0_i32 = arith.constant 0 : i32
    %c0_i32_0 = arith.constant 0 : i32
    %c0_i32_1 = arith.constant 0 : i32
    return %c0_i32, %c0_i32_0 : i32, i32
  }
  func.func @transform_3(%arg0: i32) -> (i32, i32) {
    %c0_i32 = arith.constant 0 : i32
    %c0_i32_0 = arith.constant 0 : i32
    %c0_i32_1 = arith.constant 0 : i32
    return %c0_i32, %c0_i32_0 : i32, i32
  }
  func.func @transform_4(%arg0: i32) -> (i32, i32) {
    %c0_i32 = arith.constant 0 : i32
    %c0_i32_0 = arith.constant 0 : i32
    %c0_i32_1 = arith.constant 0 : i32
    return %c0_i32, %c0_i32_0 : i32, i32
  }
  func.func @transform_5(%arg0: i32) -> (i32, i32) {
    %c0_i32 = arith.constant 0 : i32
    %c0_i32_0 = arith.constant 0 : i32
    %c0_i32_1 = arith.constant 0 : i32
    return %c0_i32, %c0_i32_0 : i32, i32
  }
  func.func @transform_6(%arg0: i32) -> (i32, i32) {
    %c0_i32 = arith.constant 0 : i32
    %c0_i32_0 = arith.constant 0 : i32
    %c0_i32_1 = arith.constant 0 : i32
    return %c0_i32, %c0_i32_0 : i32, i32
  }
  func.func @transform_7(%arg0: i32) -> (i32, i32) {
    %c0_i32 = arith.constant 0 : i32
    %c0_i32_0 = arith.constant 0 : i32
    %c0_i32_1 = arith.constant 0 : i32
    return %c0_i32, %c0_i32_0 : i32, i32
  }
  func.func @transform_8(%arg0: i32) -> (i32, i32) {
    %c0_i32 = arith.constant 0 : i32
    %c0_i32_0 = arith.constant 0 : i32
    %c0_i32_1 = arith.constant 0 : i32
    return %c0_i32, %c0_i32_0 : i32, i32
  }
  func.func @transform_9(%arg0: i32) -> (i32, i32) {
    %c0_i32 = arith.constant 0 : i32
    %c0_i32_0 = arith.constant 0 : i32
    %c0_i32_1 = arith.constant 0 : i32
    return %c0_i32, %c0_i32_0 : i32, i32
  }
  func.func @transform_10(%arg0: i32) -> (i32, i32) {
    %c0_i32 = arith.constant 0 : i32
    %c0_i32_0 = arith.constant 0 : i32
    %c0_i32_1 = arith.constant 0 : i32
    return %c0_i32, %c0_i32_0 : i32, i32
  }
  func.func @transform_11(%arg0: i32) -> (i32, i32) {
    %c0_i32 = arith.constant 0 : i32
    %c0_i32_0 = arith.constant 0 : i32
    %c0_i32_1 = arith.constant 0 : i32
    return %c0_i32, %c0_i32_0 : i32, i32
  }
}

</mosaic_0001>

<llo_original>
// kernel: clip_forward.1
$region0: #{clip_forward.1}
  #allocation0 [shape = 'u32[]', space=smem, size = 0x4, offset = 0x4, fixed_abs, tag = 'smem constant byte address 0x4 - core index']
  #allocation1 [shape = 'u32[144,128]{1,0:T(1,128)}', space=vmem, size = 0x12000, scoped, tag = 'internal scratch']
  %s0 = inlined_call_operand.vmem [shape: bf16[2,3072], index: 0, kind: input, shape index: {}]
  %s1 = inlined_call_operand.vmem [shape: bf16[3072,256], index: 1, kind: input, shape index: {}]
  %s2 = inlined_call_operand.vmem [shape: f32[1,256], index: 2, kind: input, shape index: {}]
  %s3 = inlined_call_operand.vmem [shape: bf16[256,512], index: 3, kind: input, shape index: {}]
  %s4 = inlined_call_operand.vmem [shape: f32[1,512], index: 4, kind: input, shape index: {}]
  %s5 = inlined_call_operand.vmem [shape: bf16[512,128], index: 5, kind: input, shape index: {}]
  %s6 = inlined_call_operand.vmem [shape: f32[1,128], index: 6, kind: input, shape index: {}]
  %s7 = inlined_call_operand.vmem [shape: f32[1,128], index: 7, kind: input, shape index: {}]
  %s8 = inlined_call_operand.vmem [shape: f32[1,128], index: 8, kind: input, shape index: {}]
  %s9 = inlined_call_operand.vmem [shape: bf16[128,4], index: 9, kind: input, shape index: {}]
  %s10 = inlined_call_operand.vmem [shape: f32[1,4], index: 10, kind: input, shape index: {}]
  %s11 = inlined_call_operand.hbm [shape: f32[2,4], index: 11, kind: output, shape index: {}]
  %s12 = sld [smem:[#allocation0]]
  $region54: #{clip_forward.1} parent=0
    _
  %s14 = ssub.s32 1, %s12
  %s15 = scalar_select 0, %s14, %s12
  $region1: #{clip_forward.1} parent=0
    #allocation2 [shape = 'u8[1024]{0}', space=vmem, size = 0x400, scoped, tag = 'output window, operand 0, single buffered']
    #allocation3 [shape = 's32[1]{0}', space=sflag, size = 0x4, scoped, tag = 'scoped memory for clip_forward.1']
    %16 = vsyncpa [#allocation3], 0
    // Predicated region
    $region2: #{clip_forward.1} parent=1 // pred_check
      _
    $region3: #{clip_forward.1} parent=1 // pred_check_branch
      %18 = sbr.rel (0) target = $region5
    $region4: #{clip_forward.1} parent=1 // pred_region
      _
    $region5: #{clip_forward.1} parent=1 // pred_fallthru
      _
    // Predicated region
    $region6: #{clip_forward.1} parent=1 // pred_check
      _
    $region7: #{clip_forward.1} parent=1 // pred_check_branch
      %20 = sbr.rel (0) target = $region9
    $region8: #{clip_forward.1} parent=1 // pred_region
      _
    $region9: #{clip_forward.1} parent=1 // pred_fallthru
      _
    // Predicated region
    $region10: #{clip_forward.1} parent=1 // pred_check
      _
    $region11: #{clip_forward.1} parent=1 // pred_check_branch
      %22 = sbr.rel (0) target = $region13
    $region12: #{clip_forward.1} parent=1 // pred_region
      _
    $region13: #{clip_forward.1} parent=1 // pred_fallthru
      _
    // Predicated region
    $region14: #{clip_forward.1} parent=1 // pred_check
      _
    $region15: #{clip_forward.1} parent=1 // pred_check_branch
      %24 = sbr.rel (0) target = $region17
    $region16: #{clip_forward.1} parent=1 // pred_region
      _
    $region17: #{clip_forward.1} parent=1 // pred_fallthru
      _
    // Predicated region
    $region18: #{clip_forward.1} parent=1 // pred_check
      _
    $region19: #{clip_forward.1} parent=1 // pred_check_branch
      %26 = sbr.rel (0) target = $region21
    $region20: #{clip_forward.1} parent=1 // pred_region
      _
    $region21: #{clip_forward.1} parent=1 // pred_fallthru
      _
    // Predicated region
    $region22: #{clip_forward.1} parent=1 // pred_check
      _
    $region23: #{clip_forward.1} parent=1 // pred_check_branch
      %28 = sbr.rel (0) target = $region25
    $region24: #{clip_forward.1} parent=1 // pred_region
      _
    $region25: #{clip_forward.1} parent=1 // pred_fallthru
      _
    // Predicated region
    $region26: #{clip_forward.1} parent=1 // pred_check
      _
    $region27: #{clip_forward.1} parent=1 // pred_check_branch
      %30 = sbr.rel (0) target = $region29
    $region28: #{clip_forward.1} parent=1 // pred_region
      _
    $region29: #{clip_forward.1} parent=1 // pred_fallthru
      _
    // Predicated region
    $region30: #{clip_forward.1} parent=1 // pred_check
      _
    $region31: #{clip_forward.1} parent=1 // pred_check_branch
      %32 = sbr.rel (0) target = $region33
    $region32: #{clip_forward.1} parent=1 // pred_region
      _
    $region33: #{clip_forward.1} parent=1 // pred_fallthru
      _
    // Predicated region
    $region34: #{clip_forward.1} parent=1 // pred_check
      _
    $region35: #{clip_forward.1} parent=1 // pred_check_branch
      %34 = sbr.rel (0) target = $region37
    $region36: #{clip_forward.1} parent=1 // pred_region
      _
    $region37: #{clip_forward.1} parent=1 // pred_fallthru
      _
    // Predicated region
    $region38: #{clip_forward.1} parent=1 // pred_check
      _
    $region39: #{clip_forward.1} parent=1 // pred_check_branch
      %36 = sbr.rel (0) target = $region41
    $region40: #{clip_forward.1} parent=1 // pred_region
      _
    $region41: #{clip_forward.1} parent=1 // pred_fallthru
      _
    // Predicated region
    $region42: #{clip_forward.1} parent=1 // pred_check
      _
    $region43: #{clip_forward.1} parent=1 // pred_check_branch
      %38 = sbr.rel (0) target = $region45
    $region44: #{clip_forward.1} parent=1 // pred_region
      _
    $region45: #{clip_forward.1} parent=1 // pred_fallthru
      _
    %v40 = vld [vmem:[%s0] sm:$0xff]
    %v41 = vld [vmem:[%s0 + $0x8] sm:$0xff]
    %v42 = vld [vmem:[%s0 + $0x10] sm:$0xff]
    %v43 = vld [vmem:[%s1] sm:$0xff]
    %v44 = vld [vmem:[%s1 + $0x8] sm:$0xff]
    %v45 = vld [vmem:[%s1 + $0x10] sm:$0xff]
    %v46 = vld [vmem:[%s1 + $0x18] sm:$0xff]
    %v47 = vld [vmem:[%s1 + $0x20] sm:$0xff]
    %v48 = vld [vmem:[%s1 + $0x28] sm:$0xff]
    %v49 = vld [vmem:[%s1 + $0x30] sm:$0xff]
    %v50 = vld [vmem:[%s1 + $0x38] sm:$0xff]
    %v51 = vld [vmem:[%s1 + $0x40] sm:$0xff]
    %v52 = vld [vmem:[%s1 + $0x48] sm:$0xff]
    %v53 = vld [vmem:[%s1 + $0x50] sm:$0xff]
    %v54 = vld [vmem:[%s1 + $0x58] sm:$0xff]
    %v55 = vld [vmem:[%s1 + $0x60] sm:$0xff]
    %v56 = vld [vmem:[%s1 + $0x68] sm:$0xff]
    %v57 = vld [vmem:[%s1 + $0x70] sm:$0xff]
    %v58 = vld [vmem:[%s1 + $0x78] sm:$0xff]
    %v59 = vld [vmem:[%s1 + $0x80] sm:$0xff]
    %v60 = vld [vmem:[%s1 + $0x88] sm:$0xff]
    %v61 = vld [vmem:[%s1 + $0x90] sm:$0xff]
    %v62 = vld [vmem:[%s1 + $0x98] sm:$0xff]
    %v63 = vld [vmem:[%s1 + $0xa0] sm:$0xff]
    %v64 = vld [vmem:[%s1 + $0xa8] sm:$0xff]
    %v65 = vld [vmem:[%s1 + $0xb0] sm:$0xff]
    %v66 = vld [vmem:[%s1 + $0xb8] sm:$0xff]
    %v67 = vld [vmem:[%s1 + $0xc0] sm:$0xff]
    %v68 = vld [vmem:[%s1 + $0xc8] sm:$0xff]
    %v69 = vld [vmem:[%s1 + $0xd0] sm:$0xff]
    %v70 = vld [vmem:[%s1 + $0xd8] sm:$0xff]
    %v71 = vld [vmem:[%s1 + $0xe0] sm:$0xff]
    %v72 = vld [vmem:[%s1 + $0xe8] sm:$0xff]
    %v73 = vld [vmem:[%s1 + $0xf0] sm:$0xff]
    %v74 = vld [vmem:[%s1 + $0xf8] sm:$0xff]
    %v75 = vld [vmem:[%s1 + $0x100] sm:$0xff]
    %v76 = vld [vmem:[%s1 + $0x108] sm:$0xff]
    %v77 = vld [vmem:[%s1 + $0x110] sm:$0xff]
    %v78 = vld [vmem:[%s1 + $0x118] sm:$0xff]
    %v79 = vld [vmem:[%s1 + $0x120] sm:$0xff]
    %v80 = vld [vmem:[%s1 + $0x128] sm:$0xff]
    %v81 = vld [vmem:[%s1 + $0x130] sm:$0xff]
    %v82 = vld [vmem:[%s1 + $0x138] sm:$0xff]
    %v83 = vld [vmem:[%s1 + $0x140] sm:$0xff]
    %v84 = vld [vmem:[%s1 + $0x148] sm:$0xff]
    %v85 = vld [vmem:[%s1 + $0x150] sm:$0xff]
    %v86 = vld [vmem:[%s1 + $0x158] sm:$0xff]
    %v87 = vld [vmem:[%s1 + $0x160] sm:$0xff]
    %v88 = vld [vmem:[%s1 + $0x168] sm:$0xff]
    %v89 = vld [vmem:[%s1 + $0x170] sm:$0xff]
    %v90 = vld [vmem:[%s1 + $0x178] sm:$0xff]
    %v91 = vld [vmem:[%s1 + $0x180] sm:$0xff]
    %v92 = vld [vmem:[%s1 + $0x188] sm:$0xff]
    %v93 = vld [vmem:[%s1 + $0x190] sm:$0xff]
    %v94 = vld [vmem:[%s1 + $0x198] sm:$0xff]
    %v95 = vld [vmem:[%s1 + $0x1a0] sm:$0xff]
    %v96 = vld [vmem:[%s1 + $0x1a8] sm:$0xff]
    %v97 = vld [vmem:[%s1 + $0x1b0] sm:$0xff]
    %v98 = vld [vmem:[%s1 + $0x1b8] sm:$0xff]
    %v99 = vld [vmem:[%s1 + $0x1c0] sm:$0xff]
    %v100 = vld [vmem:[%s1 + $0x1c8] sm:$0xff]
    %v101 = vld [vmem:[%s1 + $0x1d0] sm:$0xff]
    %v102 = vld [vmem:[%s1 + $0x1d8] sm:$0xff]
    %v103 = vld [vmem:[%s1 + $0x1e0] sm:$0xff]
    %v104 = vld [vmem:[%s1 + $0x1e8] sm:$0xff]
    %v105 = vld [vmem:[%s1 + $0x1f0] sm:$0xff]
    %v106 = vld [vmem:[%s1 + $0x1f8] sm:$0xff]
    %v107 = vld [vmem:[%s1 + $0x200] sm:$0xff]
    %v108 = vld [vmem:[%s1 + $0x208] sm:$0xff]
    %v109 = vld [vmem:[%s1 + $0x210] sm:$0xff]
    %v110 = vld [vmem:[%s1 + $0x218] sm:$0xff]
    %v111 = vld [vmem:[%s1 + $0x220] sm:$0xff]
    %v112 = vld [vmem:[%s1 + $0x228] sm:$0xff]
    %v113 = vld [vmem:[%s1 + $0x230] sm:$0xff]
    %v114 = vld [vmem:[%s1 + $0x238] sm:$0xff]
    %v115 = vld [vmem:[%s1 + $0x240] sm:$0xff]
    %v116 = vld [vmem:[%s1 + $0x248] sm:$0xff]
    %v117 = vld [vmem:[%s1 + $0x250] sm:$0xff]
    %v118 = vld [vmem:[%s1 + $0x258] sm:$0xff]
    %v119 = vld [vmem:[%s1 + $0x260] sm:$0xff]
    %v120 = vld [vmem:[%s1 + $0x268] sm:$0xff]
    %v121 = vld [vmem:[%s1 + $0x270] sm:$0xff]
    %v122 = vld [vmem:[%s1 + $0x278] sm:$0xff]
    %v123 = vld [vmem:[%s1 + $0x280] sm:$0xff]
    %v124 = vld [vmem:[%s1 + $0x288] sm:$0xff]
    %v125 = vld [vmem:[%s1 + $0x290] sm:$0xff]
    %v126 = vld [vmem:[%s1 + $0x298] sm:$0xff]
    %v127 = vld [vmem:[%s1 + $0x2a0] sm:$0xff]
    %v128 = vld [vmem:[%s1 + $0x2a8] sm:$0xff]
    %v129 = vld [vmem:[%s1 + $0x2b0] sm:$0xff]
    %v130 = vld [vmem:[%s1 + $0x2b8] sm:$0xff]
    %v131 = vld [vmem:[%s1 + $0x2c0] sm:$0xff]
    %v132 = vld [vmem:[%s1 + $0x2c8] sm:$0xff]
    %v133 = vld [vmem:[%s1 + $0x2d0] sm:$0xff]
    %v134 = vld [vmem:[%s1 + $0x2d8] sm:$0xff]
    %v135 = vld [vmem:[%s1 + $0x2e0] sm:$0xff]
    %v136 = vld [vmem:[%s1 + $0x2e8] sm:$0xff]
    %v137 = vld [vmem:[%s1 + $0x2f0] sm:$0xff]
    %v138 = vld [vmem:[%s1 + $0x2f8] sm:$0xff]
    %v139 = vld [vmem:[%s1 + $0x300] sm:$0xff]
    %v140 = vld [vmem:[%s1 + $0x308] sm:$0xff]
    %v141 = vld [vmem:[%s1 + $0x310] sm:$0xff]
    %v142 = vld [vmem:[%s1 + $0x318] sm:$0xff]
    %v143 = vld [vmem:[%s1 + $0x320] sm:$0xff]
    %v144 = vld [vmem:[%s1 + $0x328] sm:$0xff]
    %v145 = vld [vmem:[%s1 + $0x330] sm:$0xff]
    %v146 = vld [vmem:[%s1 + $0x338] sm:$0xff]
    %v147 = vld [vmem:[%s1 + $0x340] sm:$0xff]
    %v148 = vld [vmem:[%s1 + $0x348] sm:$0xff]
    %v149 = vld [vmem:[%s1 + $0x350] sm:$0xff]
    %v150 = vld [vmem:[%s1 + $0x358] sm:$0xff]
    %v151 = vld [vmem:[%s1 + $0x360] sm:$0xff]
    %v152 = vld [vmem:[%s1 + $0x368] sm:$0xff]
    %v153 = vld [vmem:[%s1 + $0x370] sm:$0xff]
    %v154 = vld [vmem:[%s1 + $0x378] sm:$0xff]
    %v155 = vld [vmem:[%s1 + $0x380] sm:$0xff]
    %v156 = vld [vmem:[%s1 + $0x388] sm:$0xff]
    %v157 = vld [vmem:[%s1 + $0x390] sm:$0xff]
    %v158 = vld [vmem:[%s1 + $0x398] sm:$0xff]
    %v159 = vld [vmem:[%s1 + $0x3a0] sm:$0xff]
    %v160 = vld [vmem:[%s1 + $0x3a8] sm:$0xff]
    %v161 = vld [vmem:[%s1 + $0x3b0] sm:$0xff]
    %v162 = vld [vmem:[%s1 + $0x3b8] sm:$0xff]
    %v163 = vld [vmem:[%s1 + $0x3c0] sm:$0xff]
    %v164 = vld [vmem:[%s1 + $0x3c8] sm:$0xff]
    %v165 = vld [vmem:[%s1 + $0x3d0] sm:$0xff]
    %v166 = vld [vmem:[%s1 + $0x3d8] sm:$0xff]
    %v167 = vld [vmem:[%s1 + $0x3e0] sm:$0xff]
    %v168 = vld [vmem:[%s1 + $0x3e8] sm:$0xff]
    %v169 = vld [vmem:[%s1 + $0x3f0] sm:$0xff]
    %v170 = vld [vmem:[%s1 + $0x3f8] sm:$0xff]
    %v171 = vld [vmem:[%s1 + $0x400] sm:$0xff]
    %v172 = vld [vmem:[%s1 + $0x408] sm:$0xff]
    %v173 = vld [vmem:[%s1 + $0x410] sm:$0xff]
    %v174 = vld [vmem:[%s1 + $0x418] sm:$0xff]
    %v175 = vld [vmem:[%s1 + $0x420] sm:$0xff]
    %v176 = vld [vmem:[%s1 + $0x428] sm:$0xff]
    %v177 = vld [vmem:[%s1 + $0x430] sm:$0xff]
    %v178 = vld [vmem:[%s1 + $0x438] sm:$0xff]
    %v179 = vld [vmem:[%s1 + $0x440] sm:$0xff]
    %v180 = vld [vmem:[%s1 + $0x448] sm:$0xff]
    %v181 = vld [vmem:[%s1 + $0x450] sm:$0xff]
    %v182 = vld [vmem:[%s1 + $0x458] sm:$0xff]
    %v183 = vld [vmem:[%s1 + $0x460] sm:$0xff]
    %v184 = vld [vmem:[%s1 + $0x468] sm:$0xff]
    %v185 = vld [vmem:[%s1 + $0x470] sm:$0xff]
    %v186 = vld [vmem:[%s1 + $0x478] sm:$0xff]
    %v187 = vld [vmem:[%s1 + $0x480] sm:$0xff]
    %v188 = vld [vmem:[%s1 + $0x488] sm:$0xff]
    %v189 = vld [vmem:[%s1 + $0x490] sm:$0xff]
    %v190 = vld [vmem:[%s1 + $0x498] sm:$0xff]
    %v191 = vld [vmem:[%s1 + $0x4a0] sm:$0xff]
    %v192 = vld [vmem:[%s1 + $0x4a8] sm:$0xff]
    %v193 = vld [vmem:[%s1 + $0x4b0] sm:$0xff]
    %v194 = vld [vmem:[%s1 + $0x4b8] sm:$0xff]
    %v195 = vld [vmem:[%s1 + $0x4c0] sm:$0xff]
    %v196 = vld [vmem:[%s1 + $0x4c8] sm:$0xff]
    %v197 = vld [vmem:[%s1 + $0x4d0] sm:$0xff]
    %v198 = vld [vmem:[%s1 + $0x4d8] sm:$0xff]
    %v199 = vld [vmem:[%s1 + $0x4e0] sm:$0xff]
    %v200 = vld [vmem:[%s1 + $0x4e8] sm:$0xff]
    %v201 = vld [vmem:[%s1 + $0x4f0] sm:$0xff]
    %v202 = vld [vmem:[%s1 + $0x4f8] sm:$0xff]
    %v203 = vld [vmem:[%s1 + $0x500] sm:$0xff]
    %v204 = vld [vmem:[%s1 + $0x508] sm:$0xff]
    %v205 = vld [vmem:[%s1 + $0x510] sm:$0xff]
    %v206 = vld [vmem:[%s1 + $0x518] sm:$0xff]
    %v207 = vld [vmem:[%s1 + $0x520] sm:$0xff]
    %v208 = vld [vmem:[%s1 + $0x528] sm:$0xff]
    %v209 = vld [vmem:[%s1 + $0x530] sm:$0xff]
    %v210 = vld [vmem:[%s1 + $0x538] sm:$0xff]
    %v211 = vld [vmem:[%s1 + $0x540] sm:$0xff]
    %v212 = vld [vmem:[%s1 + $0x548] sm:$0xff]
    %v213 = vld [vmem:[%s1 + $0x550] sm:$0xff]
    %v214 = vld [vmem:[%s1 + $0x558] sm:$0xff]
    %v215 = vld [vmem:[%s1 + $0x560] sm:$0xff]
    %v216 = vld [vmem:[%s1 + $0x568] sm:$0xff]
    %v217 = vld [vmem:[%s1 + $0x570] sm:$0xff]
    %v218 = vld [vmem:[%s1 + $0x578] sm:$0xff]
    %v219 = vld [vmem:[%s1 + $0x580] sm:$0xff]
    %v220 = vld [vmem:[%s1 + $0x588] sm:$0xff]
    %v221 = vld [vmem:[%s1 + $0x590] sm:$0xff]
    %v222 = vld [vmem:[%s1 + $0x598] sm:$0xff]
    %v223 = vld [vmem:[%s1 + $0x5a0] sm:$0xff]
    %v224 = vld [vmem:[%s1 + $0x5a8] sm:$0xff]
    %v225 = vld [vmem:[%s1 + $0x5b0] sm:$0xff]
    %v226 = vld [vmem:[%s1 + $0x5b8] sm:$0xff]
    %v227 = vld [vmem:[%s1 + $0x5c0] sm:$0xff]
    %v228 = vld [vmem:[%s1 + $0x5c8] sm:$0xff]
    %v229 = vld [vmem:[%s1 + $0x5d0] sm:$0xff]
    %v230 = vld [vmem:[%s1 + $0x5d8] sm:$0xff]
    %v231 = vld [vmem:[%s1 + $0x5e0] sm:$0xff]
    %v232 = vld [vmem:[%s1 + $0x5e8] sm:$0xff]
    %v233 = vld [vmem:[%s1 + $0x5f0] sm:$0xff]
    %v234 = vld [vmem:[%s1 + $0x5f8] sm:$0xff]
    %v235 = vld [vmem:[%s1 + $0x600] sm:$0xff]
    %v236 = vld [vmem:[%s1 + $0x608] sm:$0xff]
    %v237 = vld [vmem:[%s1 + $0x610] sm:$0xff]
    %v238 = vld [vmem:[%s1 + $0x618] sm:$0xff]
    %v239 = vld [vmem:[%s1 + $0x620] sm:$0xff]
    %v240 = vld [vmem:[%s1 + $0x628] sm:$0xff]
    %v241 = vld [vmem:[%s1 + $0x630] sm:$0xff]
    %v242 = vld [vmem:[%s1 + $0x638] sm:$0xff]
    %v243 = vld [vmem:[%s1 + $0x640] sm:$0xff]
    %v244 = vld [vmem:[%s1 + $0x648] sm:$0xff]
    %v245 = vld [vmem:[%s1 + $0x650] sm:$0xff]
    %v246 = vld [vmem:[%s1 + $0x658] sm:$0xff]
    %v247 = vld [vmem:[%s1 + $0x660] sm:$0xff]
    %v248 = vld [vmem:[%s1 + $0x668] sm:$0xff]
    %v249 = vld [vmem:[%s1 + $0x670] sm:$0xff]
    %v250 = vld [vmem:[%s1 + $0x678] sm:$0xff]
    %v251 = vld [vmem:[%s1 + $0x680] sm:$0xff]
    %v252 = vld [vmem:[%s1 + $0x688] sm:$0xff]
    %v253 = vld [vmem:[%s1 + $0x690] sm:$0xff]
    %v254 = vld [vmem:[%s1 + $0x698] sm:$0xff]
    %v255 = vld [vmem:[%s1 + $0x6a0] sm:$0xff]
    %v256 = vld [vmem:[%s1 + $0x6a8] sm:$0xff]
    %v257 = vld [vmem:[%s1 + $0x6b0] sm:$0xff]
    %v258 = vld [vmem:[%s1 + $0x6b8] sm:$0xff]
    %v259 = vld [vmem:[%s1 + $0x6c0] sm:$0xff]
    %v260 = vld [vmem:[%s1 + $0x6c8] sm:$0xff]
    %v261 = vld [vmem:[%s1 + $0x6d0] sm:$0xff]
    %v262 = vld [vmem:[%s1 + $0x6d8] sm:$0xff]
    %v263 = vld [vmem:[%s1 + $0x6e0] sm:$0xff]
    %v264 = vld [vmem:[%s1 + $0x6e8] sm:$0xff]
    %v265 = vld [vmem:[%s1 + $0x6f0] sm:$0xff]
    %v266 = vld [vmem:[%s1 + $0x6f8] sm:$0xff]
    %v267 = vld [vmem:[%s1 + $0x700] sm:$0xff]
    %v268 = vld [vmem:[%s1 + $0x708] sm:$0xff]
    %v269 = vld [vmem:[%s1 + $0x710] sm:$0xff]
    %v270 = vld [vmem:[%s1 + $0x718] sm:$0xff]
    %v271 = vld [vmem:[%s1 + $0x720] sm:$0xff]
    %v272 = vld [vmem:[%s1 + $0x728] sm:$0xff]
    %v273 = vld [vmem:[%s1 + $0x730] sm:$0xff]
    %v274 = vld [vmem:[%s1 + $0x738] sm:$0xff]
    %v275 = vld [vmem:[%s1 + $0x740] sm:$0xff]
    %v276 = vld [vmem:[%s1 + $0x748] sm:$0xff]
    %v277 = vld [vmem:[%s1 + $0x750] sm:$0xff]
    %v278 = vld [vmem:[%s1 + $0x758] sm:$0xff]
    %v279 = vld [vmem:[%s1 + $0x760] sm:$0xff]
    %v280 = vld [vmem:[%s1 + $0x768] sm:$0xff]
    %v281 = vld [vmem:[%s1 + $0x770] sm:$0xff]
    %v282 = vld [vmem:[%s1 + $0x778] sm:$0xff]
    %v283 = vld [vmem:[%s1 + $0x780] sm:$0xff]
    %v284 = vld [vmem:[%s1 + $0x788] sm:$0xff]
    %v285 = vld [vmem:[%s1 + $0x790] sm:$0xff]
    %v286 = vld [vmem:[%s1 + $0x798] sm:$0xff]
    %v287 = vld [vmem:[%s1 + $0x7a0] sm:$0xff]
    %v288 = vld [vmem:[%s1 + $0x7a8] sm:$0xff]
    %v289 = vld [vmem:[%s1 + $0x7b0] sm:$0xff]
    %v290 = vld [vmem:[%s1 + $0x7b8] sm:$0xff]
    %v291 = vld [vmem:[%s1 + $0x7c0] sm:$0xff]
    %v292 = vld [vmem:[%s1 + $0x7c8] sm:$0xff]
    %v293 = vld [vmem:[%s1 + $0x7d0] sm:$0xff]
    %v294 = vld [vmem:[%s1 + $0x7d8] sm:$0xff]
    %v295 = vld [vmem:[%s1 + $0x7e0] sm:$0xff]
    %v296 = vld [vmem:[%s1 + $0x7e8] sm:$0xff]
    %v297 = vld [vmem:[%s1 + $0x7f0] sm:$0xff]
    %v298 = vld [vmem:[%s1 + $0x7f8] sm:$0xff]
    %v299 = vld [vmem:[%s1 + $0x800] sm:$0xff]
    %v300 = vld [vmem:[%s1 + $0x808] sm:$0xff]
    %v301 = vld [vmem:[%s1 + $0x810] sm:$0xff]
    %v302 = vld [vmem:[%s1 + $0x818] sm:$0xff]
    %v303 = vld [vmem:[%s1 + $0x820] sm:$0xff]
    %v304 = vld [vmem:[%s1 + $0x828] sm:$0xff]
    %v305 = vld [vmem:[%s1 + $0x830] sm:$0xff]
    %v306 = vld [vmem:[%s1 + $0x838] sm:$0xff]
    %v307 = vld [vmem:[%s1 + $0x840] sm:$0xff]
    %v308 = vld [vmem:[%s1 + $0x848] sm:$0xff]
    %v309 = vld [vmem:[%s1 + $0x850] sm:$0xff]
    %v310 = vld [vmem:[%s1 + $0x858] sm:$0xff]
    %v311 = vld [vmem:[%s1 + $0x860] sm:$0xff]
    %v312 = vld [vmem:[%s1 + $0x868] sm:$0xff]
    %v313 = vld [vmem:[%s1 + $0x870] sm:$0xff]
    %v314 = vld [vmem:[%s1 + $0x878] sm:$0xff]
    %v315 = vld [vmem:[%s1 + $0x880] sm:$0xff]
    %v316 = vld [vmem:[%s1 + $0x888] sm:$0xff]
    %v317 = vld [vmem:[%s1 + $0x890] sm:$0xff]
    %v318 = vld [vmem:[%s1 + $0x898] sm:$0xff]
    %v319 = vld [vmem:[%s1 + $0x8a0] sm:$0xff]
    %v320 = vld [vmem:[%s1 + $0x8a8] sm:$0xff]
    %v321 = vld [vmem:[%s1 + $0x8b0] sm:$0xff]
    %v322 = vld [vmem:[%s1 + $0x8b8] sm:$0xff]
    %v323 = vld [vmem:[%s1 + $0x8c0] sm:$0xff]
    %v324 = vld [vmem:[%s1 + $0x8c8] sm:$0xff]
    %v325 = vld [vmem:[%s1 + $0x8d0] sm:$0xff]
    %v326 = vld [vmem:[%s1 + $0x8d8] sm:$0xff]
    %v327 = vld [vmem:[%s1 + $0x8e0] sm:$0xff]
    %v328 = vld [vmem:[%s1 + $0x8e8] sm:$0xff]
    %v329 = vld [vmem:[%s1 + $0x8f0] sm:$0xff]
    %v330 = vld [vmem:[%s1 + $0x8f8] sm:$0xff]
    %v331 = vld [vmem:[%s1 + $0x900] sm:$0xff]
    %v332 = vld [vmem:[%s1 + $0x908] sm:$0xff]
    %v333 = vld [vmem:[%s1 + $0x910] sm:$0xff]
    %v334 = vld [vmem:[%s1 + $0x918] sm:$0xff]
    %v335 = vld [vmem:[%s1 + $0x920] sm:$0xff]
    %v336 = vld [vmem:[%s1 + $0x928] sm:$0xff]
    %v337 = vld [vmem:[%s1 + $0x930] sm:$0xff]
    %v338 = vld [vmem:[%s1 + $0x938] sm:$0xff]
    %v339 = vld [vmem:[%s1 + $0x940] sm:$0xff]
    %v340 = vld [vmem:[%s1 + $0x948] sm:$0xff]
    %v341 = vld [vmem:[%s1 + $0x950] sm:$0xff]
    %v342 = vld [vmem:[%s1 + $0x958] sm:$0xff]
    %v343 = vld [vmem:[%s1 + $0x960] sm:$0xff]
    %v344 = vld [vmem:[%s1 + $0x968] sm:$0xff]
    %v345 = vld [vmem:[%s1 + $0x970] sm:$0xff]
    %v346 = vld [vmem:[%s1 + $0x978] sm:$0xff]
    %v347 = vld [vmem:[%s1 + $0x980] sm:$0xff]
    %v348 = vld [vmem:[%s1 + $0x988] sm:$0xff]
    %v349 = vld [vmem:[%s1 + $0x990] sm:$0xff]
    %v350 = vld [vmem:[%s1 + $0x998] sm:$0xff]
    %v351 = vld [vmem:[%s1 + $0x9a0] sm:$0xff]
    %v352 = vld [vmem:[%s1 + $0x9a8] sm:$0xff]
    %v353 = vld [vmem:[%s1 + $0x9b0] sm:$0xff]
    %v354 = vld [vmem:[%s1 + $0x9b8] sm:$0xff]
    %v355 = vld [vmem:[%s1 + $0x9c0] sm:$0xff]
    %v356 = vld [vmem:[%s1 + $0x9c8] sm:$0xff]
    %v357 = vld [vmem:[%s1 + $0x9d0] sm:$0xff]
    %v358 = vld [vmem:[%s1 + $0x9d8] sm:$0xff]
    %v359 = vld [vmem:[%s1 + $0x9e0] sm:$0xff]
    %v360 = vld [vmem:[%s1 + $0x9e8] sm:$0xff]
    %v361 = vld [vmem:[%s1 + $0x9f0] sm:$0xff]
    %v362 = vld [vmem:[%s1 + $0x9f8] sm:$0xff]
    %v363 = vld [vmem:[%s1 + $0xa00] sm:$0xff]
    %v364 = vld [vmem:[%s1 + $0xa08] sm:$0xff]
    %v365 = vld [vmem:[%s1 + $0xa10] sm:$0xff]
    %v366 = vld [vmem:[%s1 + $0xa18] sm:$0xff]
    %v367 = vld [vmem:[%s1 + $0xa20] sm:$0xff]
    %v368 = vld [vmem:[%s1 + $0xa28] sm:$0xff]
    %v369 = vld [vmem:[%s1 + $0xa30] sm:$0xff]
    %v370 = vld [vmem:[%s1 + $0xa38] sm:$0xff]
    %v371 = vld [vmem:[%s1 + $0xa40] sm:$0xff]
    %v372 = vld [vmem:[%s1 + $0xa48] sm:$0xff]
    %v373 = vld [vmem:[%s1 + $0xa50] sm:$0xff]
    %v374 = vld [vmem:[%s1 + $0xa58] sm:$0xff]
    %v375 = vld [vmem:[%s1 + $0xa60] sm:$0xff]
    %v376 = vld [vmem:[%s1 + $0xa68] sm:$0xff]
    %v377 = vld [vmem:[%s1 + $0xa70] sm:$0xff]
    %v378 = vld [vmem:[%s1 + $0xa78] sm:$0xff]
    %v379 = vld [vmem:[%s1 + $0xa80] sm:$0xff]
    %v380 = vld [vmem:[%s1 + $0xa88] sm:$0xff]
    %v381 = vld [vmem:[%s1 + $0xa90] sm:$0xff]
    %v382 = vld [vmem:[%s1 + $0xa98] sm:$0xff]
    %v383 = vld [vmem:[%s1 + $0xaa0] sm:$0xff]
    %v384 = vld [vmem:[%s1 + $0xaa8] sm:$0xff]
    %v385 = vld [vmem:[%s1 + $0xab0] sm:$0xff]
    %v386 = vld [vmem:[%s1 + $0xab8] sm:$0xff]
    %v387 = vld [vmem:[%s1 + $0xac0] sm:$0xff]
    %v388 = vld [vmem:[%s1 + $0xac8] sm:$0xff]
    %v389 = vld [vmem:[%s1 + $0xad0] sm:$0xff]
    %v390 = vld [vmem:[%s1 + $0xad8] sm:$0xff]
    %v391 = vld [vmem:[%s1 + $0xae0] sm:$0xff]
    %v392 = vld [vmem:[%s1 + $0xae8] sm:$0xff]
    %v393 = vld [vmem:[%s1 + $0xaf0] sm:$0xff]
    %v394 = vld [vmem:[%s1 + $0xaf8] sm:$0xff]
    %v395 = vld [vmem:[%s1 + $0xb00] sm:$0xff]
    %v396 = vld [vmem:[%s1 + $0xb08] sm:$0xff]
    %v397 = vld [vmem:[%s1 + $0xb10] sm:$0xff]
    %v398 = vld [vmem:[%s1 + $0xb18] sm:$0xff]
    %v399 = vld [vmem:[%s1 + $0xb20] sm:$0xff]
    %v400 = vld [vmem:[%s1 + $0xb28] sm:$0xff]
    %v401 = vld [vmem:[%s1 + $0xb30] sm:$0xff]
    %v402 = vld [vmem:[%s1 + $0xb38] sm:$0xff]
    %v403 = vld [vmem:[%s1 + $0xb40] sm:$0xff]
    %v404 = vld [vmem:[%s1 + $0xb48] sm:$0xff]
    %v405 = vld [vmem:[%s1 + $0xb50] sm:$0xff]
    %v406 = vld [vmem:[%s1 + $0xb58] sm:$0xff]
    %v407 = vld [vmem:[%s1 + $0xb60] sm:$0xff]
    %v408 = vld [vmem:[%s1 + $0xb68] sm:$0xff]
    %v409 = vld [vmem:[%s1 + $0xb70] sm:$0xff]
    %v410 = vld [vmem:[%s1 + $0xb78] sm:$0xff]
    %v411 = vld [vmem:[%s1 + $0xb80] sm:$0xff]
    %v412 = vld [vmem:[%s1 + $0xb88] sm:$0xff]
    %v413 = vld [vmem:[%s1 + $0xb90] sm:$0xff]
    %v414 = vld [vmem:[%s1 + $0xb98] sm:$0xff]
    %v415 = vld [vmem:[%s1 + $0xba0] sm:$0xff]
    %v416 = vld [vmem:[%s1 + $0xba8] sm:$0xff]
    %v417 = vld [vmem:[%s1 + $0xbb0] sm:$0xff]
    %v418 = vld [vmem:[%s1 + $0xbb8] sm:$0xff]
    %v419 = vld [vmem:[%s1 + $0xbc0] sm:$0xff]
    %v420 = vld [vmem:[%s1 + $0xbc8] sm:$0xff]
    %v421 = vld [vmem:[%s1 + $0xbd0] sm:$0xff]
    %v422 = vld [vmem:[%s1 + $0xbd8] sm:$0xff]
    %v423 = vld [vmem:[%s1 + $0xbe0] sm:$0xff]
    %v424 = vld [vmem:[%s1 + $0xbe8] sm:$0xff]
    %v425 = vld [vmem:[%s1 + $0xbf0] sm:$0xff]
    %v426 = vld [vmem:[%s1 + $0xbf8] sm:$0xff]
    %v427 = vld [vmem:[%s2] sm:$0x3]
    %v429 = vlaneseq
    %v430 = vshrl.u32 %v429, 7
    %v431 = vsub.s32 0, %v430
    %v432 = vrot.slane %v427, %v431
    %v433 = vlaneseq
    %v434 = vshrl.u32 %v433, 7
    %v435 = vsub.s32 1, %v434
    %v436 = vrot.slane %v427, %v435
    %v442 = vcombine.high %v40, %v40
    %v444 = vunpack.c.l.s4 1966171168
    %v445 = vunpack.c.0.s8 %v444
    %v446 = vlaneseq
    %v447 = vshrl.u32 %v446, 7
    %v448 = vsub.s32 %v445, %v447
    %v449 = vrot.slane %v40, %v448
    %v451 = vunpack.c.l.s4 1966171168
    %v452 = vunpack.c.0.s8 %v451
    %v453 = vlaneseq
    %v454 = vshrl.u32 %v453, 7
    %v455 = vsub.s32 %v452, %v454
    %v456 = vrot.slane %v442, %v455
    %v457 = vcombine.high %v449, %v449
    %v458 = vcombine.high %v456, %v456
    %v460 = vunpack.c.l.s4 1966171168
    %v461 = vunpack.c.0.s8 %v460
    %v462 = vlaneseq
    %v463 = vshrl.u32 %v462, 7
    %v464 = vsub.s32 %v461, %v463
    %v465 = vrot.slane %v449, %v464
    %v467 = vunpack.c.l.s4 1966171168
    %v468 = vunpack.c.0.s8 %v467
    %v469 = vlaneseq
    %v470 = vshrl.u32 %v469, 7
    %v471 = vsub.s32 %v468, %v470
    %v472 = vrot.slane %v456, %v471
    %v474 = vunpack.c.l.s4 1966171168
    %v475 = vunpack.c.0.s8 %v474
    %v476 = vlaneseq
    %v477 = vshrl.u32 %v476, 7
    %v478 = vsub.s32 %v475, %v477
    %v479 = vrot.slane %v457, %v478
    %v481 = vunpack.c.l.s4 1966171168
    %v482 = vunpack.c.0.s8 %v481
    %v483 = vlaneseq
    %v484 = vshrl.u32 %v483, 7
    %v485 = vsub.s32 %v482, %v484
    %v486 = vrot.slane %v458, %v485
    %v487 = vcombine.high %v465, %v465
    %v488 = vcombine.high %v472, %v472
    %v489 = vcombine.high %v479, %v479
    %v490 = vcombine.high %v486, %v486
    %v491 = vcombine.high %v41, %v41
    %v493 = vunpack.c.l.s4 1966171168
    %v494 = vunpack.c.0.s8 %v493
    %v495 = vlaneseq
    %v496 = vshrl.u32 %v495, 7
    %v497 = vsub.s32 %v494, %v496
    %v498 = vrot.slane %v41, %v497
    %v500 = vunpack.c.l.s4 1966171168
    %v501 = vunpack.c.0.s8 %v500
    %v502 = vlaneseq
    %v503 = vshrl.u32 %v502, 7
    %v504 = vsub.s32 %v501, %v503
    %v505 = vrot.slane %v491, %v504
    %v506 = vcombine.high %v498, %v498
    %v507 = vcombine.high %v505, %v505
    %v509 = vunpack.c.l.s4 1966171168
    %v510 = vunpack.c.0.s8 %v509
    %v511 = vlaneseq
    %v512 = vshrl.u32 %v511, 7
    %v513 = vsub.s32 %v510, %v512
    %v514 = vrot.slane %v498, %v513
    %v516 = vunpack.c.l.s4 1966171168
    %v517 = vunpack.c.0.s8 %v516
    %v518 = vlaneseq
    %v519 = vshrl.u32 %v518, 7
    %v520 = vsub.s32 %v517, %v519
    %v521 = vrot.slane %v505, %v520
    %v523 = vunpack.c.l.s4 1966171168
    %v524 = vunpack.c.0.s8 %v523
    %v525 = vlaneseq
    %v526 = vshrl.u32 %v525, 7
    %v527 = vsub.s32 %v524, %v526
    %v528 = vrot.slane %v506, %v527
    %v530 = vunpack.c.l.s4 1966171168
    %v531 = vunpack.c.0.s8 %v530
    %v532 = vlaneseq
    %v533 = vshrl.u32 %v532, 7
    %v534 = vsub.s32 %v531, %v533
    %v535 = vrot.slane %v507, %v534
    %v536 = vcombine.high %v514, %v514
    %v537 = vcombine.high %v521, %v521
    %v538 = vcombine.high %v528, %v528
    %v539 = vcombine.high %v535, %v535
    %v540 = vcombine.high %v42, %v42
    %v542 = vunpack.c.l.s4 1966171168
    %v543 = vunpack.c.0.s8 %v542
    %v544 = vlaneseq
    %v545 = vshrl.u32 %v544, 7
    %v546 = vsub.s32 %v543, %v545
    %v547 = vrot.slane %v42, %v546
    %v549 = vunpack.c.l.s4 1966171168
    %v550 = vunpack.c.0.s8 %v549
    %v551 = vlaneseq
    %v552 = vshrl.u32 %v551, 7
    %v553 = vsub.s32 %v550, %v552
    %v554 = vrot.slane %v540, %v553
    %v555 = vcombine.high %v547, %v547
    %v556 = vcombine.high %v554, %v554
    %v558 = vunpack.c.l.s4 1966171168
    %v559 = vunpack.c.0.s8 %v558
    %v560 = vlaneseq
    %v561 = vshrl.u32 %v560, 7
    %v562 = vsub.s32 %v559, %v561
    %v563 = vrot.slane %v547, %v562
    %v565 = vunpack.c.l.s4 1966171168
    %v566 = vunpack.c.0.s8 %v565
    %v567 = vlaneseq
    %v568 = vshrl.u32 %v567, 7
    %v569 = vsub.s32 %v566, %v568
    %v570 = vrot.slane %v554, %v569
    %v572 = vunpack.c.l.s4 1966171168
    %v573 = vunpack.c.0.s8 %v572
    %v574 = vlaneseq
    %v575 = vshrl.u32 %v574, 7
    %v576 = vsub.s32 %v573, %v575
    %v577 = vrot.slane %v555, %v576
    %v579 = vunpack.c.l.s4 1966171168
    %v580 = vunpack.c.0.s8 %v579
    %v581 = vlaneseq
    %v582 = vshrl.u32 %v581, 7
    %v583 = vsub.s32 %v580, %v582
    %v584 = vrot.slane %v556, %v583
    %v585 = vcombine.high %v563, %v563
    %v586 = vcombine.high %v570, %v570
    %v587 = vcombine.high %v577, %v577
    %v588 = vcombine.high %v584, %v584
    %v997 = vunpack.c.l.b16 %v43
    %v998 = vunpack.c.h.b16 %v43
    %v999 = vunpack.c.l.b16 %v44
    %v1000 = vunpack.c.h.b16 %v44
    %v1001 = vunpack.c.l.b16 %v45
    %v1002 = vunpack.c.h.b16 %v45
    %v1003 = vunpack.c.l.b16 %v46
    %v1004 = vunpack.c.h.b16 %v46
    %v1005 = vunpack.c.l.b16 %v47
    %v1006 = vunpack.c.h.b16 %v47
    %v1007 = vunpack.c.l.b16 %v48
    %v1008 = vunpack.c.h.b16 %v48
    %v1009 = vunpack.c.l.b16 %v49
    %v1010 = vunpack.c.h.b16 %v49
    %v1011 = vunpack.c.l.b16 %v50
    %v1012 = vunpack.c.h.b16 %v50
    %v1013 = vunpack.c.l.b16 %v51
    %v1014 = vunpack.c.h.b16 %v51
    %v1015 = vunpack.c.l.b16 %v52
    %v1016 = vunpack.c.h.b16 %v52
    %v1017 = vunpack.c.l.b16 %v53
    %v1018 = vunpack.c.h.b16 %v53
    %v1019 = vunpack.c.l.b16 %v54
    %v1020 = vunpack.c.h.b16 %v54
    %v1021 = vunpack.c.l.b16 %v55
    %v1022 = vunpack.c.h.b16 %v55
    %v1023 = vunpack.c.l.b16 %v56
    %v1024 = vunpack.c.h.b16 %v56
    %v1025 = vunpack.c.l.b16 %v57
    %v1026 = vunpack.c.h.b16 %v57
    %v1027 = vunpack.c.l.b16 %v58
    %v1028 = vunpack.c.h.b16 %v58
    %v1029 = vunpack.c.l.b16 %v59
    %v1030 = vunpack.c.h.b16 %v59
    %v1031 = vunpack.c.l.b16 %v60
    %v1032 = vunpack.c.h.b16 %v60
    %v1033 = vunpack.c.l.b16 %v61
    %v1034 = vunpack.c.h.b16 %v61
    %v1035 = vunpack.c.l.b16 %v62
    %v1036 = vunpack.c.h.b16 %v62
    %v1037 = vunpack.c.l.b16 %v63
    %v1038 = vunpack.c.h.b16 %v63
    %v1039 = vunpack.c.l.b16 %v64
    %v1040 = vunpack.c.h.b16 %v64
    %v1041 = vunpack.c.l.b16 %v65
    %v1042 = vunpack.c.h.b16 %v65
    %v1043 = vunpack.c.l.b16 %v66
    %v1044 = vunpack.c.h.b16 %v66
    %v1045 = vunpack.c.l.b16 %v67
    %v1046 = vunpack.c.h.b16 %v67
    %v1047 = vunpack.c.l.b16 %v68
    %v1048 = vunpack.c.h.b16 %v68
    %v1049 = vunpack.c.l.b16 %v69
    %v1050 = vunpack.c.h.b16 %v69
    %v1051 = vunpack.c.l.b16 %v70
    %v1052 = vunpack.c.h.b16 %v70
    %v1053 = vunpack.c.l.b16 %v71
    %v1054 = vunpack.c.h.b16 %v71
    %v1055 = vunpack.c.l.b16 %v72
    %v1056 = vunpack.c.h.b16 %v72
    %v1057 = vunpack.c.l.b16 %v73
    %v1058 = vunpack.c.h.b16 %v73
    %v1059 = vunpack.c.l.b16 %v74
    %v1060 = vunpack.c.h.b16 %v74
    %v1061 = vunpack.c.l.b16 %v75
    %v1062 = vunpack.c.h.b16 %v75
    %v1063 = vunpack.c.l.b16 %v76
    %v1064 = vunpack.c.h.b16 %v76
    %v1065 = vunpack.c.l.b16 %v77
    %v1066 = vunpack.c.h.b16 %v77
    %v1067 = vunpack.c.l.b16 %v78
    %v1068 = vunpack.c.h.b16 %v78
    %v1069 = vunpack.c.l.b16 %v79
    %v1070 = vunpack.c.h.b16 %v79
    %v1071 = vunpack.c.l.b16 %v80
    %v1072 = vunpack.c.h.b16 %v80
    %v1073 = vunpack.c.l.b16 %v81
    %v1074 = vunpack.c.h.b16 %v81
    %v1075 = vunpack.c.l.b16 %v82
    %v1076 = vunpack.c.h.b16 %v82
    %v1077 = vunpack.c.l.b16 %v83
    %v1078 = vunpack.c.h.b16 %v83
    %v1079 = vunpack.c.l.b16 %v84
    %v1080 = vunpack.c.h.b16 %v84
    %v1081 = vunpack.c.l.b16 %v85
    %v1082 = vunpack.c.h.b16 %v85
    %v1083 = vunpack.c.l.b16 %v86
    %v1084 = vunpack.c.h.b16 %v86
    %v1085 = vunpack.c.l.b16 %v87
    %v1086 = vunpack.c.h.b16 %v87
    %v1087 = vunpack.c.l.b16 %v88
    %v1088 = vunpack.c.h.b16 %v88
    %v1089 = vunpack.c.l.b16 %v89
    %v1090 = vunpack.c.h.b16 %v89
    %v1091 = vunpack.c.l.b16 %v90
    %v1092 = vunpack.c.h.b16 %v90
    %v1093 = vunpack.c.l.b16 %v91
    %v1094 = vunpack.c.h.b16 %v91
    %v1095 = vunpack.c.l.b16 %v92
    %v1096 = vunpack.c.h.b16 %v92
    %v1097 = vunpack.c.l.b16 %v93
    %v1098 = vunpack.c.h.b16 %v93
    %v1099 = vunpack.c.l.b16 %v94
    %v1100 = vunpack.c.h.b16 %v94
    %v1101 = vunpack.c.l.b16 %v95
    %v1102 = vunpack.c.h.b16 %v95
    %v1103 = vunpack.c.l.b16 %v96
    %v1104 = vunpack.c.h.b16 %v96
    %v1105 = vunpack.c.l.b16 %v97
    %v1106 = vunpack.c.h.b16 %v97
    %v1107 = vunpack.c.l.b16 %v98
    %v1108 = vunpack.c.h.b16 %v98
    %v1109 = vunpack.c.l.b16 %v99
    %v1110 = vunpack.c.h.b16 %v99
    %v1111 = vunpack.c.l.b16 %v100
    %v1112 = vunpack.c.h.b16 %v100
    %v1113 = vunpack.c.l.b16 %v101
    %v1114 = vunpack.c.h.b16 %v101
    %v1115 = vunpack.c.l.b16 %v102
    %v1116 = vunpack.c.h.b16 %v102
    %v1117 = vunpack.c.l.b16 %v103
    %v1118 = vunpack.c.h.b16 %v103
    %v1119 = vunpack.c.l.b16 %v104
    %v1120 = vunpack.c.h.b16 %v104
    %v1121 = vunpack.c.l.b16 %v105
    %v1122 = vunpack.c.h.b16 %v105
    %v1123 = vunpack.c.l.b16 %v106
    %v1124 = vunpack.c.h.b16 %v106
    %v1125 = vunpack.c.l.b16 %v107
    %v1126 = vunpack.c.h.b16 %v107
    %v1127 = vunpack.c.l.b16 %v108
    %v1128 = vunpack.c.h.b16 %v108
    %v1129 = vunpack.c.l.b16 %v109
    %v1130 = vunpack.c.h.b16 %v109
    %v1131 = vunpack.c.l.b16 %v110
    %v1132 = vunpack.c.h.b16 %v110
    %v1133 = vunpack.c.l.b16 %v111
    %v1134 = vunpack.c.h.b16 %v111
    %v1135 = vunpack.c.l.b16 %v112
    %v1136 = vunpack.c.h.b16 %v112
    %v1137 = vunpack.c.l.b16 %v113
    %v1138 = vunpack.c.h.b16 %v113
    %v1139 = vunpack.c.l.b16 %v114
    %v1140 = vunpack.c.h.b16 %v114
    %v1141 = vunpack.c.l.b16 %v115
    %v1142 = vunpack.c.h.b16 %v115
    %v1143 = vunpack.c.l.b16 %v116
    %v1144 = vunpack.c.h.b16 %v116
    %v1145 = vunpack.c.l.b16 %v117
    %v1146 = vunpack.c.h.b16 %v117
    %v1147 = vunpack.c.l.b16 %v118
    %v1148 = vunpack.c.h.b16 %v118
    %v1149 = vunpack.c.l.b16 %v119
    %v1150 = vunpack.c.h.b16 %v119
    %v1151 = vunpack.c.l.b16 %v120
    %v1152 = vunpack.c.h.b16 %v120
    %v1153 = vunpack.c.l.b16 %v121
    %v1154 = vunpack.c.h.b16 %v121
    %v1155 = vunpack.c.l.b16 %v122
    %v1156 = vunpack.c.h.b16 %v122
    %v1157 = vunpack.c.l.b16 %v123
    %v1158 = vunpack.c.h.b16 %v123
    %v1159 = vunpack.c.l.b16 %v124
    %v1160 = vunpack.c.h.b16 %v124
    %v1161 = vunpack.c.l.b16 %v125
    %v1162 = vunpack.c.h.b16 %v125
    %v1163 = vunpack.c.l.b16 %v126
    %v1164 = vunpack.c.h.b16 %v126
    %v1165 = vunpack.c.l.b16 %v127
    %v1166 = vunpack.c.h.b16 %v127
    %v1167 = vunpack.c.l.b16 %v128
    %v1168 = vunpack.c.h.b16 %v128
    %v1169 = vunpack.c.l.b16 %v129
    %v1170 = vunpack.c.h.b16 %v129
    %v1171 = vunpack.c.l.b16 %v130
    %v1172 = vunpack.c.h.b16 %v130
    %v1173 = vunpack.c.l.b16 %v131
    %v1174 = vunpack.c.h.b16 %v131
    %v1175 = vunpack.c.l.b16 %v132
    %v1176 = vunpack.c.h.b16 %v132
    %v1177 = vunpack.c.l.b16 %v133
    %v1178 = vunpack.c.h.b16 %v133
    %v1179 = vunpack.c.l.b16 %v134
    %v1180 = vunpack.c.h.b16 %v134
    %v1181 = vunpack.c.l.b16 %v135
    %v1182 = vunpack.c.h.b16 %v135
    %v1183 = vunpack.c.l.b16 %v136
    %v1184 = vunpack.c.h.b16 %v136
    %v1185 = vunpack.c.l.b16 %v137
    %v1186 = vunpack.c.h.b16 %v137
    %v1187 = vunpack.c.l.b16 %v138
    %v1188 = vunpack.c.h.b16 %v138
    %v1189 = vunpack.c.l.b16 %v139
    %v1190 = vunpack.c.h.b16 %v139
    %v1191 = vunpack.c.l.b16 %v140
    %v1192 = vunpack.c.h.b16 %v140
    %v1193 = vunpack.c.l.b16 %v141
    %v1194 = vunpack.c.h.b16 %v141
    %v1195 = vunpack.c.l.b16 %v142
    %v1196 = vunpack.c.h.b16 %v142
    %v1197 = vunpack.c.l.b16 %v143
    %v1198 = vunpack.c.h.b16 %v143
    %v1199 = vunpack.c.l.b16 %v144
    %v1200 = vunpack.c.h.b16 %v144
    %v1201 = vunpack.c.l.b16 %v145
    %v1202 = vunpack.c.h.b16 %v145
    %v1203 = vunpack.c.l.b16 %v146
    %v1204 = vunpack.c.h.b16 %v146
    %v1205 = vunpack.c.l.b16 %v147
    %v1206 = vunpack.c.h.b16 %v147
    %v1207 = vunpack.c.l.b16 %v148
    %v1208 = vunpack.c.h.b16 %v148
    %v1209 = vunpack.c.l.b16 %v149
    %v1210 = vunpack.c.h.b16 %v149
    %v1211 = vunpack.c.l.b16 %v150
    %v1212 = vunpack.c.h.b16 %v150
    %v1213 = vunpack.c.l.b16 %v151
    %v1214 = vunpack.c.h.b16 %v151
    %v1215 = vunpack.c.l.b16 %v152
    %v1216 = vunpack.c.h.b16 %v152
    %v1217 = vunpack.c.l.b16 %v153
    %v1218 = vunpack.c.h.b16 %v153
    %v1219 = vunpack.c.l.b16 %v154
    %v1220 = vunpack.c.h.b16 %v154
    %v1221 = vunpack.c.l.b16 %v155
    %v1222 = vunpack.c.h.b16 %v155
    %v1223 = vunpack.c.l.b16 %v156
    %v1224 = vunpack.c.h.b16 %v156
    %v1225 = vunpack.c.l.b16 %v157
    %v1226 = vunpack.c.h.b16 %v157
    %v1227 = vunpack.c.l.b16 %v158
    %v1228 = vunpack.c.h.b16 %v158
    %v1229 = vunpack.c.l.b16 %v159
    %v1230 = vunpack.c.h.b16 %v159
    %v1231 = vunpack.c.l.b16 %v160
    %v1232 = vunpack.c.h.b16 %v160
    %v1233 = vunpack.c.l.b16 %v161
    %v1234 = vunpack.c.h.b16 %v161
    %v1235 = vunpack.c.l.b16 %v162
    %v1236 = vunpack.c.h.b16 %v162
    %v1237 = vunpack.c.l.b16 %v163
    %v1238 = vunpack.c.h.b16 %v163
    %v1239 = vunpack.c.l.b16 %v164
    %v1240 = vunpack.c.h.b16 %v164
    %v1241 = vunpack.c.l.b16 %v165
    %v1242 = vunpack.c.h.b16 %v165
    %v1243 = vunpack.c.l.b16 %v166
    %v1244 = vunpack.c.h.b16 %v166
    %v1245 = vunpack.c.l.b16 %v167
    %v1246 = vunpack.c.h.b16 %v167
    %v1247 = vunpack.c.l.b16 %v168
    %v1248 = vunpack.c.h.b16 %v168
    %v1249 = vunpack.c.l.b16 %v169
    %v1250 = vunpack.c.h.b16 %v169
    %v1251 = vunpack.c.l.b16 %v170
    %v1252 = vunpack.c.h.b16 %v170
    %v1253 = vunpack.c.l.b16 %v171
    %v1254 = vunpack.c.h.b16 %v171
    %v1255 = vunpack.c.l.b16 %v172
    %v1256 = vunpack.c.h.b16 %v172
    %v1257 = vunpack.c.l.b16 %v173
    %v1258 = vunpack.c.h.b16 %v173
    %v1259 = vunpack.c.l.b16 %v174
    %v1260 = vunpack.c.h.b16 %v174
    %v1261 = vunpack.c.l.b16 %v175
    %v1262 = vunpack.c.h.b16 %v175
    %v1263 = vunpack.c.l.b16 %v176
    %v1264 = vunpack.c.h.b16 %v176
    %v1265 = vunpack.c.l.b16 %v177
    %v1266 = vunpack.c.h.b16 %v177
    %v1267 = vunpack.c.l.b16 %v178
    %v1268 = vunpack.c.h.b16 %v178
    %v1269 = vunpack.c.l.b16 %v179
    %v1270 = vunpack.c.h.b16 %v179
    %v1271 = vunpack.c.l.b16 %v180
    %v1272 = vunpack.c.h.b16 %v180
    %v1273 = vunpack.c.l.b16 %v181
    %v1274 = vunpack.c.h.b16 %v181
    %v1275 = vunpack.c.l.b16 %v182
    %v1276 = vunpack.c.h.b16 %v182
    %v1277 = vunpack.c.l.b16 %v183
    %v1278 = vunpack.c.h.b16 %v183
    %v1279 = vunpack.c.l.b16 %v184
    %v1280 = vunpack.c.h.b16 %v184
    %v1281 = vunpack.c.l.b16 %v185
    %v1282 = vunpack.c.h.b16 %v185
    %v1283 = vunpack.c.l.b16 %v186
    %v1284 = vunpack.c.h.b16 %v186
    %v1285 = vunpack.c.l.b16 %v187
    %v1286 = vunpack.c.h.b16 %v187
    %v1287 = vunpack.c.l.b16 %v188
    %v1288 = vunpack.c.h.b16 %v188
    %v1289 = vunpack.c.l.b16 %v189
    %v1290 = vunpack.c.h.b16 %v189
    %v1291 = vunpack.c.l.b16 %v190
    %v1292 = vunpack.c.h.b16 %v190
    %v1293 = vunpack.c.l.b16 %v191
    %v1294 = vunpack.c.h.b16 %v191
    %v1295 = vunpack.c.l.b16 %v192
    %v1296 = vunpack.c.h.b16 %v192
    %v1297 = vunpack.c.l.b16 %v193
    %v1298 = vunpack.c.h.b16 %v193
    %v1299 = vunpack.c.l.b16 %v194
    %v1300 = vunpack.c.h.b16 %v194
    %v1301 = vunpack.c.l.b16 %v195
    %v1302 = vunpack.c.h.b16 %v195
    %v1303 = vunpack.c.l.b16 %v196
    %v1304 = vunpack.c.h.b16 %v196
    %v1305 = vunpack.c.l.b16 %v197
    %v1306 = vunpack.c.h.b16 %v197
    %v1307 = vunpack.c.l.b16 %v198
    %v1308 = vunpack.c.h.b16 %v198
    %v1309 = vunpack.c.l.b16 %v199
    %v1310 = vunpack.c.h.b16 %v199
    %v1311 = vunpack.c.l.b16 %v200
    %v1312 = vunpack.c.h.b16 %v200
    %v1313 = vunpack.c.l.b16 %v201
    %v1314 = vunpack.c.h.b16 %v201
    %v1315 = vunpack.c.l.b16 %v202
    %v1316 = vunpack.c.h.b16 %v202
    %v1317 = vunpack.c.l.b16 %v203
    %v1318 = vunpack.c.h.b16 %v203
    %v1319 = vunpack.c.l.b16 %v204
    %v1320 = vunpack.c.h.b16 %v204
    %v1321 = vunpack.c.l.b16 %v205
    %v1322 = vunpack.c.h.b16 %v205
    %v1323 = vunpack.c.l.b16 %v206
    %v1324 = vunpack.c.h.b16 %v206
    %v1325 = vunpack.c.l.b16 %v207
    %v1326 = vunpack.c.h.b16 %v207
    %v1327 = vunpack.c.l.b16 %v208
    %v1328 = vunpack.c.h.b16 %v208
    %v1329 = vunpack.c.l.b16 %v209
    %v1330 = vunpack.c.h.b16 %v209
    %v1331 = vunpack.c.l.b16 %v210
    %v1332 = vunpack.c.h.b16 %v210
    %v1333 = vunpack.c.l.b16 %v211
    %v1334 = vunpack.c.h.b16 %v211
    %v1335 = vunpack.c.l.b16 %v212
    %v1336 = vunpack.c.h.b16 %v212
    %v1337 = vunpack.c.l.b16 %v213
    %v1338 = vunpack.c.h.b16 %v213
    %v1339 = vunpack.c.l.b16 %v214
    %v1340 = vunpack.c.h.b16 %v214
    %v1341 = vunpack.c.l.b16 %v215
    %v1342 = vunpack.c.h.b16 %v215
    %v1343 = vunpack.c.l.b16 %v216
    %v1344 = vunpack.c.h.b16 %v216
    %v1345 = vunpack.c.l.b16 %v217
    %v1346 = vunpack.c.h.b16 %v217
    %v1347 = vunpack.c.l.b16 %v218
    %v1348 = vunpack.c.h.b16 %v218
    %v1349 = vunpack.c.l.b16 %v219
    %v1350 = vunpack.c.h.b16 %v219
    %v1351 = vunpack.c.l.b16 %v220
    %v1352 = vunpack.c.h.b16 %v220
    %v1353 = vunpack.c.l.b16 %v221
    %v1354 = vunpack.c.h.b16 %v221
    %v1355 = vunpack.c.l.b16 %v222
    %v1356 = vunpack.c.h.b16 %v222
    %v1357 = vunpack.c.l.b16 %v223
    %v1358 = vunpack.c.h.b16 %v223
    %v1359 = vunpack.c.l.b16 %v224
    %v1360 = vunpack.c.h.b16 %v224
    %v1361 = vunpack.c.l.b16 %v225
    %v1362 = vunpack.c.h.b16 %v225
    %v1363 = vunpack.c.l.b16 %v226
    %v1364 = vunpack.c.h.b16 %v226
    %v1365 = vunpack.c.l.b16 %v227
    %v1366 = vunpack.c.h.b16 %v227
    %v1367 = vunpack.c.l.b16 %v228
    %v1368 = vunpack.c.h.b16 %v228
    %v1369 = vunpack.c.l.b16 %v229
    %v1370 = vunpack.c.h.b16 %v229
    %v1371 = vunpack.c.l.b16 %v230
    %v1372 = vunpack.c.h.b16 %v230
    %v1373 = vunpack.c.l.b16 %v231
    %v1374 = vunpack.c.h.b16 %v231
    %v1375 = vunpack.c.l.b16 %v232
    %v1376 = vunpack.c.h.b16 %v232
    %v1377 = vunpack.c.l.b16 %v233
    %v1378 = vunpack.c.h.b16 %v233
    %v1379 = vunpack.c.l.b16 %v234
    %v1380 = vunpack.c.h.b16 %v234
    %v1381 = vunpack.c.l.b16 %v235
    %v1382 = vunpack.c.h.b16 %v235
    %v1383 = vunpack.c.l.b16 %v236
    %v1384 = vunpack.c.h.b16 %v236
    %v1385 = vunpack.c.l.b16 %v237
    %v1386 = vunpack.c.h.b16 %v237
    %v1387 = vunpack.c.l.b16 %v238
    %v1388 = vunpack.c.h.b16 %v238
    %v1389 = vunpack.c.l.b16 %v239
    %v1390 = vunpack.c.h.b16 %v239
    %v1391 = vunpack.c.l.b16 %v240
    %v1392 = vunpack.c.h.b16 %v240
    %v1393 = vunpack.c.l.b16 %v241
    %v1394 = vunpack.c.h.b16 %v241
    %v1395 = vunpack.c.l.b16 %v242
    %v1396 = vunpack.c.h.b16 %v242
    %v1397 = vunpack.c.l.b16 %v243
    %v1398 = vunpack.c.h.b16 %v243
    %v1399 = vunpack.c.l.b16 %v244
    %v1400 = vunpack.c.h.b16 %v244
    %v1401 = vunpack.c.l.b16 %v245
    %v1402 = vunpack.c.h.b16 %v245
    %v1403 = vunpack.c.l.b16 %v246
    %v1404 = vunpack.c.h.b16 %v246
    %v1405 = vunpack.c.l.b16 %v247
    %v1406 = vunpack.c.h.b16 %v247
    %v1407 = vunpack.c.l.b16 %v248
    %v1408 = vunpack.c.h.b16 %v248
    %v1409 = vunpack.c.l.b16 %v249
    %v1410 = vunpack.c.h.b16 %v249
    %v1411 = vunpack.c.l.b16 %v250
    %v1412 = vunpack.c.h.b16 %v250
    %v1413 = vunpack.c.l.b16 %v251
    %v1414 = vunpack.c.h.b16 %v251
    %v1415 = vunpack.c.l.b16 %v252
    %v1416 = vunpack.c.h.b16 %v252
    %v1417 = vunpack.c.l.b16 %v253
    %v1418 = vunpack.c.h.b16 %v253
    %v1419 = vunpack.c.l.b16 %v254
    %v1420 = vunpack.c.h.b16 %v254
    %v1421 = vunpack.c.l.b16 %v255
    %v1422 = vunpack.c.h.b16 %v255
    %v1423 = vunpack.c.l.b16 %v256
    %v1424 = vunpack.c.h.b16 %v256
    %v1425 = vunpack.c.l.b16 %v257
    %v1426 = vunpack.c.h.b16 %v257
    %v1427 = vunpack.c.l.b16 %v258
    %v1428 = vunpack.c.h.b16 %v258
    %v1429 = vunpack.c.l.b16 %v259
    %v1430 = vunpack.c.h.b16 %v259
    %v1431 = vunpack.c.l.b16 %v260
    %v1432 = vunpack.c.h.b16 %v260
    %v1433 = vunpack.c.l.b16 %v261
    %v1434 = vunpack.c.h.b16 %v261
    %v1435 = vunpack.c.l.b16 %v262
    %v1436 = vunpack.c.h.b16 %v262
    %v1437 = vunpack.c.l.b16 %v263
    %v1438 = vunpack.c.h.b16 %v263
    %v1439 = vunpack.c.l.b16 %v264
    %v1440 = vunpack.c.h.b16 %v264
    %v1441 = vunpack.c.l.b16 %v265
    %v1442 = vunpack.c.h.b16 %v265
    %v1443 = vunpack.c.l.b16 %v266
    %v1444 = vunpack.c.h.b16 %v266
    %v1445 = vunpack.c.l.b16 %v267
    %v1446 = vunpack.c.h.b16 %v267
    %v1447 = vunpack.c.l.b16 %v268
    %v1448 = vunpack.c.h.b16 %v268
    %v1449 = vunpack.c.l.b16 %v269
    %v1450 = vunpack.c.h.b16 %v269
    %v1451 = vunpack.c.l.b16 %v270
    %v1452 = vunpack.c.h.b16 %v270
    %v1453 = vunpack.c.l.b16 %v271
    %v1454 = vunpack.c.h.b16 %v271
    %v1455 = vunpack.c.l.b16 %v272
    %v1456 = vunpack.c.h.b16 %v272
    %v1457 = vunpack.c.l.b16 %v273
    %v1458 = vunpack.c.h.b16 %v273
    %v1459 = vunpack.c.l.b16 %v274
    %v1460 = vunpack.c.h.b16 %v274
    %v1461 = vunpack.c.l.b16 %v275
    %v1462 = vunpack.c.h.b16 %v275
    %v1463 = vunpack.c.l.b16 %v276
    %v1464 = vunpack.c.h.b16 %v276
    %v1465 = vunpack.c.l.b16 %v277
    %v1466 = vunpack.c.h.b16 %v277
    %v1467 = vunpack.c.l.b16 %v278
    %v1468 = vunpack.c.h.b16 %v278
    %v1469 = vunpack.c.l.b16 %v279
    %v1470 = vunpack.c.h.b16 %v279
    %v1471 = vunpack.c.l.b16 %v280
    %v1472 = vunpack.c.h.b16 %v280
    %v1473 = vunpack.c.l.b16 %v281
    %v1474 = vunpack.c.h.b16 %v281
    %v1475 = vunpack.c.l.b16 %v282
    %v1476 = vunpack.c.h.b16 %v282
    %v1477 = vunpack.c.l.b16 %v283
    %v1478 = vunpack.c.h.b16 %v283
    %v1479 = vunpack.c.l.b16 %v284
    %v1480 = vunpack.c.h.b16 %v284
    %v1481 = vunpack.c.l.b16 %v285
    %v1482 = vunpack.c.h.b16 %v285
    %v1483 = vunpack.c.l.b16 %v286
    %v1484 = vunpack.c.h.b16 %v286
    %v1485 = vunpack.c.l.b16 %v287
    %v1486 = vunpack.c.h.b16 %v287
    %v1487 = vunpack.c.l.b16 %v288
    %v1488 = vunpack.c.h.b16 %v288
    %v1489 = vunpack.c.l.b16 %v289
    %v1490 = vunpack.c.h.b16 %v289
    %v1491 = vunpack.c.l.b16 %v290
    %v1492 = vunpack.c.h.b16 %v290
    %v1493 = vunpack.c.l.b16 %v291
    %v1494 = vunpack.c.h.b16 %v291
    %v1495 = vunpack.c.l.b16 %v292
    %v1496 = vunpack.c.h.b16 %v292
    %v1497 = vunpack.c.l.b16 %v293
    %v1498 = vunpack.c.h.b16 %v293
    %v1499 = vunpack.c.l.b16 %v294
    %v1500 = vunpack.c.h.b16 %v294
    %v1501 = vunpack.c.l.b16 %v295
    %v1502 = vunpack.c.h.b16 %v295
    %v1503 = vunpack.c.l.b16 %v296
    %v1504 = vunpack.c.h.b16 %v296
    %v1505 = vunpack.c.l.b16 %v297
    %v1506 = vunpack.c.h.b16 %v297
    %v1507 = vunpack.c.l.b16 %v298
    %v1508 = vunpack.c.h.b16 %v298
    %v1509 = vunpack.c.l.b16 %v299
    %v1510 = vunpack.c.h.b16 %v299
    %v1511 = vunpack.c.l.b16 %v300
    %v1512 = vunpack.c.h.b16 %v300
    %v1513 = vunpack.c.l.b16 %v301
    %v1514 = vunpack.c.h.b16 %v301
    %v1515 = vunpack.c.l.b16 %v302
    %v1516 = vunpack.c.h.b16 %v302
    %v1517 = vunpack.c.l.b16 %v303
    %v1518 = vunpack.c.h.b16 %v303
    %v1519 = vunpack.c.l.b16 %v304
    %v1520 = vunpack.c.h.b16 %v304
    %v1521 = vunpack.c.l.b16 %v305
    %v1522 = vunpack.c.h.b16 %v305
    %v1523 = vunpack.c.l.b16 %v306
    %v1524 = vunpack.c.h.b16 %v306
    %v1525 = vunpack.c.l.b16 %v307
    %v1526 = vunpack.c.h.b16 %v307
    %v1527 = vunpack.c.l.b16 %v308
    %v1528 = vunpack.c.h.b16 %v308
    %v1529 = vunpack.c.l.b16 %v309
    %v1530 = vunpack.c.h.b16 %v309
    %v1531 = vunpack.c.l.b16 %v310
    %v1532 = vunpack.c.h.b16 %v310
    %v1533 = vunpack.c.l.b16 %v311
    %v1534 = vunpack.c.h.b16 %v311
    %v1535 = vunpack.c.l.b16 %v312
    %v1536 = vunpack.c.h.b16 %v312
    %v1537 = vunpack.c.l.b16 %v313
    %v1538 = vunpack.c.h.b16 %v313
    %v1539 = vunpack.c.l.b16 %v314
    %v1540 = vunpack.c.h.b16 %v314
    %v1541 = vunpack.c.l.b16 %v315
    %v1542 = vunpack.c.h.b16 %v315
    %v1543 = vunpack.c.l.b16 %v316
    %v1544 = vunpack.c.h.b16 %v316
    %v1545 = vunpack.c.l.b16 %v317
    %v1546 = vunpack.c.h.b16 %v317
    %v1547 = vunpack.c.l.b16 %v318
    %v1548 = vunpack.c.h.b16 %v318
    %v1549 = vunpack.c.l.b16 %v319
    %v1550 = vunpack.c.h.b16 %v319
    %v1551 = vunpack.c.l.b16 %v320
    %v1552 = vunpack.c.h.b16 %v320
    %v1553 = vunpack.c.l.b16 %v321
    %v1554 = vunpack.c.h.b16 %v321
    %v1555 = vunpack.c.l.b16 %v322
    %v1556 = vunpack.c.h.b16 %v322
    %v1557 = vunpack.c.l.b16 %v323
    %v1558 = vunpack.c.h.b16 %v323
    %v1559 = vunpack.c.l.b16 %v324
    %v1560 = vunpack.c.h.b16 %v324
    %v1561 = vunpack.c.l.b16 %v325
    %v1562 = vunpack.c.h.b16 %v325
    %v1563 = vunpack.c.l.b16 %v326
    %v1564 = vunpack.c.h.b16 %v326
    %v1565 = vunpack.c.l.b16 %v327
    %v1566 = vunpack.c.h.b16 %v327
    %v1567 = vunpack.c.l.b16 %v328
    %v1568 = vunpack.c.h.b16 %v328
    %v1569 = vunpack.c.l.b16 %v329
    %v1570 = vunpack.c.h.b16 %v329
    %v1571 = vunpack.c.l.b16 %v330
    %v1572 = vunpack.c.h.b16 %v330
    %v1573 = vunpack.c.l.b16 %v331
    %v1574 = vunpack.c.h.b16 %v331
    %v1575 = vunpack.c.l.b16 %v332
    %v1576 = vunpack.c.h.b16 %v332
    %v1577 = vunpack.c.l.b16 %v333
    %v1578 = vunpack.c.h.b16 %v333
    %v1579 = vunpack.c.l.b16 %v334
    %v1580 = vunpack.c.h.b16 %v334
    %v1581 = vunpack.c.l.b16 %v335
    %v1582 = vunpack.c.h.b16 %v335
    %v1583 = vunpack.c.l.b16 %v336
    %v1584 = vunpack.c.h.b16 %v336
    %v1585 = vunpack.c.l.b16 %v337
    %v1586 = vunpack.c.h.b16 %v337
    %v1587 = vunpack.c.l.b16 %v338
    %v1588 = vunpack.c.h.b16 %v338
    %v1589 = vunpack.c.l.b16 %v339
    %v1590 = vunpack.c.h.b16 %v339
    %v1591 = vunpack.c.l.b16 %v340
    %v1592 = vunpack.c.h.b16 %v340
    %v1593 = vunpack.c.l.b16 %v341
    %v1594 = vunpack.c.h.b16 %v341
    %v1595 = vunpack.c.l.b16 %v342
    %v1596 = vunpack.c.h.b16 %v342
    %v1597 = vunpack.c.l.b16 %v343
    %v1598 = vunpack.c.h.b16 %v343
    %v1599 = vunpack.c.l.b16 %v344
    %v1600 = vunpack.c.h.b16 %v344
    %v1601 = vunpack.c.l.b16 %v345
    %v1602 = vunpack.c.h.b16 %v345
    %v1603 = vunpack.c.l.b16 %v346
    %v1604 = vunpack.c.h.b16 %v346
    %v1605 = vunpack.c.l.b16 %v347
    %v1606 = vunpack.c.h.b16 %v347
    %v1607 = vunpack.c.l.b16 %v348
    %v1608 = vunpack.c.h.b16 %v348
    %v1609 = vunpack.c.l.b16 %v349
    %v1610 = vunpack.c.h.b16 %v349
    %v1611 = vunpack.c.l.b16 %v350
    %v1612 = vunpack.c.h.b16 %v350
    %v1613 = vunpack.c.l.b16 %v351
    %v1614 = vunpack.c.h.b16 %v351
    %v1615 = vunpack.c.l.b16 %v352
    %v1616 = vunpack.c.h.b16 %v352
    %v1617 = vunpack.c.l.b16 %v353
    %v1618 = vunpack.c.h.b16 %v353
    %v1619 = vunpack.c.l.b16 %v354
    %v1620 = vunpack.c.h.b16 %v354
    %v1621 = vunpack.c.l.b16 %v355
    %v1622 = vunpack.c.h.b16 %v355
    %v1623 = vunpack.c.l.b16 %v356
    %v1624 = vunpack.c.h.b16 %v356
    %v1625 = vunpack.c.l.b16 %v357
    %v1626 = vunpack.c.h.b16 %v357
    %v1627 = vunpack.c.l.b16 %v358
    %v1628 = vunpack.c.h.b16 %v358
    %v1629 = vunpack.c.l.b16 %v359
    %v1630 = vunpack.c.h.b16 %v359
    %v1631 = vunpack.c.l.b16 %v360
    %v1632 = vunpack.c.h.b16 %v360
    %v1633 = vunpack.c.l.b16 %v361
    %v1634 = vunpack.c.h.b16 %v361
    %v1635 = vunpack.c.l.b16 %v362
    %v1636 = vunpack.c.h.b16 %v362
    %v1637 = vunpack.c.l.b16 %v363
    %v1638 = vunpack.c.h.b16 %v363
    %v1639 = vunpack.c.l.b16 %v364
    %v1640 = vunpack.c.h.b16 %v364
    %v1641 = vunpack.c.l.b16 %v365
    %v1642 = vunpack.c.h.b16 %v365
    %v1643 = vunpack.c.l.b16 %v366
    %v1644 = vunpack.c.h.b16 %v366
    %v1645 = vunpack.c.l.b16 %v367
    %v1646 = vunpack.c.h.b16 %v367
    %v1647 = vunpack.c.l.b16 %v368
    %v1648 = vunpack.c.h.b16 %v368
    %v1649 = vunpack.c.l.b16 %v369
    %v1650 = vunpack.c.h.b16 %v369
    %v1651 = vunpack.c.l.b16 %v370
    %v1652 = vunpack.c.h.b16 %v370
    %v1653 = vunpack.c.l.b16 %v371
    %v1654 = vunpack.c.h.b16 %v371
    %v1655 = vunpack.c.l.b16 %v372
    %v1656 = vunpack.c.h.b16 %v372
    %v1657 = vunpack.c.l.b16 %v373
    %v1658 = vunpack.c.h.b16 %v373
    %v1659 = vunpack.c.l.b16 %v374
    %v1660 = vunpack.c.h.b16 %v374
    %v1661 = vunpack.c.l.b16 %v375
    %v1662 = vunpack.c.h.b16 %v375
    %v1663 = vunpack.c.l.b16 %v376
    %v1664 = vunpack.c.h.b16 %v376
    %v1665 = vunpack.c.l.b16 %v377
    %v1666 = vunpack.c.h.b16 %v377
    %v1667 = vunpack.c.l.b16 %v378
    %v1668 = vunpack.c.h.b16 %v378
    %v1669 = vunpack.c.l.b16 %v379
    %v1670 = vunpack.c.h.b16 %v379
    %v1671 = vunpack.c.l.b16 %v380
    %v1672 = vunpack.c.h.b16 %v380
    %v1673 = vunpack.c.l.b16 %v381
    %v1674 = vunpack.c.h.b16 %v381
    %v1675 = vunpack.c.l.b16 %v382
    %v1676 = vunpack.c.h.b16 %v382
    %v1677 = vunpack.c.l.b16 %v383
    %v1678 = vunpack.c.h.b16 %v383
    %v1679 = vunpack.c.l.b16 %v384
    %v1680 = vunpack.c.h.b16 %v384
    %v1681 = vunpack.c.l.b16 %v385
    %v1682 = vunpack.c.h.b16 %v385
    %v1683 = vunpack.c.l.b16 %v386
    %v1684 = vunpack.c.h.b16 %v386
    %v1685 = vunpack.c.l.b16 %v387
    %v1686 = vunpack.c.h.b16 %v387
    %v1687 = vunpack.c.l.b16 %v388
    %v1688 = vunpack.c.h.b16 %v388
    %v1689 = vunpack.c.l.b16 %v389
    %v1690 = vunpack.c.h.b16 %v389
    %v1691 = vunpack.c.l.b16 %v390
    %v1692 = vunpack.c.h.b16 %v390
    %v1693 = vunpack.c.l.b16 %v391
    %v1694 = vunpack.c.h.b16 %v391
    %v1695 = vunpack.c.l.b16 %v392
    %v1696 = vunpack.c.h.b16 %v392
    %v1697 = vunpack.c.l.b16 %v393
    %v1698 = vunpack.c.h.b16 %v393
    %v1699 = vunpack.c.l.b16 %v394
    %v1700 = vunpack.c.h.b16 %v394
    %v1701 = vunpack.c.l.b16 %v395
    %v1702 = vunpack.c.h.b16 %v395
    %v1703 = vunpack.c.l.b16 %v396
    %v1704 = vunpack.c.h.b16 %v396
    %v1705 = vunpack.c.l.b16 %v397
    %v1706 = vunpack.c.h.b16 %v397
    %v1707 = vunpack.c.l.b16 %v398
    %v1708 = vunpack.c.h.b16 %v398
    %v1709 = vunpack.c.l.b16 %v399
    %v1710 = vunpack.c.h.b16 %v399
    %v1711 = vunpack.c.l.b16 %v400
    %v1712 = vunpack.c.h.b16 %v400
    %v1713 = vunpack.c.l.b16 %v401
    %v1714 = vunpack.c.h.b16 %v401
    %v1715 = vunpack.c.l.b16 %v402
    %v1716 = vunpack.c.h.b16 %v402
    %v1717 = vunpack.c.l.b16 %v403
    %v1718 = vunpack.c.h.b16 %v403
    %v1719 = vunpack.c.l.b16 %v404
    %v1720 = vunpack.c.h.b16 %v404
    %v1721 = vunpack.c.l.b16 %v405
    %v1722 = vunpack.c.h.b16 %v405
    %v1723 = vunpack.c.l.b16 %v406
    %v1724 = vunpack.c.h.b16 %v406
    %v1725 = vunpack.c.l.b16 %v407
    %v1726 = vunpack.c.h.b16 %v407
    %v1727 = vunpack.c.l.b16 %v408
    %v1728 = vunpack.c.h.b16 %v408
    %v1729 = vunpack.c.l.b16 %v409
    %v1730 = vunpack.c.h.b16 %v409
    %v1731 = vunpack.c.l.b16 %v410
    %v1732 = vunpack.c.h.b16 %v410
    %v1733 = vunpack.c.l.b16 %v411
    %v1734 = vunpack.c.h.b16 %v411
    %v1735 = vunpack.c.l.b16 %v412
    %v1736 = vunpack.c.h.b16 %v412
    %v1737 = vunpack.c.l.b16 %v413
    %v1738 = vunpack.c.h.b16 %v413
    %v1739 = vunpack.c.l.b16 %v414
    %v1740 = vunpack.c.h.b16 %v414
    %v1741 = vunpack.c.l.b16 %v415
    %v1742 = vunpack.c.h.b16 %v415
    %v1743 = vunpack.c.l.b16 %v416
    %v1744 = vunpack.c.h.b16 %v416
    %v1745 = vunpack.c.l.b16 %v417
    %v1746 = vunpack.c.h.b16 %v417
    %v1747 = vunpack.c.l.b16 %v418
    %v1748 = vunpack.c.h.b16 %v418
    %v1749 = vunpack.c.l.b16 %v419
    %v1750 = vunpack.c.h.b16 %v419
    %v1751 = vunpack.c.l.b16 %v420
    %v1752 = vunpack.c.h.b16 %v420
    %v1753 = vunpack.c.l.b16 %v421
    %v1754 = vunpack.c.h.b16 %v421
    %v1755 = vunpack.c.l.b16 %v422
    %v1756 = vunpack.c.h.b16 %v422
    %v1757 = vunpack.c.l.b16 %v423
    %v1758 = vunpack.c.h.b16 %v423
    %v1759 = vunpack.c.l.b16 %v424
    %v1760 = vunpack.c.h.b16 %v424
    %v1761 = vunpack.c.l.b16 %v425
    %v1762 = vunpack.c.h.b16 %v425
    %v1763 = vunpack.c.l.b16 %v426
    %v1764 = vunpack.c.h.b16 %v426
    %v1765 = vpack.c.b16 %v999, %v997
    %v1766 = vpack.c.b16 %v1000, %v998
    %v1767 = vpack.c.b16 %v1003, %v1001
    %v1768 = vpack.c.b16 %v1004, %v1002
    %v1769 = vpack.c.b16 %v1007, %v1005
    %v1770 = vpack.c.b16 %v1008, %v1006
    %v1771 = vpack.c.b16 %v1011, %v1009
    %v1772 = vpack.c.b16 %v1012, %v1010
    %v1773 = vpack.c.b16 %v1015, %v1013
    %v1774 = vpack.c.b16 %v1016, %v1014
    %v1775 = vpack.c.b16 %v1019, %v1017
    %v1776 = vpack.c.b16 %v1020, %v1018
    %v1777 = vpack.c.b16 %v1023, %v1021
    %v1778 = vpack.c.b16 %v1024, %v1022
    %v1779 = vpack.c.b16 %v1027, %v1025
    %v1780 = vpack.c.b16 %v1028, %v1026
    %v1781 = vpack.c.b16 %v1031, %v1029
    %v1782 = vpack.c.b16 %v1032, %v1030
    %v1783 = vpack.c.b16 %v1035, %v1033
    %v1784 = vpack.c.b16 %v1036, %v1034
    %v1785 = vpack.c.b16 %v1039, %v1037
    %v1786 = vpack.c.b16 %v1040, %v1038
    %v1787 = vpack.c.b16 %v1043, %v1041
    %v1788 = vpack.c.b16 %v1044, %v1042
    %v1789 = vpack.c.b16 %v1047, %v1045
    %v1790 = vpack.c.b16 %v1048, %v1046
    %v1791 = vpack.c.b16 %v1051, %v1049
    %v1792 = vpack.c.b16 %v1052, %v1050
    %v1793 = vpack.c.b16 %v1055, %v1053
    %v1794 = vpack.c.b16 %v1056, %v1054
    %v1795 = vpack.c.b16 %v1059, %v1057
    %v1796 = vpack.c.b16 %v1060, %v1058
    %v1797 = vpack.c.b16 %v1063, %v1061
    %v1798 = vpack.c.b16 %v1064, %v1062
    %v1799 = vpack.c.b16 %v1067, %v1065
    %v1800 = vpack.c.b16 %v1068, %v1066
    %v1801 = vpack.c.b16 %v1071, %v1069
    %v1802 = vpack.c.b16 %v1072, %v1070
    %v1803 = vpack.c.b16 %v1075, %v1073
    %v1804 = vpack.c.b16 %v1076, %v1074
    %v1805 = vpack.c.b16 %v1079, %v1077
    %v1806 = vpack.c.b16 %v1080, %v1078
    %v1807 = vpack.c.b16 %v1083, %v1081
    %v1808 = vpack.c.b16 %v1084, %v1082
    %v1809 = vpack.c.b16 %v1087, %v1085
    %v1810 = vpack.c.b16 %v1088, %v1086
    %v1811 = vpack.c.b16 %v1091, %v1089
    %v1812 = vpack.c.b16 %v1092, %v1090
    %v1813 = vpack.c.b16 %v1095, %v1093
    %v1814 = vpack.c.b16 %v1096, %v1094
    %v1815 = vpack.c.b16 %v1099, %v1097
    %v1816 = vpack.c.b16 %v1100, %v1098
    %v1817 = vpack.c.b16 %v1103, %v1101
    %v1818 = vpack.c.b16 %v1104, %v1102
    %v1819 = vpack.c.b16 %v1107, %v1105
    %v1820 = vpack.c.b16 %v1108, %v1106
    %v1821 = vpack.c.b16 %v1111, %v1109
    %v1822 = vpack.c.b16 %v1112, %v1110
    %v1823 = vpack.c.b16 %v1115, %v1113
    %v1824 = vpack.c.b16 %v1116, %v1114
    %v1825 = vpack.c.b16 %v1119, %v1117
    %v1826 = vpack.c.b16 %v1120, %v1118
    %v1827 = vpack.c.b16 %v1123, %v1121
    %v1828 = vpack.c.b16 %v1124, %v1122
    %v1829 = vpack.c.b16 %v1127, %v1125
    %v1830 = vpack.c.b16 %v1128, %v1126
    %v1831 = vpack.c.b16 %v1131, %v1129
    %v1832 = vpack.c.b16 %v1132, %v1130
    %v1833 = vpack.c.b16 %v1135, %v1133
    %v1834 = vpack.c.b16 %v1136, %v1134
    %v1835 = vpack.c.b16 %v1139, %v1137
    %v1836 = vpack.c.b16 %v1140, %v1138
    %v1837 = vpack.c.b16 %v1143, %v1141
    %v1838 = vpack.c.b16 %v1144, %v1142
    %v1839 = vpack.c.b16 %v1147, %v1145
    %v1840 = vpack.c.b16 %v1148, %v1146
    %v1841 = vpack.c.b16 %v1151, %v1149
    %v1842 = vpack.c.b16 %v1152, %v1150
    %v1843 = vpack.c.b16 %v1155, %v1153
    %v1844 = vpack.c.b16 %v1156, %v1154
    %v1845 = vpack.c.b16 %v1159, %v1157
    %v1846 = vpack.c.b16 %v1160, %v1158
    %v1847 = vpack.c.b16 %v1163, %v1161
    %v1848 = vpack.c.b16 %v1164, %v1162
    %v1849 = vpack.c.b16 %v1167, %v1165
    %v1850 = vpack.c.b16 %v1168, %v1166
    %v1851 = vpack.c.b16 %v1171, %v1169
    %v1852 = vpack.c.b16 %v1172, %v1170
    %v1853 = vpack.c.b16 %v1175, %v1173
    %v1854 = vpack.c.b16 %v1176, %v1174
    %v1855 = vpack.c.b16 %v1179, %v1177
    %v1856 = vpack.c.b16 %v1180, %v1178
    %v1857 = vpack.c.b16 %v1183, %v1181
    %v1858 = vpack.c.b16 %v1184, %v1182
    %v1859 = vpack.c.b16 %v1187, %v1185
    %v1860 = vpack.c.b16 %v1188, %v1186
    %v1861 = vpack.c.b16 %v1191, %v1189
    %v1862 = vpack.c.b16 %v1192, %v1190
    %v1863 = vpack.c.b16 %v1195, %v1193
    %v1864 = vpack.c.b16 %v1196, %v1194
    %v1865 = vpack.c.b16 %v1199, %v1197
    %v1866 = vpack.c.b16 %v1200, %v1198
    %v1867 = vpack.c.b16 %v1203, %v1201
    %v1868 = vpack.c.b16 %v1204, %v1202
    %v1869 = vpack.c.b16 %v1207, %v1205
    %v1870 = vpack.c.b16 %v1208, %v1206
    %v1871 = vpack.c.b16 %v1211, %v1209
    %v1872 = vpack.c.b16 %v1212, %v1210
    %v1873 = vpack.c.b16 %v1215, %v1213
    %v1874 = vpack.c.b16 %v1216, %v1214
    %v1875 = vpack.c.b16 %v1219, %v1217
    %v1876 = vpack.c.b16 %v1220, %v1218
    %v1877 = vpack.c.b16 %v1223, %v1221
    %v1878 = vpack.c.b16 %v1224, %v1222
    %v1879 = vpack.c.b16 %v1227, %v1225
    %v1880 = vpack.c.b16 %v1228, %v1226
    %v1881 = vpack.c.b16 %v1231, %v1229
    %v1882 = vpack.c.b16 %v1232, %v1230
    %v1883 = vpack.c.b16 %v1235, %v1233
    %v1884 = vpack.c.b16 %v1236, %v1234
    %v1885 = vpack.c.b16 %v1239, %v1237
    %v1886 = vpack.c.b16 %v1240, %v1238
    %v1887 = vpack.c.b16 %v1243, %v1241
    %v1888 = vpack.c.b16 %v1244, %v1242
    %v1889 = vpack.c.b16 %v1247, %v1245
    %v1890 = vpack.c.b16 %v1248, %v1246
    %v1891 = vpack.c.b16 %v1251, %v1249
    %v1892 = vpack.c.b16 %v1252, %v1250
    %v1893 = vpack.c.b16 %v1255, %v1253
    %v1894 = vpack.c.b16 %v1256, %v1254
    %v1895 = vpack.c.b16 %v1259, %v1257
    %v1896 = vpack.c.b16 %v1260, %v1258
    %v1897 = vpack.c.b16 %v1263, %v1261
    %v1898 = vpack.c.b16 %v1264, %v1262
    %v1899 = vpack.c.b16 %v1267, %v1265
    %v1900 = vpack.c.b16 %v1268, %v1266
    %v1901 = vpack.c.b16 %v1271, %v1269
    %v1902 = vpack.c.b16 %v1272, %v1270
    %v1903 = vpack.c.b16 %v1275, %v1273
    %v1904 = vpack.c.b16 %v1276, %v1274
    %v1905 = vpack.c.b16 %v1279, %v1277
    %v1906 = vpack.c.b16 %v1280, %v1278
    %v1907 = vpack.c.b16 %v1283, %v1281
    %v1908 = vpack.c.b16 %v1284, %v1282
    %v1909 = vpack.c.b16 %v1287, %v1285
    %v1910 = vpack.c.b16 %v1288, %v1286
    %v1911 = vpack.c.b16 %v1291, %v1289
    %v1912 = vpack.c.b16 %v1292, %v1290
    %v1913 = vpack.c.b16 %v1295, %v1293
    %v1914 = vpack.c.b16 %v1296, %v1294
    %v1915 = vpack.c.b16 %v1299, %v1297
    %v1916 = vpack.c.b16 %v1300, %v1298
    %v1917 = vpack.c.b16 %v1303, %v1301
    %v1918 = vpack.c.b16 %v1304, %v1302
    %v1919 = vpack.c.b16 %v1307, %v1305
    %v1920 = vpack.c.b16 %v1308, %v1306
    %v1921 = vpack.c.b16 %v1311, %v1309
    %v1922 = vpack.c.b16 %v1312, %v1310
    %v1923 = vpack.c.b16 %v1315, %v1313
    %v1924 = vpack.c.b16 %v1316, %v1314
    %v1925 = vpack.c.b16 %v1319, %v1317
    %v1926 = vpack.c.b16 %v1320, %v1318
    %v1927 = vpack.c.b16 %v1323, %v1321
    %v1928 = vpack.c.b16 %v1324, %v1322
    %v1929 = vpack.c.b16 %v1327, %v1325
    %v1930 = vpack.c.b16 %v1328, %v1326
    %v1931 = vpack.c.b16 %v1331, %v1329
    %v1932 = vpack.c.b16 %v1332, %v1330
    %v1933 = vpack.c.b16 %v1335, %v1333
    %v1934 = vpack.c.b16 %v1336, %v1334
    %v1935 = vpack.c.b16 %v1339, %v1337
    %v1936 = vpack.c.b16 %v1340, %v1338
    %v1937 = vpack.c.b16 %v1343, %v1341
    %v1938 = vpack.c.b16 %v1344, %v1342
    %v1939 = vpack.c.b16 %v1347, %v1345
    %v1940 = vpack.c.b16 %v1348, %v1346
    %v1941 = vpack.c.b16 %v1351, %v1349
    %v1942 = vpack.c.b16 %v1352, %v1350
    %v1943 = vpack.c.b16 %v1355, %v1353
    %v1944 = vpack.c.b16 %v1356, %v1354
    %v1945 = vpack.c.b16 %v1359, %v1357
    %v1946 = vpack.c.b16 %v1360, %v1358
    %v1947 = vpack.c.b16 %v1363, %v1361
    %v1948 = vpack.c.b16 %v1364, %v1362
    %v1949 = vpack.c.b16 %v1367, %v1365
    %v1950 = vpack.c.b16 %v1368, %v1366
    %v1951 = vpack.c.b16 %v1371, %v1369
    %v1952 = vpack.c.b16 %v1372, %v1370
    %v1953 = vpack.c.b16 %v1375, %v1373
    %v1954 = vpack.c.b16 %v1376, %v1374
    %v1955 = vpack.c.b16 %v1379, %v1377
    %v1956 = vpack.c.b16 %v1380, %v1378
    %v1957 = vpack.c.b16 %v1383, %v1381
    %v1958 = vpack.c.b16 %v1384, %v1382
    %v1959 = vpack.c.b16 %v1387, %v1385
    %v1960 = vpack.c.b16 %v1388, %v1386
    %v1961 = vpack.c.b16 %v1391, %v1389
    %v1962 = vpack.c.b16 %v1392, %v1390
    %v1963 = vpack.c.b16 %v1395, %v1393
    %v1964 = vpack.c.b16 %v1396, %v1394
    %v1965 = vpack.c.b16 %v1399, %v1397
    %v1966 = vpack.c.b16 %v1400, %v1398
    %v1967 = vpack.c.b16 %v1403, %v1401
    %v1968 = vpack.c.b16 %v1404, %v1402
    %v1969 = vpack.c.b16 %v1407, %v1405
    %v1970 = vpack.c.b16 %v1408, %v1406
    %v1971 = vpack.c.b16 %v1411, %v1409
    %v1972 = vpack.c.b16 %v1412, %v1410
    %v1973 = vpack.c.b16 %v1415, %v1413
    %v1974 = vpack.c.b16 %v1416, %v1414
    %v1975 = vpack.c.b16 %v1419, %v1417
    %v1976 = vpack.c.b16 %v1420, %v1418
    %v1977 = vpack.c.b16 %v1423, %v1421
    %v1978 = vpack.c.b16 %v1424, %v1422
    %v1979 = vpack.c.b16 %v1427, %v1425
    %v1980 = vpack.c.b16 %v1428, %v1426
    %v1981 = vpack.c.b16 %v1431, %v1429
    %v1982 = vpack.c.b16 %v1432, %v1430
    %v1983 = vpack.c.b16 %v1435, %v1433
    %v1984 = vpack.c.b16 %v1436, %v1434
    %v1985 = vpack.c.b16 %v1439, %v1437
    %v1986 = vpack.c.b16 %v1440, %v1438
    %v1987 = vpack.c.b16 %v1443, %v1441
    %v1988 = vpack.c.b16 %v1444, %v1442
    %v1989 = vpack.c.b16 %v1447, %v1445
    %v1990 = vpack.c.b16 %v1448, %v1446
    %v1991 = vpack.c.b16 %v1451, %v1449
    %v1992 = vpack.c.b16 %v1452, %v1450
    %v1993 = vpack.c.b16 %v1455, %v1453
    %v1994 = vpack.c.b16 %v1456, %v1454
    %v1995 = vpack.c.b16 %v1459, %v1457
    %v1996 = vpack.c.b16 %v1460, %v1458
    %v1997 = vpack.c.b16 %v1463, %v1461
    %v1998 = vpack.c.b16 %v1464, %v1462
    %v1999 = vpack.c.b16 %v1467, %v1465
    %v2000 = vpack.c.b16 %v1468, %v1466
    %v2001 = vpack.c.b16 %v1471, %v1469
    %v2002 = vpack.c.b16 %v1472, %v1470
    %v2003 = vpack.c.b16 %v1475, %v1473
    %v2004 = vpack.c.b16 %v1476, %v1474
    %v2005 = vpack.c.b16 %v1479, %v1477
    %v2006 = vpack.c.b16 %v1480, %v1478
    %v2007 = vpack.c.b16 %v1483, %v1481
    %v2008 = vpack.c.b16 %v1484, %v1482
    %v2009 = vpack.c.b16 %v1487, %v1485
    %v2010 = vpack.c.b16 %v1488, %v1486
    %v2011 = vpack.c.b16 %v1491, %v1489
    %v2012 = vpack.c.b16 %v1492, %v1490
    %v2013 = vpack.c.b16 %v1495, %v1493
    %v2014 = vpack.c.b16 %v1496, %v1494
    %v2015 = vpack.c.b16 %v1499, %v1497
    %v2016 = vpack.c.b16 %v1500, %v1498
    %v2017 = vpack.c.b16 %v1503, %v1501
    %v2018 = vpack.c.b16 %v1504, %v1502
    %v2019 = vpack.c.b16 %v1507, %v1505
    %v2020 = vpack.c.b16 %v1508, %v1506
    %v2021 = vpack.c.b16 %v1511, %v1509
    %v2022 = vpack.c.b16 %v1512, %v1510
    %v2023 = vpack.c.b16 %v1515, %v1513
    %v2024 = vpack.c.b16 %v1516, %v1514
    %v2025 = vpack.c.b16 %v1519, %v1517
    %v2026 = vpack.c.b16 %v1520, %v1518
    %v2027 = vpack.c.b16 %v1523, %v1521
    %v2028 = vpack.c.b16 %v1524, %v1522
    %v2029 = vpack.c.b16 %v1527, %v1525
    %v2030 = vpack.c.b16 %v1528, %v1526
    %v2031 = vpack.c.b16 %v1531, %v1529
    %v2032 = vpack.c.b16 %v1532, %v1530
    %v2033 = vpack.c.b16 %v1535, %v1533
    %v2034 = vpack.c.b16 %v1536, %v1534
    %v2035 = vpack.c.b16 %v1539, %v1537
    %v2036 = vpack.c.b16 %v1540, %v1538
    %v2037 = vpack.c.b16 %v1543, %v1541
    %v2038 = vpack.c.b16 %v1544, %v1542
    %v2039 = vpack.c.b16 %v1547, %v1545
    %v2040 = vpack.c.b16 %v1548, %v1546
    %v2041 = vpack.c.b16 %v1551, %v1549
    %v2042 = vpack.c.b16 %v1552, %v1550
    %v2043 = vpack.c.b16 %v1555, %v1553
    %v2044 = vpack.c.b16 %v1556, %v1554
    %v2045 = vpack.c.b16 %v1559, %v1557
    %v2046 = vpack.c.b16 %v1560, %v1558
    %v2047 = vpack.c.b16 %v1563, %v1561
    %v2048 = vpack.c.b16 %v1564, %v1562
    %v2049 = vpack.c.b16 %v1567, %v1565
    %v2050 = vpack.c.b16 %v1568, %v1566
    %v2051 = vpack.c.b16 %v1571, %v1569
    %v2052 = vpack.c.b16 %v1572, %v1570
    %v2053 = vpack.c.b16 %v1575, %v1573
    %v2054 = vpack.c.b16 %v1576, %v1574
    %v2055 = vpack.c.b16 %v1579, %v1577
    %v2056 = vpack.c.b16 %v1580, %v1578
    %v2057 = vpack.c.b16 %v1583, %v1581
    %v2058 = vpack.c.b16 %v1584, %v1582
    %v2059 = vpack.c.b16 %v1587, %v1585
    %v2060 = vpack.c.b16 %v1588, %v1586
    %v2061 = vpack.c.b16 %v1591, %v1589
    %v2062 = vpack.c.b16 %v1592, %v1590
    %v2063 = vpack.c.b16 %v1595, %v1593
    %v2064 = vpack.c.b16 %v1596, %v1594
    %v2065 = vpack.c.b16 %v1599, %v1597
    %v2066 = vpack.c.b16 %v1600, %v1598
    %v2067 = vpack.c.b16 %v1603, %v1601
    %v2068 = vpack.c.b16 %v1604, %v1602
    %v2069 = vpack.c.b16 %v1607, %v1605
    %v2070 = vpack.c.b16 %v1608, %v1606
    %v2071 = vpack.c.b16 %v1611, %v1609
    %v2072 = vpack.c.b16 %v1612, %v1610
    %v2073 = vpack.c.b16 %v1615, %v1613
    %v2074 = vpack.c.b16 %v1616, %v1614
    %v2075 = vpack.c.b16 %v1619, %v1617
    %v2076 = vpack.c.b16 %v1620, %v1618
    %v2077 = vpack.c.b16 %v1623, %v1621
    %v2078 = vpack.c.b16 %v1624, %v1622
    %v2079 = vpack.c.b16 %v1627, %v1625
    %v2080 = vpack.c.b16 %v1628, %v1626
    %v2081 = vpack.c.b16 %v1631, %v1629
    %v2082 = vpack.c.b16 %v1632, %v1630
    %v2083 = vpack.c.b16 %v1635, %v1633
    %v2084 = vpack.c.b16 %v1636, %v1634
    %v2085 = vpack.c.b16 %v1639, %v1637
    %v2086 = vpack.c.b16 %v1640, %v1638
    %v2087 = vpack.c.b16 %v1643, %v1641
    %v2088 = vpack.c.b16 %v1644, %v1642
    %v2089 = vpack.c.b16 %v1647, %v1645
    %v2090 = vpack.c.b16 %v1648, %v1646
    %v2091 = vpack.c.b16 %v1651, %v1649
    %v2092 = vpack.c.b16 %v1652, %v1650
    %v2093 = vpack.c.b16 %v1655, %v1653
    %v2094 = vpack.c.b16 %v1656, %v1654
    %v2095 = vpack.c.b16 %v1659, %v1657
    %v2096 = vpack.c.b16 %v1660, %v1658
    %v2097 = vpack.c.b16 %v1663, %v1661
    %v2098 = vpack.c.b16 %v1664, %v1662
    %v2099 = vpack.c.b16 %v1667, %v1665
    %v2100 = vpack.c.b16 %v1668, %v1666
    %v2101 = vpack.c.b16 %v1671, %v1669
    %v2102 = vpack.c.b16 %v1672, %v1670
    %v2103 = vpack.c.b16 %v1675, %v1673
    %v2104 = vpack.c.b16 %v1676, %v1674
    %v2105 = vpack.c.b16 %v1679, %v1677
    %v2106 = vpack.c.b16 %v1680, %v1678
    %v2107 = vpack.c.b16 %v1683, %v1681
    %v2108 = vpack.c.b16 %v1684, %v1682
    %v2109 = vpack.c.b16 %v1687, %v1685
    %v2110 = vpack.c.b16 %v1688, %v1686
    %v2111 = vpack.c.b16 %v1691, %v1689
    %v2112 = vpack.c.b16 %v1692, %v1690
    %v2113 = vpack.c.b16 %v1695, %v1693
    %v2114 = vpack.c.b16 %v1696, %v1694
    %v2115 = vpack.c.b16 %v1699, %v1697
    %v2116 = vpack.c.b16 %v1700, %v1698
    %v2117 = vpack.c.b16 %v1703, %v1701
    %v2118 = vpack.c.b16 %v1704, %v1702
    %v2119 = vpack.c.b16 %v1707, %v1705
    %v2120 = vpack.c.b16 %v1708, %v1706
    %v2121 = vpack.c.b16 %v1711, %v1709
    %v2122 = vpack.c.b16 %v1712, %v1710
    %v2123 = vpack.c.b16 %v1715, %v1713
    %v2124 = vpack.c.b16 %v1716, %v1714
    %v2125 = vpack.c.b16 %v1719, %v1717
    %v2126 = vpack.c.b16 %v1720, %v1718
    %v2127 = vpack.c.b16 %v1723, %v1721
    %v2128 = vpack.c.b16 %v1724, %v1722
    %v2129 = vpack.c.b16 %v1727, %v1725
    %v2130 = vpack.c.b16 %v1728, %v1726
    %v2131 = vpack.c.b16 %v1731, %v1729
    %v2132 = vpack.c.b16 %v1732, %v1730
    %v2133 = vpack.c.b16 %v1735, %v1733
    %v2134 = vpack.c.b16 %v1736, %v1734
    %v2135 = vpack.c.b16 %v1739, %v1737
    %v2136 = vpack.c.b16 %v1740, %v1738
    %v2137 = vpack.c.b16 %v1743, %v1741
    %v2138 = vpack.c.b16 %v1744, %v1742
    %v2139 = vpack.c.b16 %v1747, %v1745
    %v2140 = vpack.c.b16 %v1748, %v1746
    %v2141 = vpack.c.b16 %v1751, %v1749
    %v2142 = vpack.c.b16 %v1752, %v1750
    %v2143 = vpack.c.b16 %v1755, %v1753
    %v2144 = vpack.c.b16 %v1756, %v1754
    %v2145 = vpack.c.b16 %v1759, %v1757
    %v2146 = vpack.c.b16 %v1760, %v1758
    %v2147 = vpack.c.b16 %v1763, %v1761
    %v2148 = vpack.c.b16 %v1764, %v1762
    %2533 = vmatprep.subr.bf16.mxu0 %v1766
    %2534 = vmatpush1.bf16.msra.mxu0 %v1765
    %2535 = vmatprep.subr.bf16.mxu0 %v1768
    %2536 = vmatpush1.bf16.msra.mxu0 %v1767
    %2537 = vmatprep.subr.bf16.mxu0 %v1770
    %2538 = vmatpush1.bf16.msra.mxu0 %v1769
    %2539 = vmatprep.subr.bf16.mxu0 %v1772
    %2540 = vmatpush1.bf16.msra.mxu0 %v1771
    %2541 = vmatprep.subr.bf16.mxu0 %v1774
    %2542 = vmatpush1.bf16.msra.mxu0 %v1773
    %2543 = vmatprep.subr.bf16.mxu0 %v1776
    %2544 = vmatpush1.bf16.msra.mxu0 %v1775
    %2545 = vmatprep.subr.bf16.mxu0 %v1778
    %2546 = vmatpush1.bf16.msra.mxu0 %v1777
    %2547 = vmatprep.subr.bf16.mxu0 %v1780
    %2548 = vmatpush1.bf16.msra.mxu0 %v1779
    %2549 = vmatprep.subr.bf16.mxu0 %v1782
    %2550 = vmatpush1.bf16.msra.mxu0 %v1781
    %2551 = vmatprep.subr.bf16.mxu0 %v1784
    %2552 = vmatpush1.bf16.msra.mxu0 %v1783
    %2553 = vmatprep.subr.bf16.mxu0 %v1786
    %2554 = vmatpush1.bf16.msra.mxu0 %v1785
    %2555 = vmatprep.subr.bf16.mxu0 %v1788
    %2556 = vmatpush1.bf16.msra.mxu0 %v1787
    %2557 = vmatprep.subr.bf16.mxu0 %v1790
    %2558 = vmatpush1.bf16.msra.mxu0 %v1789
    %2559 = vmatprep.subr.bf16.mxu0 %v1792
    %2560 = vmatpush1.bf16.msra.mxu0 %v1791
    %2561 = vmatprep.subr.bf16.mxu0 %v1794
    %2562 = vmatpush1.bf16.msra.mxu0 %v1793
    %2563 = vmatprep.subr.bf16.mxu0 %v1796
    %2564 = vmatpush1.bf16.msra.mxu0 %v1795
    %2565 = vmatprep.mubr.bf16.mxu0 %v479
    %2566 = vmatmul.mubr.bf16.gmra.mrb[0].mxu0 %v465
    %v2567 = vpop.f32.mrb[0].mxu0
    %v2568 = vadd.f32 %v432, %v2567
    %v2569 = vpop.f32.mrb[0].mxu0
    %v2570 = vadd.f32 %v436, %v2569
    %v2571 = vpop.f32.mrb[0].mxu0
    %v2572 = vpop.f32.mrb[0].mxu0
    %2573 = vdwg.mxu0
    %2574 = vmatprep.subr.bf16.mxu0 %v1798
    %2575 = vmatpush1.bf16.msra.mxu0 %v1797
    %2576 = vmatprep.subr.bf16.mxu0 %v1800
    %2577 = vmatpush1.bf16.msra.mxu0 %v1799
    %2578 = vmatprep.subr.bf16.mxu0 %v1802
    %2579 = vmatpush1.bf16.msra.mxu0 %v1801
    %2580 = vmatprep.subr.bf16.mxu0 %v1804
    %2581 = vmatpush1.bf16.msra.mxu0 %v1803
    %2582 = vmatprep.subr.bf16.mxu0 %v1806
    %2583 = vmatpush1.bf16.msra.mxu0 %v1805
    %2584 = vmatprep.subr.bf16.mxu0 %v1808
    %2585 = vmatpush1.bf16.msra.mxu0 %v1807
    %2586 = vmatprep.subr.bf16.mxu0 %v1810
    %2587 = vmatpush1.bf16.msra.mxu0 %v1809
    %2588 = vmatprep.subr.bf16.mxu0 %v1812
    %2589 = vmatpush1.bf16.msra.mxu0 %v1811
    %2590 = vmatprep.subr.bf16.mxu0 %v1814
    %2591 = vmatpush1.bf16.msra.mxu0 %v1813
    %2592 = vmatprep.subr.bf16.mxu0 %v1816
    %2593 = vmatpush1.bf16.msra.mxu0 %v1815
    %2594 = vmatprep.subr.bf16.mxu0 %v1818
    %2595 = vmatpush1.bf16.msra.mxu0 %v1817
    %2596 = vmatprep.subr.bf16.mxu0 %v1820
    %2597 = vmatpush1.bf16.msra.mxu0 %v1819
    %2598 = vmatprep.subr.bf16.mxu0 %v1822
    %2599 = vmatpush1.bf16.msra.mxu0 %v1821
    %2600 = vmatprep.subr.bf16.mxu0 %v1824
    %2601 = vmatpush1.bf16.msra.mxu0 %v1823
    %2602 = vmatprep.subr.bf16.mxu0 %v1826
    %2603 = vmatpush1.bf16.msra.mxu0 %v1825
    %2604 = vmatprep.subr.bf16.mxu0 %v1828
    %2605 = vmatpush1.bf16.msra.mxu0 %v1827
    %2606 = vmatprep.mubr.bf16.mxu0 %v489
    %2607 = vmatmul.mubr.bf16.gmra.mrb[0].mxu0 %v487
    %v2608 = vpop.f32.mrb[0].mxu0
    %v2609 = vadd.f32 %v2568, %v2608
    %v2610 = vpop.f32.mrb[0].mxu0
    %v2611 = vadd.f32 %v2570, %v2610
    %v2612 = vpop.f32.mrb[0].mxu0
    %v2613 = vpop.f32.mrb[0].mxu0
    %2614 = vdwg.mxu0
    %2615 = vmatprep.subr.bf16.mxu0 %v1830
    %2616 = vmatpush1.bf16.msra.mxu0 %v1829
    %2617 = vmatprep.subr.bf16.mxu0 %v1832
    %2618 = vmatpush1.bf16.msra.mxu0 %v1831
    %2619 = vmatprep.subr.bf16.mxu0 %v1834
    %2620 = vmatpush1.bf16.msra.mxu0 %v1833
    %2621 = vmatprep.subr.bf16.mxu0 %v1836
    %2622 = vmatpush1.bf16.msra.mxu0 %v1835
    %2623 = vmatprep.subr.bf16.mxu0 %v1838
    %2624 = vmatpush1.bf16.msra.mxu0 %v1837
    %2625 = vmatprep.subr.bf16.mxu0 %v1840
    %2626 = vmatpush1.bf16.msra.mxu0 %v1839
    %2627 = vmatprep.subr.bf16.mxu0 %v1842
    %2628 = vmatpush1.bf16.msra.mxu0 %v1841
    %2629 = vmatprep.subr.bf16.mxu0 %v1844
    %2630 = vmatpush1.bf16.msra.mxu0 %v1843
    %2631 = vmatprep.subr.bf16.mxu0 %v1846
    %2632 = vmatpush1.bf16.msra.mxu0 %v1845
    %2633 = vmatprep.subr.bf16.mxu0 %v1848
    %2634 = vmatpush1.bf16.msra.mxu0 %v1847
    %2635 = vmatprep.subr.bf16.mxu0 %v1850
    %2636 = vmatpush1.bf16.msra.mxu0 %v1849
    %2637 = vmatprep.subr.bf16.mxu0 %v1852
    %2638 = vmatpush1.bf16.msra.mxu0 %v1851
    %2639 = vmatprep.subr.bf16.mxu0 %v1854
    %2640 = vmatpush1.bf16.msra.mxu0 %v1853
    %2641 = vmatprep.subr.bf16.mxu0 %v1856
    %2642 = vmatpush1.bf16.msra.mxu0 %v1855
    %2643 = vmatprep.subr.bf16.mxu0 %v1858
    %2644 = vmatpush1.bf16.msra.mxu0 %v1857
    %2645 = vmatprep.subr.bf16.mxu0 %v1860
    %2646 = vmatpush1.bf16.msra.mxu0 %v1859
    %2647 = vmatprep.mubr.bf16.mxu0 %v486
    %2648 = vmatmul.mubr.bf16.gmra.mrb[0].mxu0 %v472
    %v2649 = vpop.f32.mrb[0].mxu0
    %v2650 = vadd.f32 %v2609, %v2649
    %v2651 = vpop.f32.mrb[0].mxu0
    %v2652 = vadd.f32 %v2611, %v2651
    %v2653 = vpop.f32.mrb[0].mxu0
    %v2654 = vpop.f32.mrb[0].mxu0
    %2655 = vdwg.mxu0
    %2656 = vmatprep.subr.bf16.mxu0 %v1862
    %2657 = vmatpush1.bf16.msra.mxu0 %v1861
    %2658 = vmatprep.subr.bf16.mxu0 %v1864
    %2659 = vmatpush1.bf16.msra.mxu0 %v1863
    %2660 = vmatprep.subr.bf16.mxu0 %v1866
    %2661 = vmatpush1.bf16.msra.mxu0 %v1865
    %2662 = vmatprep.subr.bf16.mxu0 %v1868
    %2663 = vmatpush1.bf16.msra.mxu0 %v1867
    %2664 = vmatprep.subr.bf16.mxu0 %v1870
    %2665 = vmatpush1.bf16.msra.mxu0 %v1869
    %2666 = vmatprep.subr.bf16.mxu0 %v1872
    %2667 = vmatpush1.bf16.msra.mxu0 %v1871
    %2668 = vmatprep.subr.bf16.mxu0 %v1874
    %2669 = vmatpush1.bf16.msra.mxu0 %v1873
    %2670 = vmatprep.subr.bf16.mxu0 %v1876
    %2671 = vmatpush1.bf16.msra.mxu0 %v1875
    %2672 = vmatprep.subr.bf16.mxu0 %v1878
    %2673 = vmatpush1.bf16.msra.mxu0 %v1877
    %2674 = vmatprep.subr.bf16.mxu0 %v1880
    %2675 = vmatpush1.bf16.msra.mxu0 %v1879
    %2676 = vmatprep.subr.bf16.mxu0 %v1882
    %2677 = vmatpush1.bf16.msra.mxu0 %v1881
    %2678 = vmatprep.subr.bf16.mxu0 %v1884
    %2679 = vmatpush1.bf16.msra.mxu0 %v1883
    %2680 = vmatprep.subr.bf16.mxu0 %v1886
    %2681 = vmatpush1.bf16.msra.mxu0 %v1885
    %2682 = vmatprep.subr.bf16.mxu0 %v1888
    %2683 = vmatpush1.bf16.msra.mxu0 %v1887
    %2684 = vmatprep.subr.bf16.mxu0 %v1890
    %2685 = vmatpush1.bf16.msra.mxu0 %v1889
    %2686 = vmatprep.subr.bf16.mxu0 %v1892
    %2687 = vmatpush1.bf16.msra.mxu0 %v1891
    %2688 = vmatprep.mubr.bf16.mxu0 %v490
    %2689 = vmatmul.mubr.bf16.gmra.mrb[0].mxu0 %v488
    %v2690 = vpop.f32.mrb[0].mxu0
    %v2691 = vadd.f32 %v2650, %v2690
    %v2692 = vpop.f32.mrb[0].mxu0
    %v2693 = vadd.f32 %v2652, %v2692
    %v2694 = vpop.f32.mrb[0].mxu0
    %v2695 = vpop.f32.mrb[0].mxu0
    %2696 = vdwg.mxu0
    %2697 = vmatprep.subr.bf16.mxu0 %v1894
    %2698 = vmatpush1.bf16.msra.mxu0 %v1893
    %2699 = vmatprep.subr.bf16.mxu0 %v1896
    %2700 = vmatpush1.bf16.msra.mxu0 %v1895
    %2701 = vmatprep.subr.bf16.mxu0 %v1898
    %2702 = vmatpush1.bf16.msra.mxu0 %v1897
    %2703 = vmatprep.subr.bf16.mxu0 %v1900
    %2704 = vmatpush1.bf16.msra.mxu0 %v1899
    %2705 = vmatprep.subr.bf16.mxu0 %v1902
    %2706 = vmatpush1.bf16.msra.mxu0 %v1901
    %2707 = vmatprep.subr.bf16.mxu0 %v1904
    %2708 = vmatpush1.bf16.msra.mxu0 %v1903
    %2709 = vmatprep.subr.bf16.mxu0 %v1906
    %2710 = vmatpush1.bf16.msra.mxu0 %v1905
    %2711 = vmatprep.subr.bf16.mxu0 %v1908
    %2712 = vmatpush1.bf16.msra.mxu0 %v1907
    %2713 = vmatprep.subr.bf16.mxu0 %v1910
    %2714 = vmatpush1.bf16.msra.mxu0 %v1909
    %2715 = vmatprep.subr.bf16.mxu0 %v1912
    %2716 = vmatpush1.bf16.msra.mxu0 %v1911
    %2717 = vmatprep.subr.bf16.mxu0 %v1914
    %2718 = vmatpush1.bf16.msra.mxu0 %v1913
    %2719 = vmatprep.subr.bf16.mxu0 %v1916
    %2720 = vmatpush1.bf16.msra.mxu0 %v1915
    %2721 = vmatprep.subr.bf16.mxu0 %v1918
    %2722 = vmatpush1.bf16.msra.mxu0 %v1917
    %2723 = vmatprep.subr.bf16.mxu0 %v1920
    %2724 = vmatpush1.bf16.msra.mxu0 %v1919
    %2725 = vmatprep.subr.bf16.mxu0 %v1922
    %2726 = vmatpush1.bf16.msra.mxu0 %v1921
    %2727 = vmatprep.subr.bf16.mxu0 %v1924
    %2728 = vmatpush1.bf16.msra.mxu0 %v1923
    %2729 = vmatprep.mubr.bf16.mxu0 %v528
    %2730 = vmatmul.mubr.bf16.gmra.mrb[0].mxu0 %v514
    %v2731 = vpop.f32.mrb[0].mxu0
    %v2732 = vadd.f32 %v2691, %v2731
    %v2733 = vpop.f32.mrb[0].mxu0
    %v2734 = vadd.f32 %v2693, %v2733
    %v2735 = vpop.f32.mrb[0].mxu0
    %v2736 = vpop.f32.mrb[0].mxu0
    %2737 = vdwg.mxu0
    %2738 = vmatprep.subr.bf16.mxu0 %v1926
    %2739 = vmatpush1.bf16.msra.mxu0 %v1925
    %2740 = vmatprep.subr.bf16.mxu0 %v1928
    %2741 = vmatpush1.bf16.msra.mxu0 %v1927
    %2742 = vmatprep.subr.bf16.mxu0 %v1930
    %2743 = vmatpush1.bf16.msra.mxu0 %v1929
    %2744 = vmatprep.subr.bf16.mxu0 %v1932
    %2745 = vmatpush1.bf16.msra.mxu0 %v1931
    %2746 = vmatprep.subr.bf16.mxu0 %v1934
    %2747 = vmatpush1.bf16.msra.mxu0 %v1933
    %2748 = vmatprep.subr.bf16.mxu0 %v1936
    %2749 = vmatpush1.bf16.msra.mxu0 %v1935
    %2750 = vmatprep.subr.bf16.mxu0 %v1938
    %2751 = vmatpush1.bf16.msra.mxu0 %v1937
    %2752 = vmatprep.subr.bf16.mxu0 %v1940
    %2753 = vmatpush1.bf16.msra.mxu0 %v1939
    %2754 = vmatprep.subr.bf16.mxu0 %v1942
    %2755 = vmatpush1.bf16.msra.mxu0 %v1941
    %2756 = vmatprep.subr.bf16.mxu0 %v1944
    %2757 = vmatpush1.bf16.msra.mxu0 %v1943
    %2758 = vmatprep.subr.bf16.mxu0 %v1946
    %2759 = vmatpush1.bf16.msra.mxu0 %v1945
    %2760 = vmatprep.subr.bf16.mxu0 %v1948
    %2761 = vmatpush1.bf16.msra.mxu0 %v1947
    %2762 = vmatprep.subr.bf16.mxu0 %v1950
    %2763 = vmatpush1.bf16.msra.mxu0 %v1949
    %2764 = vmatprep.subr.bf16.mxu0 %v1952
    %2765 = vmatpush1.bf16.msra.mxu0 %v1951
    %2766 = vmatprep.subr.bf16.mxu0 %v1954
    %2767 = vmatpush1.bf16.msra.mxu0 %v1953
    %2768 = vmatprep.subr.bf16.mxu0 %v1956
    %2769 = vmatpush1.bf16.msra.mxu0 %v1955
    %2770 = vmatprep.mubr.bf16.mxu0 %v538
    %2771 = vmatmul.mubr.bf16.gmra.mrb[0].mxu0 %v536
    %v2772 = vpop.f32.mrb[0].mxu0
    %v2773 = vadd.f32 %v2732, %v2772
    %v2774 = vpop.f32.mrb[0].mxu0
    %v2775 = vadd.f32 %v2734, %v2774
    %v2776 = vpop.f32.mrb[0].mxu0
    %v2777 = vpop.f32.mrb[0].mxu0
    %2778 = vdwg.mxu0
    %2779 = vmatprep.subr.bf16.mxu0 %v1958
    %2780 = vmatpush1.bf16.msra.mxu0 %v1957
    %2781 = vmatprep.subr.bf16.mxu0 %v1960
    %2782 = vmatpush1.bf16.msra.mxu0 %v1959
    %2783 = vmatprep.subr.bf16.mxu0 %v1962
    %2784 = vmatpush1.bf16.msra.mxu0 %v1961
    %2785 = vmatprep.subr.bf16.mxu0 %v1964
    %2786 = vmatpush1.bf16.msra.mxu0 %v1963
    %2787 = vmatprep.subr.bf16.mxu0 %v1966
    %2788 = vmatpush1.bf16.msra.mxu0 %v1965
    %2789 = vmatprep.subr.bf16.mxu0 %v1968
    %2790 = vmatpush1.bf16.msra.mxu0 %v1967
    %2791 = vmatprep.subr.bf16.mxu0 %v1970
    %2792 = vmatpush1.bf16.msra.mxu0 %v1969
    %2793 = vmatprep.subr.bf16.mxu0 %v1972
    %2794 = vmatpush1.bf16.msra.mxu0 %v1971
    %2795 = vmatprep.subr.bf16.mxu0 %v1974
    %2796 = vmatpush1.bf16.msra.mxu0 %v1973
    %2797 = vmatprep.subr.bf16.mxu0 %v1976
    %2798 = vmatpush1.bf16.msra.mxu0 %v1975
    %2799 = vmatprep.subr.bf16.mxu0 %v1978
    %2800 = vmatpush1.bf16.msra.mxu0 %v1977
    %2801 = vmatprep.subr.bf16.mxu0 %v1980
    %2802 = vmatpush1.bf16.msra.mxu0 %v1979
    %2803 = vmatprep.subr.bf16.mxu0 %v1982
    %2804 = vmatpush1.bf16.msra.mxu0 %v1981
    %2805 = vmatprep.subr.bf16.mxu0 %v1984
    %2806 = vmatpush1.bf16.msra.mxu0 %v1983
    %2807 = vmatprep.subr.bf16.mxu0 %v1986
    %2808 = vmatpush1.bf16.msra.mxu0 %v1985
    %2809 = vmatprep.subr.bf16.mxu0 %v1988
    %2810 = vmatpush1.bf16.msra.mxu0 %v1987
    %2811 = vmatprep.mubr.bf16.mxu0 %v535
    %2812 = vmatmul.mubr.bf16.gmra.mrb[0].mxu0 %v521
    %v2813 = vpop.f32.mrb[0].mxu0
    %v2814 = vadd.f32 %v2773, %v2813
    %v2815 = vpop.f32.mrb[0].mxu0
    %v2816 = vadd.f32 %v2775, %v2815
    %v2817 = vpop.f32.mrb[0].mxu0
    %v2818 = vpop.f32.mrb[0].mxu0
    %2819 = vdwg.mxu0
    %2820 = vmatprep.subr.bf16.mxu0 %v1990
    %2821 = vmatpush1.bf16.msra.mxu0 %v1989
    %2822 = vmatprep.subr.bf16.mxu0 %v1992
    %2823 = vmatpush1.bf16.msra.mxu0 %v1991
    %2824 = vmatprep.subr.bf16.mxu0 %v1994
    %2825 = vmatpush1.bf16.msra.mxu0 %v1993
    %2826 = vmatprep.subr.bf16.mxu0 %v1996
    %2827 = vmatpush1.bf16.msra.mxu0 %v1995
    %2828 = vmatprep.subr.bf16.mxu0 %v1998
    %2829 = vmatpush1.bf16.msra.mxu0 %v1997
    %2830 = vmatprep.subr.bf16.mxu0 %v2000
    %2831 = vmatpush1.bf16.msra.mxu0 %v1999
    %2832 = vmatprep.subr.bf16.mxu0 %v2002
    %2833 = vmatpush1.bf16.msra.mxu0 %v2001
    %2834 = vmatprep.subr.bf16.mxu0 %v2004
    %2835 = vmatpush1.bf16.msra.mxu0 %v2003
    %2836 = vmatprep.subr.bf16.mxu0 %v2006
    %2837 = vmatpush1.bf16.msra.mxu0 %v2005
    %2838 = vmatprep.subr.bf16.mxu0 %v2008
    %2839 = vmatpush1.bf16.msra.mxu0 %v2007
    %2840 = vmatprep.subr.bf16.mxu0 %v2010
    %2841 = vmatpush1.bf16.msra.mxu0 %v2009
    %2842 = vmatprep.subr.bf16.mxu0 %v2012
    %2843 = vmatpush1.bf16.msra.mxu0 %v2011
    %2844 = vmatprep.subr.bf16.mxu0 %v2014
    %2845 = vmatpush1.bf16.msra.mxu0 %v2013
    %2846 = vmatprep.subr.bf16.mxu0 %v2016
    %2847 = vmatpush1.bf16.msra.mxu0 %v2015
    %2848 = vmatprep.subr.bf16.mxu0 %v2018
    %2849 = vmatpush1.bf16.msra.mxu0 %v2017
    %2850 = vmatprep.subr.bf16.mxu0 %v2020
    %2851 = vmatpush1.bf16.msra.mxu0 %v2019
    %2852 = vmatprep.mubr.bf16.mxu0 %v539
    %2853 = vmatmul.mubr.bf16.gmra.mrb[0].mxu0 %v537
    %v2854 = vpop.f32.mrb[0].mxu0
    %v2855 = vadd.f32 %v2814, %v2854
    %v2856 = vpop.f32.mrb[0].mxu0
    %v2857 = vadd.f32 %v2816, %v2856
    %v2858 = vpop.f32.mrb[0].mxu0
    %v2859 = vpop.f32.mrb[0].mxu0
    %2860 = vdwg.mxu0
    %2861 = vmatprep.subr.bf16.mxu0 %v2022
    %2862 = vmatpush1.bf16.msra.mxu0 %v2021
    %2863 = vmatprep.subr.bf16.mxu0 %v2024
    %2864 = vmatpush1.bf16.msra.mxu0 %v2023
    %2865 = vmatprep.subr.bf16.mxu0 %v2026
    %2866 = vmatpush1.bf16.msra.mxu0 %v2025
    %2867 = vmatprep.subr.bf16.mxu0 %v2028
    %2868 = vmatpush1.bf16.msra.mxu0 %v2027
    %2869 = vmatprep.subr.bf16.mxu0 %v2030
    %2870 = vmatpush1.bf16.msra.mxu0 %v2029
    %2871 = vmatprep.subr.bf16.mxu0 %v2032
    %2872 = vmatpush1.bf16.msra.mxu0 %v2031
    %2873 = vmatprep.subr.bf16.mxu0 %v2034
    %2874 = vmatpush1.bf16.msra.mxu0 %v2033
    %2875 = vmatprep.subr.bf16.mxu0 %v2036
    %2876 = vmatpush1.bf16.msra.mxu0 %v2035
    %2877 = vmatprep.subr.bf16.mxu0 %v2038
    %2878 = vmatpush1.bf16.msra.mxu0 %v2037
    %2879 = vmatprep.subr.bf16.mxu0 %v2040
    %2880 = vmatpush1.bf16.msra.mxu0 %v2039
    %2881 = vmatprep.subr.bf16.mxu0 %v2042
    %2882 = vmatpush1.bf16.msra.mxu0 %v2041
    %2883 = vmatprep.subr.bf16.mxu0 %v2044
    %2884 = vmatpush1.bf16.msra.mxu0 %v2043
    %2885 = vmatprep.subr.bf16.mxu0 %v2046
    %2886 = vmatpush1.bf16.msra.mxu0 %v2045
    %2887 = vmatprep.subr.bf16.mxu0 %v2048
    %2888 = vmatpush1.bf16.msra.mxu0 %v2047
    %2889 = vmatprep.subr.bf16.mxu0 %v2050
    %2890 = vmatpush1.bf16.msra.mxu0 %v2049
    %2891 = vmatprep.subr.bf16.mxu0 %v2052
    %2892 = vmatpush1.bf16.msra.mxu0 %v2051
    %2893 = vmatprep.mubr.bf16.mxu0 %v577
    %2894 = vmatmul.mubr.bf16.gmra.mrb[0].mxu0 %v563
    %v2895 = vpop.f32.mrb[0].mxu0
    %v2896 = vadd.f32 %v2855, %v2895
    %v2897 = vpop.f32.mrb[0].mxu0
    %v2898 = vadd.f32 %v2857, %v2897
    %v2899 = vpop.f32.mrb[0].mxu0
    %v2900 = vpop.f32.mrb[0].mxu0
    %2901 = vdwg.mxu0
    %2902 = vmatprep.subr.bf16.mxu0 %v2054
    %2903 = vmatpush1.bf16.msra.mxu0 %v2053
    %2904 = vmatprep.subr.bf16.mxu0 %v2056
    %2905 = vmatpush1.bf16.msra.mxu0 %v2055
    %2906 = vmatprep.subr.bf16.mxu0 %v2058
    %2907 = vmatpush1.bf16.msra.mxu0 %v2057
    %2908 = vmatprep.subr.bf16.mxu0 %v2060
    %2909 = vmatpush1.bf16.msra.mxu0 %v2059
    %2910 = vmatprep.subr.bf16.mxu0 %v2062
    %2911 = vmatpush1.bf16.msra.mxu0 %v2061
    %2912 = vmatprep.subr.bf16.mxu0 %v2064
    %2913 = vmatpush1.bf16.msra.mxu0 %v2063
    %2914 = vmatprep.subr.bf16.mxu0 %v2066
    %2915 = vmatpush1.bf16.msra.mxu0 %v2065
    %2916 = vmatprep.subr.bf16.mxu0 %v2068
    %2917 = vmatpush1.bf16.msra.mxu0 %v2067
    %2918 = vmatprep.subr.bf16.mxu0 %v2070
    %2919 = vmatpush1.bf16.msra.mxu0 %v2069
    %2920 = vmatprep.subr.bf16.mxu0 %v2072
    %2921 = vmatpush1.bf16.msra.mxu0 %v2071
    %2922 = vmatprep.subr.bf16.mxu0 %v2074
    %2923 = vmatpush1.bf16.msra.mxu0 %v2073
    %2924 = vmatprep.subr.bf16.mxu0 %v2076
    %2925 = vmatpush1.bf16.msra.mxu0 %v2075
    %2926 = vmatprep.subr.bf16.mxu0 %v2078
    %2927 = vmatpush1.bf16.msra.mxu0 %v2077
    %2928 = vmatprep.subr.bf16.mxu0 %v2080
    %2929 = vmatpush1.bf16.msra.mxu0 %v2079
    %2930 = vmatprep.subr.bf16.mxu0 %v2082
    %2931 = vmatpush1.bf16.msra.mxu0 %v2081
    %2932 = vmatprep.subr.bf16.mxu0 %v2084
    %2933 = vmatpush1.bf16.msra.mxu0 %v2083
    %2934 = vmatprep.mubr.bf16.mxu0 %v587
    %2935 = vmatmul.mubr.bf16.gmra.mrb[0].mxu0 %v585
    %v2936 = vpop.f32.mrb[0].mxu0
    %v2937 = vadd.f32 %v2896, %v2936
    %v2938 = vpop.f32.mrb[0].mxu0
    %v2939 = vadd.f32 %v2898, %v2938
    %v2940 = vpop.f32.mrb[0].mxu0
    %v2941 = vpop.f32.mrb[0].mxu0
    %2942 = vdwg.mxu0
    %2943 = vmatprep.subr.bf16.mxu0 %v2086
    %2944 = vmatpush1.bf16.msra.mxu0 %v2085
    %2945 = vmatprep.subr.bf16.mxu0 %v2088
    %2946 = vmatpush1.bf16.msra.mxu0 %v2087
    %2947 = vmatprep.subr.bf16.mxu0 %v2090
    %2948 = vmatpush1.bf16.msra.mxu0 %v2089
    %2949 = vmatprep.subr.bf16.mxu0 %v2092
    %2950 = vmatpush1.bf16.msra.mxu0 %v2091
    %2951 = vmatprep.subr.bf16.mxu0 %v2094
    %2952 = vmatpush1.bf16.msra.mxu0 %v2093
    %2953 = vmatprep.subr.bf16.mxu0 %v2096
    %2954 = vmatpush1.bf16.msra.mxu0 %v2095
    %2955 = vmatprep.subr.bf16.mxu0 %v2098
    %2956 = vmatpush1.bf16.msra.mxu0 %v2097
    %2957 = vmatprep.subr.bf16.mxu0 %v2100
    %2958 = vmatpush1.bf16.msra.mxu0 %v2099
    %2959 = vmatprep.subr.bf16.mxu0 %v2102
    %2960 = vmatpush1.bf16.msra.mxu0 %v2101
    %2961 = vmatprep.subr.bf16.mxu0 %v2104
    %2962 = vmatpush1.bf16.msra.mxu0 %v2103
    %2963 = vmatprep.subr.bf16.mxu0 %v2106
    %2964 = vmatpush1.bf16.msra.mxu0 %v2105
    %2965 = vmatprep.subr.bf16.mxu0 %v2108
    %2966 = vmatpush1.bf16.msra.mxu0 %v2107
    %2967 = vmatprep.subr.bf16.mxu0 %v2110
    %2968 = vmatpush1.bf16.msra.mxu0 %v2109
    %2969 = vmatprep.subr.bf16.mxu0 %v2112
    %2970 = vmatpush1.bf16.msra.mxu0 %v2111
    %2971 = vmatprep.subr.bf16.mxu0 %v2114
    %2972 = vmatpush1.bf16.msra.mxu0 %v2113
    %2973 = vmatprep.subr.bf16.mxu0 %v2116
    %2974 = vmatpush1.bf16.msra.mxu0 %v2115
    %2975 = vmatprep.mubr.bf16.mxu0 %v584
    %2976 = vmatmul.mubr.bf16.gmra.mrb[0].mxu0 %v570
    %v2977 = vpop.f32.mrb[0].mxu0
    %v2978 = vadd.f32 %v2937, %v2977
    %v2979 = vpop.f32.mrb[0].mxu0
    %v2980 = vadd.f32 %v2939, %v2979
    %v2981 = vpop.f32.mrb[0].mxu0
    %v2982 = vpop.f32.mrb[0].mxu0
    %2983 = vdwg.mxu0
    %2984 = vmatprep.subr.bf16.mxu0 %v2118
    %2985 = vmatpush1.bf16.msra.mxu0 %v2117
    %2986 = vmatprep.subr.bf16.mxu0 %v2120
    %2987 = vmatpush1.bf16.msra.mxu0 %v2119
    %2988 = vmatprep.subr.bf16.mxu0 %v2122
    %2989 = vmatpush1.bf16.msra.mxu0 %v2121
    %2990 = vmatprep.subr.bf16.mxu0 %v2124
    %2991 = vmatpush1.bf16.msra.mxu0 %v2123
    %2992 = vmatprep.subr.bf16.mxu0 %v2126
    %2993 = vmatpush1.bf16.msra.mxu0 %v2125
    %2994 = vmatprep.subr.bf16.mxu0 %v2128
    %2995 = vmatpush1.bf16.msra.mxu0 %v2127
    %2996 = vmatprep.subr.bf16.mxu0 %v2130
    %2997 = vmatpush1.bf16.msra.mxu0 %v2129
    %2998 = vmatprep.subr.bf16.mxu0 %v2132
    %2999 = vmatpush1.bf16.msra.mxu0 %v2131
    %3000 = vmatprep.subr.bf16.mxu0 %v2134
    %3001 = vmatpush1.bf16.msra.mxu0 %v2133
    %3002 = vmatprep.subr.bf16.mxu0 %v2136
    %3003 = vmatpush1.bf16.msra.mxu0 %v2135
    %3004 = vmatprep.subr.bf16.mxu0 %v2138
    %3005 = vmatpush1.bf16.msra.mxu0 %v2137
    %3006 = vmatprep.subr.bf16.mxu0 %v2140
    %3007 = vmatpush1.bf16.msra.mxu0 %v2139
    %3008 = vmatprep.subr.bf16.mxu0 %v2142
    %3009 = vmatpush1.bf16.msra.mxu0 %v2141
    %3010 = vmatprep.subr.bf16.mxu0 %v2144
    %3011 = vmatpush1.bf16.msra.mxu0 %v2143
    %3012 = vmatprep.subr.bf16.mxu0 %v2146
    %3013 = vmatpush1.bf16.msra.mxu0 %v2145
    %3014 = vmatprep.subr.bf16.mxu0 %v2148
    %3015 = vmatpush1.bf16.msra.mxu0 %v2147
    %3016 = vmatprep.mubr.bf16.mxu0 %v588
    %3017 = vmatmul.mubr.bf16.gmra.mrb[0].mxu0 %v586
    %v3018 = vpop.f32.mrb[0].mxu0
    %v3019 = vadd.f32 %v2978, %v3018
    %v3020 = vpop.f32.mrb[0].mxu0
    %v3021 = vadd.f32 %v2980, %v3020
    %v3022 = vpop.f32.mrb[0].mxu0
    %v3023 = vpop.f32.mrb[0].mxu0
    %3024 = vdwg.mxu0
    %v3025 = vpack.c.bf16 %v3019, %v3019
    %v3026 = vpack.c.bf16 %v3021, %v3021
    %v3027 = vld [vmem:[%s3] sm:$0xff]
    %v3028 = vld [vmem:[%s3 + $0x8] sm:$0xff]
    %v3029 = vld [vmem:[%s3 + $0x10] sm:$0xff]
    %v3030 = vld [vmem:[%s3 + $0x18] sm:$0xff]
    %v3031 = vld [vmem:[%s3 + $0x20] sm:$0xff]
    %v3032 = vld [vmem:[%s3 + $0x28] sm:$0xff]
    %v3033 = vld [vmem:[%s3 + $0x30] sm:$0xff]
    %v3034 = vld [vmem:[%s3 + $0x38] sm:$0xff]
    %v3035 = vld [vmem:[%s3 + $0x40] sm:$0xff]
    %v3036 = vld [vmem:[%s3 + $0x48] sm:$0xff]
    %v3037 = vld [vmem:[%s3 + $0x50] sm:$0xff]
    %v3038 = vld [vmem:[%s3 + $0x58] sm:$0xff]
    %v3039 = vld [vmem:[%s3 + $0x60] sm:$0xff]
    %v3040 = vld [vmem:[%s3 + $0x68] sm:$0xff]
    %v3041 = vld [vmem:[%s3 + $0x70] sm:$0xff]
    %v3042 = vld [vmem:[%s3 + $0x78] sm:$0xff]
    %v3043 = vld [vmem:[%s3 + $0x80] sm:$0xff]
    %v3044 = vld [vmem:[%s3 + $0x88] sm:$0xff]
    %v3045 = vld [vmem:[%s3 + $0x90] sm:$0xff]
    %v3046 = vld [vmem:[%s3 + $0x98] sm:$0xff]
    %v3047 = vld [vmem:[%s3 + $0xa0] sm:$0xff]
    %v3048 = vld [vmem:[%s3 + $0xa8] sm:$0xff]
    %v3049 = vld [vmem:[%s3 + $0xb0] sm:$0xff]
    %v3050 = vld [vmem:[%s3 + $0xb8] sm:$0xff]
    %v3051 = vld [vmem:[%s3 + $0xc0] sm:$0xff]
    %v3052 = vld [vmem:[%s3 + $0xc8] sm:$0xff]
    %v3053 = vld [vmem:[%s3 + $0xd0] sm:$0xff]
    %v3054 = vld [vmem:[%s3 + $0xd8] sm:$0xff]
    %v3055 = vld [vmem:[%s3 + $0xe0] sm:$0xff]
    %v3056 = vld [vmem:[%s3 + $0xe8] sm:$0xff]
    %v3057 = vld [vmem:[%s3 + $0xf0] sm:$0xff]
    %v3058 = vld [vmem:[%s3 + $0xf8] sm:$0xff]
    %v3059 = vld [vmem:[%s3 + $0x100] sm:$0xff]
    %v3060 = vld [vmem:[%s3 + $0x108] sm:$0xff]
    %v3061 = vld [vmem:[%s3 + $0x110] sm:$0xff]
    %v3062 = vld [vmem:[%s3 + $0x118] sm:$0xff]
    %v3063 = vld [vmem:[%s3 + $0x120] sm:$0xff]
    %v3064 = vld [vmem:[%s3 + $0x128] sm:$0xff]
    %v3065 = vld [vmem:[%s3 + $0x130] sm:$0xff]
    %v3066 = vld [vmem:[%s3 + $0x138] sm:$0xff]
    %v3067 = vld [vmem:[%s3 + $0x140] sm:$0xff]
    %v3068 = vld [vmem:[%s3 + $0x148] sm:$0xff]
    %v3069 = vld [vmem:[%s3 + $0x150] sm:$0xff]
    %v3070 = vld [vmem:[%s3 + $0x158] sm:$0xff]
    %v3071 = vld [vmem:[%s3 + $0x160] sm:$0xff]
    %v3072 = vld [vmem:[%s3 + $0x168] sm:$0xff]
    %v3073 = vld [vmem:[%s3 + $0x170] sm:$0xff]
    %v3074 = vld [vmem:[%s3 + $0x178] sm:$0xff]
    %v3075 = vld [vmem:[%s3 + $0x180] sm:$0xff]
    %v3076 = vld [vmem:[%s3 + $0x188] sm:$0xff]
    %v3077 = vld [vmem:[%s3 + $0x190] sm:$0xff]
    %v3078 = vld [vmem:[%s3 + $0x198] sm:$0xff]
    %v3079 = vld [vmem:[%s3 + $0x1a0] sm:$0xff]
    %v3080 = vld [vmem:[%s3 + $0x1a8] sm:$0xff]
    %v3081 = vld [vmem:[%s3 + $0x1b0] sm:$0xff]
    %v3082 = vld [vmem:[%s3 + $0x1b8] sm:$0xff]
    %v3083 = vld [vmem:[%s3 + $0x1c0] sm:$0xff]
    %v3084 = vld [vmem:[%s3 + $0x1c8] sm:$0xff]
    %v3085 = vld [vmem:[%s3 + $0x1d0] sm:$0xff]
    %v3086 = vld [vmem:[%s3 + $0x1d8] sm:$0xff]
    %v3087 = vld [vmem:[%s3 + $0x1e0] sm:$0xff]
    %v3088 = vld [vmem:[%s3 + $0x1e8] sm:$0xff]
    %v3089 = vld [vmem:[%s3 + $0x1f0] sm:$0xff]
    %v3090 = vld [vmem:[%s3 + $0x1f8] sm:$0xff]
    %v3091 = vld [vmem:[%s4] sm:$0xf]
    %v3093 = vlaneseq
    %v3094 = vshrl.u32 %v3093, 7
    %v3095 = vsub.s32 0, %v3094
    %v3096 = vrot.slane %v3091, %v3095
    %v3097 = vlaneseq
    %v3098 = vshrl.u32 %v3097, 7
    %v3099 = vsub.s32 1, %v3098
    %v3100 = vrot.slane %v3091, %v3099
    %v3101 = vlaneseq
    %v3102 = vshrl.u32 %v3101, 7
    %v3103 = vsub.s32 2, %v3102
    %v3104 = vrot.slane %v3091, %v3103
    %v3105 = vlaneseq
    %v3106 = vshrl.u32 %v3105, 7
    %v3107 = vsub.s32 3, %v3106
    %v3108 = vrot.slane %v3091, %v3107
    %v3177 = vunpack.c.l.b16 %v3027
    %v3178 = vunpack.c.h.b16 %v3027
    %v3179 = vunpack.c.l.b16 %v3028
    %v3180 = vunpack.c.h.b16 %v3028
    %v3181 = vunpack.c.l.b16 %v3029
    %v3182 = vunpack.c.h.b16 %v3029
    %v3183 = vunpack.c.l.b16 %v3030
    %v3184 = vunpack.c.h.b16 %v3030
    %v3185 = vunpack.c.l.b16 %v3031
    %v3186 = vunpack.c.h.b16 %v3031
    %v3187 = vunpack.c.l.b16 %v3032
    %v3188 = vunpack.c.h.b16 %v3032
    %v3189 = vunpack.c.l.b16 %v3033
    %v3190 = vunpack.c.h.b16 %v3033
    %v3191 = vunpack.c.l.b16 %v3034
    %v3192 = vunpack.c.h.b16 %v3034
    %v3193 = vunpack.c.l.b16 %v3035
    %v3194 = vunpack.c.h.b16 %v3035
    %v3195 = vunpack.c.l.b16 %v3036
    %v3196 = vunpack.c.h.b16 %v3036
    %v3197 = vunpack.c.l.b16 %v3037
    %v3198 = vunpack.c.h.b16 %v3037
    %v3199 = vunpack.c.l.b16 %v3038
    %v3200 = vunpack.c.h.b16 %v3038
    %v3201 = vunpack.c.l.b16 %v3039
    %v3202 = vunpack.c.h.b16 %v3039
    %v3203 = vunpack.c.l.b16 %v3040
    %v3204 = vunpack.c.h.b16 %v3040
    %v3205 = vunpack.c.l.b16 %v3041
    %v3206 = vunpack.c.h.b16 %v3041
    %v3207 = vunpack.c.l.b16 %v3042
    %v3208 = vunpack.c.h.b16 %v3042
    %v3209 = vunpack.c.l.b16 %v3043
    %v3210 = vunpack.c.h.b16 %v3043
    %v3211 = vunpack.c.l.b16 %v3044
    %v3212 = vunpack.c.h.b16 %v3044
    %v3213 = vunpack.c.l.b16 %v3045
    %v3214 = vunpack.c.h.b16 %v3045
    %v3215 = vunpack.c.l.b16 %v3046
    %v3216 = vunpack.c.h.b16 %v3046
    %v3217 = vunpack.c.l.b16 %v3047
    %v3218 = vunpack.c.h.b16 %v3047
    %v3219 = vunpack.c.l.b16 %v3048
    %v3220 = vunpack.c.h.b16 %v3048
    %v3221 = vunpack.c.l.b16 %v3049
    %v3222 = vunpack.c.h.b16 %v3049
    %v3223 = vunpack.c.l.b16 %v3050
    %v3224 = vunpack.c.h.b16 %v3050
    %v3225 = vunpack.c.l.b16 %v3051
    %v3226 = vunpack.c.h.b16 %v3051
    %v3227 = vunpack.c.l.b16 %v3052
    %v3228 = vunpack.c.h.b16 %v3052
    %v3229 = vunpack.c.l.b16 %v3053
    %v3230 = vunpack.c.h.b16 %v3053
    %v3231 = vunpack.c.l.b16 %v3054
    %v3232 = vunpack.c.h.b16 %v3054
    %v3233 = vunpack.c.l.b16 %v3055
    %v3234 = vunpack.c.h.b16 %v3055
    %v3235 = vunpack.c.l.b16 %v3056
    %v3236 = vunpack.c.h.b16 %v3056
    %v3237 = vunpack.c.l.b16 %v3057
    %v3238 = vunpack.c.h.b16 %v3057
    %v3239 = vunpack.c.l.b16 %v3058
    %v3240 = vunpack.c.h.b16 %v3058
    %v3241 = vunpack.c.l.b16 %v3059
    %v3242 = vunpack.c.h.b16 %v3059
    %v3243 = vunpack.c.l.b16 %v3060
    %v3244 = vunpack.c.h.b16 %v3060
    %v3245 = vunpack.c.l.b16 %v3061
    %v3246 = vunpack.c.h.b16 %v3061
    %v3247 = vunpack.c.l.b16 %v3062
    %v3248 = vunpack.c.h.b16 %v3062
    %v3249 = vunpack.c.l.b16 %v3063
    %v3250 = vunpack.c.h.b16 %v3063
    %v3251 = vunpack.c.l.b16 %v3064
    %v3252 = vunpack.c.h.b16 %v3064
    %v3253 = vunpack.c.l.b16 %v3065
    %v3254 = vunpack.c.h.b16 %v3065
    %v3255 = vunpack.c.l.b16 %v3066
    %v3256 = vunpack.c.h.b16 %v3066
    %v3257 = vunpack.c.l.b16 %v3067
    %v3258 = vunpack.c.h.b16 %v3067
    %v3259 = vunpack.c.l.b16 %v3068
    %v3260 = vunpack.c.h.b16 %v3068
    %v3261 = vunpack.c.l.b16 %v3069
    %v3262 = vunpack.c.h.b16 %v3069
    %v3263 = vunpack.c.l.b16 %v3070
    %v3264 = vunpack.c.h.b16 %v3070
    %v3265 = vunpack.c.l.b16 %v3071
    %v3266 = vunpack.c.h.b16 %v3071
    %v3267 = vunpack.c.l.b16 %v3072
    %v3268 = vunpack.c.h.b16 %v3072
    %v3269 = vunpack.c.l.b16 %v3073
    %v3270 = vunpack.c.h.b16 %v3073
    %v3271 = vunpack.c.l.b16 %v3074
    %v3272 = vunpack.c.h.b16 %v3074
    %v3273 = vunpack.c.l.b16 %v3075
    %v3274 = vunpack.c.h.b16 %v3075
    %v3275 = vunpack.c.l.b16 %v3076
    %v3276 = vunpack.c.h.b16 %v3076
    %v3277 = vunpack.c.l.b16 %v3077
    %v3278 = vunpack.c.h.b16 %v3077
    %v3279 = vunpack.c.l.b16 %v3078
    %v3280 = vunpack.c.h.b16 %v3078
    %v3281 = vunpack.c.l.b16 %v3079
    %v3282 = vunpack.c.h.b16 %v3079
    %v3283 = vunpack.c.l.b16 %v3080
    %v3284 = vunpack.c.h.b16 %v3080
    %v3285 = vunpack.c.l.b16 %v3081
    %v3286 = vunpack.c.h.b16 %v3081
    %v3287 = vunpack.c.l.b16 %v3082
    %v3288 = vunpack.c.h.b16 %v3082
    %v3289 = vunpack.c.l.b16 %v3083
    %v3290 = vunpack.c.h.b16 %v3083
    %v3291 = vunpack.c.l.b16 %v3084
    %v3292 = vunpack.c.h.b16 %v3084
    %v3293 = vunpack.c.l.b16 %v3085
    %v3294 = vunpack.c.h.b16 %v3085
    %v3295 = vunpack.c.l.b16 %v3086
    %v3296 = vunpack.c.h.b16 %v3086
    %v3297 = vunpack.c.l.b16 %v3087
    %v3298 = vunpack.c.h.b16 %v3087
    %v3299 = vunpack.c.l.b16 %v3088
    %v3300 = vunpack.c.h.b16 %v3088
    %v3301 = vunpack.c.l.b16 %v3089
    %v3302 = vunpack.c.h.b16 %v3089
    %v3303 = vunpack.c.l.b16 %v3090
    %v3304 = vunpack.c.h.b16 %v3090
    %v3305 = vpack.c.b16 %v3181, %v3177
    %v3306 = vpack.c.b16 %v3182, %v3178
    %v3307 = vpack.c.b16 %v3183, %v3179
    %v3308 = vpack.c.b16 %v3184, %v3180
    %v3309 = vpack.c.b16 %v3189, %v3185
    %v3310 = vpack.c.b16 %v3190, %v3186
    %v3311 = vpack.c.b16 %v3191, %v3187
    %v3312 = vpack.c.b16 %v3192, %v3188
    %v3313 = vpack.c.b16 %v3197, %v3193
    %v3314 = vpack.c.b16 %v3198, %v3194
    %v3315 = vpack.c.b16 %v3199, %v3195
    %v3316 = vpack.c.b16 %v3200, %v3196
    %v3317 = vpack.c.b16 %v3205, %v3201
    %v3318 = vpack.c.b16 %v3206, %v3202
    %v3319 = vpack.c.b16 %v3207, %v3203
    %v3320 = vpack.c.b16 %v3208, %v3204
    %v3321 = vpack.c.b16 %v3213, %v3209
    %v3322 = vpack.c.b16 %v3214, %v3210
    %v3323 = vpack.c.b16 %v3215, %v3211
    %v3324 = vpack.c.b16 %v3216, %v3212
    %v3325 = vpack.c.b16 %v3221, %v3217
    %v3326 = vpack.c.b16 %v3222, %v3218
    %v3327 = vpack.c.b16 %v3223, %v3219
    %v3328 = vpack.c.b16 %v3224, %v3220
    %v3329 = vpack.c.b16 %v3229, %v3225
    %v3330 = vpack.c.b16 %v3230, %v3226
    %v3331 = vpack.c.b16 %v3231, %v3227
    %v3332 = vpack.c.b16 %v3232, %v3228
    %v3333 = vpack.c.b16 %v3237, %v3233
    %v3334 = vpack.c.b16 %v3238, %v3234
    %v3335 = vpack.c.b16 %v3239, %v3235
    %v3336 = vpack.c.b16 %v3240, %v3236
    %v3337 = vpack.c.b16 %v3245, %v3241
    %v3338 = vpack.c.b16 %v3246, %v3242
    %v3339 = vpack.c.b16 %v3247, %v3243
    %v3340 = vpack.c.b16 %v3248, %v3244
    %v3341 = vpack.c.b16 %v3253, %v3249
    %v3342 = vpack.c.b16 %v3254, %v3250
    %v3343 = vpack.c.b16 %v3255, %v3251
    %v3344 = vpack.c.b16 %v3256, %v3252
    %v3345 = vpack.c.b16 %v3261, %v3257
    %v3346 = vpack.c.b16 %v3262, %v3258
    %v3347 = vpack.c.b16 %v3263, %v3259
    %v3348 = vpack.c.b16 %v3264, %v3260
    %v3349 = vpack.c.b16 %v3269, %v3265
    %v3350 = vpack.c.b16 %v3270, %v3266
    %v3351 = vpack.c.b16 %v3271, %v3267
    %v3352 = vpack.c.b16 %v3272, %v3268
    %v3353 = vpack.c.b16 %v3277, %v3273
    %v3354 = vpack.c.b16 %v3278, %v3274
    %v3355 = vpack.c.b16 %v3279, %v3275
    %v3356 = vpack.c.b16 %v3280, %v3276
    %v3357 = vpack.c.b16 %v3285, %v3281
    %v3358 = vpack.c.b16 %v3286, %v3282
    %v3359 = vpack.c.b16 %v3287, %v3283
    %v3360 = vpack.c.b16 %v3288, %v3284
    %v3361 = vpack.c.b16 %v3293, %v3289
    %v3362 = vpack.c.b16 %v3294, %v3290
    %v3363 = vpack.c.b16 %v3295, %v3291
    %v3364 = vpack.c.b16 %v3296, %v3292
    %v3365 = vpack.c.b16 %v3301, %v3297
    %v3366 = vpack.c.b16 %v3302, %v3298
    %v3367 = vpack.c.b16 %v3303, %v3299
    %v3368 = vpack.c.b16 %v3304, %v3300
    %3433 = vmatprep.subr.bf16.mxu0 %v3306
    %3434 = vmatpush1.bf16.msra.mxu0 %v3305
    %3435 = vmatprep.subr.bf16.mxu0 %v3310
    %3436 = vmatpush1.bf16.msra.mxu0 %v3309
    %3437 = vmatprep.subr.bf16.mxu0 %v3314
    %3438 = vmatpush1.bf16.msra.mxu0 %v3313
    %3439 = vmatprep.subr.bf16.mxu0 %v3318
    %3440 = vmatpush1.bf16.msra.mxu0 %v3317
    %3441 = vmatprep.subr.bf16.mxu0 %v3322
    %3442 = vmatpush1.bf16.msra.mxu0 %v3321
    %3443 = vmatprep.subr.bf16.mxu0 %v3326
    %3444 = vmatpush1.bf16.msra.mxu0 %v3325
    %3445 = vmatprep.subr.bf16.mxu0 %v3330
    %3446 = vmatpush1.bf16.msra.mxu0 %v3329
    %3447 = vmatprep.subr.bf16.mxu0 %v3334
    %3448 = vmatpush1.bf16.msra.mxu0 %v3333
    %3449 = vmatprep.subr.bf16.mxu0 %v3338
    %3450 = vmatpush1.bf16.msra.mxu0 %v3337
    %3451 = vmatprep.subr.bf16.mxu0 %v3342
    %3452 = vmatpush1.bf16.msra.mxu0 %v3341
    %3453 = vmatprep.subr.bf16.mxu0 %v3346
    %3454 = vmatpush1.bf16.msra.mxu0 %v3345
    %3455 = vmatprep.subr.bf16.mxu0 %v3350
    %3456 = vmatpush1.bf16.msra.mxu0 %v3349
    %3457 = vmatprep.subr.bf16.mxu0 %v3354
    %3458 = vmatpush1.bf16.msra.mxu0 %v3353
    %3459 = vmatprep.subr.bf16.mxu0 %v3358
    %3460 = vmatpush1.bf16.msra.mxu0 %v3357
    %3461 = vmatprep.subr.bf16.mxu0 %v3362
    %3462 = vmatpush1.bf16.msra.mxu0 %v3361
    %3463 = vmatprep.subr.bf16.mxu0 %v3366
    %3464 = vmatpush1.bf16.msra.mxu0 %v3365
    %3465 = vmatprep.mubr.bf16.mxu0 %v3026
    %3466 = vmatmul.mubr.bf16.gmra.mrb[0].mxu0 %v3025
    %v3467 = vpop.f32.mrb[0].mxu0
    %v3468 = vadd.f32 %v3096, %v3467
    %v3469 = vpop.f32.mrb[0].mxu0
    %v3470 = vadd.f32 %v3100, %v3469
    %v3471 = vpop.f32.mrb[0].mxu0
    %v3472 = vpop.f32.mrb[0].mxu0
    %3473 = vdwg.mxu0
    %3474 = vmatprep.subr.bf16.mxu0 %v3308
    %3475 = vmatpush1.bf16.msra.mxu0 %v3307
    %3476 = vmatprep.subr.bf16.mxu0 %v3312
    %3477 = vmatpush1.bf16.msra.mxu0 %v3311
    %3478 = vmatprep.subr.bf16.mxu0 %v3316
    %3479 = vmatpush1.bf16.msra.mxu0 %v3315
    %3480 = vmatprep.subr.bf16.mxu0 %v3320
    %3481 = vmatpush1.bf16.msra.mxu0 %v3319
    %3482 = vmatprep.subr.bf16.mxu0 %v3324
    %3483 = vmatpush1.bf16.msra.mxu0 %v3323
    %3484 = vmatprep.subr.bf16.mxu0 %v3328
    %3485 = vmatpush1.bf16.msra.mxu0 %v3327
    %3486 = vmatprep.subr.bf16.mxu0 %v3332
    %3487 = vmatpush1.bf16.msra.mxu0 %v3331
    %3488 = vmatprep.subr.bf16.mxu0 %v3336
    %3489 = vmatpush1.bf16.msra.mxu0 %v3335
    %3490 = vmatprep.subr.bf16.mxu0 %v3340
    %3491 = vmatpush1.bf16.msra.mxu0 %v3339
    %3492 = vmatprep.subr.bf16.mxu0 %v3344
    %3493 = vmatpush1.bf16.msra.mxu0 %v3343
    %3494 = vmatprep.subr.bf16.mxu0 %v3348
    %3495 = vmatpush1.bf16.msra.mxu0 %v3347
    %3496 = vmatprep.subr.bf16.mxu0 %v3352
    %3497 = vmatpush1.bf16.msra.mxu0 %v3351
    %3498 = vmatprep.subr.bf16.mxu0 %v3356
    %3499 = vmatpush1.bf16.msra.mxu0 %v3355
    %3500 = vmatprep.subr.bf16.mxu0 %v3360
    %3501 = vmatpush1.bf16.msra.mxu0 %v3359
    %3502 = vmatprep.subr.bf16.mxu0 %v3364
    %3503 = vmatpush1.bf16.msra.mxu0 %v3363
    %3504 = vmatprep.subr.bf16.mxu0 %v3368
    %3505 = vmatpush1.bf16.msra.mxu0 %v3367
    %3506 = vmatprep.mubr.bf16.mxu0 %v3026
    %3507 = vmatmul.mubr.bf16.gmra.mrb[0].mxu0 %v3025
    %v3508 = vpop.f32.mrb[0].mxu0
    %v3509 = vadd.f32 %v3104, %v3508
    %v3510 = vpop.f32.mrb[0].mxu0
    %v3511 = vadd.f32 %v3108, %v3510
    %v3512 = vpop.f32.mrb[0].mxu0
    %v3513 = vpop.f32.mrb[0].mxu0
    %3514 = vdwg.mxu0
    %v3515 = vmul.f32 %v3468, %v3468
    %v3516 = vmul.f32 %v3470, %v3470
    %v3517 = vmul.f32 %v3509, %v3509
    %v3518 = vmul.f32 %v3511, %v3511
    %vm3519 = vcmask 1041408
    %v3520 = vsel %vm3519, %v3515, 0.0
    %v3521 = vsel %vm3519, %v3516, 0.0
    %v3522 = vadd.f32 %v3520, %v3521
    %v3523 = vsel %vm3519, %v3517, 0.0
    %v3524 = vadd.f32 %v3522, %v3523
    %v3525 = vsel %vm3519, %v3518, 0.0
    %v3526 = vadd.f32 %v3524, %v3525
    %3527 = vadd.xlane.f32.xlu0 %v3526
    %v3528 = vpop.xlane.xlu0 %3527
    %v3529 = vadd.f32 %v3528, 1e-12
    %v3530 = vrsqrt.pop %v3529
    %v3531 = vmul.f32 %v3468, %v3530
    %v3532 = vmul.f32 %v3470, %v3530
    %v3533 = vmul.f32 %v3509, %v3530
    %v3534 = vmul.f32 %v3511, %v3530
    %v3535 = vpack.c.bf16 %v3531, %v3531
    %v3536 = vpack.c.bf16 %v3532, %v3532
    %v3537 = vpack.c.bf16 %v3533, %v3533
    %v3538 = vpack.c.bf16 %v3534, %v3534
    %v3539 = vld [vmem:[%s5] sm:$0xf]
    %v3540 = vld [vmem:[%s5 + $0x4] sm:$0xf]
    %v3541 = vld [vmem:[%s5 + $0x8] sm:$0xf]
    %v3542 = vld [vmem:[%s5 + $0xc] sm:$0xf]
    %v3543 = vld [vmem:[%s5 + $0x10] sm:$0xf]
    %v3544 = vld [vmem:[%s5 + $0x14] sm:$0xf]
    %v3545 = vld [vmem:[%s5 + $0x18] sm:$0xf]
    %v3546 = vld [vmem:[%s5 + $0x1c] sm:$0xf]
    %v3547 = vld [vmem:[%s5 + $0x20] sm:$0xf]
    %v3548 = vld [vmem:[%s5 + $0x24] sm:$0xf]
    %v3549 = vld [vmem:[%s5 + $0x28] sm:$0xf]
    %v3550 = vld [vmem:[%s5 + $0x2c] sm:$0xf]
    %v3551 = vld [vmem:[%s5 + $0x30] sm:$0xf]
    %v3552 = vld [vmem:[%s5 + $0x34] sm:$0xf]
    %v3553 = vld [vmem:[%s5 + $0x38] sm:$0xf]
    %v3554 = vld [vmem:[%s5 + $0x3c] sm:$0xf]
    %v3555 = vld [vmem:[%s5 + $0x40] sm:$0xf]
    %v3556 = vld [vmem:[%s5 + $0x44] sm:$0xf]
    %v3557 = vld [vmem:[%s5 + $0x48] sm:$0xf]
    %v3558 = vld [vmem:[%s5 + $0x4c] sm:$0xf]
    %v3559 = vld [vmem:[%s5 + $0x50] sm:$0xf]
    %v3560 = vld [vmem:[%s5 + $0x54] sm:$0xf]
    %v3561 = vld [vmem:[%s5 + $0x58] sm:$0xf]
    %v3562 = vld [vmem:[%s5 + $0x5c] sm:$0xf]
    %v3563 = vld [vmem:[%s5 + $0x60] sm:$0xf]
    %v3564 = vld [vmem:[%s5 + $0x64] sm:$0xf]
    %v3565 = vld [vmem:[%s5 + $0x68] sm:$0xf]
    %v3566 = vld [vmem:[%s5 + $0x6c] sm:$0xf]
    %v3567 = vld [vmem:[%s5 + $0x70] sm:$0xf]
    %v3568 = vld [vmem:[%s5 + $0x74] sm:$0xf]
    %v3569 = vld [vmem:[%s5 + $0x78] sm:$0xf]
    %v3570 = vld [vmem:[%s5 + $0x7c] sm:$0xf]
    %v3571 = vld [vmem:[%s5 + $0x80] sm:$0xf]
    %v3572 = vld [vmem:[%s5 + $0x84] sm:$0xf]
    %v3573 = vld [vmem:[%s5 + $0x88] sm:$0xf]
    %v3574 = vld [vmem:[%s5 + $0x8c] sm:$0xf]
    %v3575 = vld [vmem:[%s5 + $0x90] sm:$0xf]
    %v3576 = vld [vmem:[%s5 + $0x94] sm:$0xf]
    %v3577 = vld [vmem:[%s5 + $0x98] sm:$0xf]
    %v3578 = vld [vmem:[%s5 + $0x9c] sm:$0xf]
    %v3579 = vld [vmem:[%s5 + $0xa0] sm:$0xf]
    %v3580 = vld [vmem:[%s5 + $0xa4] sm:$0xf]
    %v3581 = vld [vmem:[%s5 + $0xa8] sm:$0xf]
    %v3582 = vld [vmem:[%s5 + $0xac] sm:$0xf]
    %v3583 = vld [vmem:[%s5 + $0xb0] sm:$0xf]
    %v3584 = vld [vmem:[%s5 + $0xb4] sm:$0xf]
    %v3585 = vld [vmem:[%s5 + $0xb8] sm:$0xf]
    %v3586 = vld [vmem:[%s5 + $0xbc] sm:$0xf]
    %v3587 = vld [vmem:[%s5 + $0xc0] sm:$0xf]
    %v3588 = vld [vmem:[%s5 + $0xc4] sm:$0xf]
    %v3589 = vld [vmem:[%s5 + $0xc8] sm:$0xf]
    %v3590 = vld [vmem:[%s5 + $0xcc] sm:$0xf]
    %v3591 = vld [vmem:[%s5 + $0xd0] sm:$0xf]
    %v3592 = vld [vmem:[%s5 + $0xd4] sm:$0xf]
    %v3593 = vld [vmem:[%s5 + $0xd8] sm:$0xf]
    %v3594 = vld [vmem:[%s5 + $0xdc] sm:$0xf]
    %v3595 = vld [vmem:[%s5 + $0xe0] sm:$0xf]
    %v3596 = vld [vmem:[%s5 + $0xe4] sm:$0xf]
    %v3597 = vld [vmem:[%s5 + $0xe8] sm:$0xf]
    %v3598 = vld [vmem:[%s5 + $0xec] sm:$0xf]
    %v3599 = vld [vmem:[%s5 + $0xf0] sm:$0xf]
    %v3600 = vld [vmem:[%s5 + $0xf4] sm:$0xf]
    %v3601 = vld [vmem:[%s5 + $0xf8] sm:$0xf]
    %v3602 = vld [vmem:[%s5 + $0xfc] sm:$0xf]
    %v3603 = vld [vmem:[%s6] sm:$0x1]
    %v3605 = vlaneseq
    %v3606 = vshrl.u32 %v3605, 7
    %v3607 = vsub.s32 0, %v3606
    %v3608 = vrot.slane %v3603, %v3607
    %v3674 = vunpack.c.l.b16 %v3539
    %v3675 = vunpack.c.l.b16 %v3540
    %v3676 = vunpack.c.l.b16 %v3541
    %v3677 = vunpack.c.l.b16 %v3542
    %v3678 = vunpack.c.l.b16 %v3543
    %v3679 = vunpack.c.l.b16 %v3544
    %v3680 = vunpack.c.l.b16 %v3545
    %v3681 = vunpack.c.l.b16 %v3546
    %v3682 = vunpack.c.l.b16 %v3547
    %v3683 = vunpack.c.l.b16 %v3548
    %v3684 = vunpack.c.l.b16 %v3549
    %v3685 = vunpack.c.l.b16 %v3550
    %v3686 = vunpack.c.l.b16 %v3551
    %v3687 = vunpack.c.l.b16 %v3552
    %v3688 = vunpack.c.l.b16 %v3553
    %v3689 = vunpack.c.l.b16 %v3554
    %v3690 = vunpack.c.l.b16 %v3555
    %v3691 = vunpack.c.l.b16 %v3556
    %v3692 = vunpack.c.l.b16 %v3557
    %v3693 = vunpack.c.l.b16 %v3558
    %v3694 = vunpack.c.l.b16 %v3559
    %v3695 = vunpack.c.l.b16 %v3560
    %v3696 = vunpack.c.l.b16 %v3561
    %v3697 = vunpack.c.l.b16 %v3562
    %v3698 = vunpack.c.l.b16 %v3563
    %v3699 = vunpack.c.l.b16 %v3564
    %v3700 = vunpack.c.l.b16 %v3565
    %v3701 = vunpack.c.l.b16 %v3566
    %v3702 = vunpack.c.l.b16 %v3567
    %v3703 = vunpack.c.l.b16 %v3568
    %v3704 = vunpack.c.l.b16 %v3569
    %v3705 = vunpack.c.l.b16 %v3570
    %v3706 = vunpack.c.l.b16 %v3571
    %v3707 = vunpack.c.l.b16 %v3572
    %v3708 = vunpack.c.l.b16 %v3573
    %v3709 = vunpack.c.l.b16 %v3574
    %v3710 = vunpack.c.l.b16 %v3575
    %v3711 = vunpack.c.l.b16 %v3576
    %v3712 = vunpack.c.l.b16 %v3577
    %v3713 = vunpack.c.l.b16 %v3578
    %v3714 = vunpack.c.l.b16 %v3579
    %v3715 = vunpack.c.l.b16 %v3580
    %v3716 = vunpack.c.l.b16 %v3581
    %v3717 = vunpack.c.l.b16 %v3582
    %v3718 = vunpack.c.l.b16 %v3583
    %v3719 = vunpack.c.l.b16 %v3584
    %v3720 = vunpack.c.l.b16 %v3585
    %v3721 = vunpack.c.l.b16 %v3586
    %v3722 = vunpack.c.l.b16 %v3587
    %v3723 = vunpack.c.l.b16 %v3588
    %v3724 = vunpack.c.l.b16 %v3589
    %v3725 = vunpack.c.l.b16 %v3590
    %v3726 = vunpack.c.l.b16 %v3591
    %v3727 = vunpack.c.l.b16 %v3592
    %v3728 = vunpack.c.l.b16 %v3593
    %v3729 = vunpack.c.l.b16 %v3594
    %v3730 = vunpack.c.l.b16 %v3595
    %v3731 = vunpack.c.l.b16 %v3596
    %v3732 = vunpack.c.l.b16 %v3597
    %v3733 = vunpack.c.l.b16 %v3598
    %v3734 = vunpack.c.l.b16 %v3599
    %v3735 = vunpack.c.l.b16 %v3600
    %v3736 = vunpack.c.l.b16 %v3601
    %v3737 = vunpack.c.l.b16 %v3602
    %v3738 = vpack.c.b16 %v3675, %v3674
    %v3739 = vpack.c.b16 %v3677, %v3676
    %v3740 = vpack.c.b16 %v3679, %v3678
    %v3741 = vpack.c.b16 %v3681, %v3680
    %v3742 = vpack.c.b16 %v3683, %v3682
    %v3743 = vpack.c.b16 %v3685, %v3684
    %v3744 = vpack.c.b16 %v3687, %v3686
    %v3745 = vpack.c.b16 %v3689, %v3688
    %v3746 = vpack.c.b16 %v3691, %v3690
    %v3747 = vpack.c.b16 %v3693, %v3692
    %v3748 = vpack.c.b16 %v3695, %v3694
    %v3749 = vpack.c.b16 %v3697, %v3696
    %v3750 = vpack.c.b16 %v3699, %v3698
    %v3751 = vpack.c.b16 %v3701, %v3700
    %v3752 = vpack.c.b16 %v3703, %v3702
    %v3753 = vpack.c.b16 %v3705, %v3704
    %v3754 = vpack.c.b16 %v3707, %v3706
    %v3755 = vpack.c.b16 %v3709, %v3708
    %v3756 = vpack.c.b16 %v3711, %v3710
    %v3757 = vpack.c.b16 %v3713, %v3712
    %v3758 = vpack.c.b16 %v3715, %v3714
    %v3759 = vpack.c.b16 %v3717, %v3716
    %v3760 = vpack.c.b16 %v3719, %v3718
    %v3761 = vpack.c.b16 %v3721, %v3720
    %v3762 = vpack.c.b16 %v3723, %v3722
    %v3763 = vpack.c.b16 %v3725, %v3724
    %v3764 = vpack.c.b16 %v3727, %v3726
    %v3765 = vpack.c.b16 %v3729, %v3728
    %v3766 = vpack.c.b16 %v3731, %v3730
    %v3767 = vpack.c.b16 %v3733, %v3732
    %v3768 = vpack.c.b16 %v3735, %v3734
    %v3769 = vpack.c.b16 %v3737, %v3736
    %3802 = vmatprep.subr.bf16.mxu0 0
    %3803 = vmatpush1.bf16.msra.mxu0 %v3738
    %3804 = vmatprep.subr.bf16.mxu0 0
    %3805 = vmatpush1.bf16.msra.mxu0 %v3739
    %3806 = vmatprep.subr.bf16.mxu0 0
    %3807 = vmatpush1.bf16.msra.mxu0 %v3740
    %3808 = vmatprep.subr.bf16.mxu0 0
    %3809 = vmatpush1.bf16.msra.mxu0 %v3741
    %3810 = vmatprep.subr.bf16.mxu0 0
    %3811 = vmatpush1.bf16.msra.mxu0 %v3742
    %3812 = vmatprep.subr.bf16.mxu0 0
    %3813 = vmatpush1.bf16.msra.mxu0 %v3743
    %3814 = vmatprep.subr.bf16.mxu0 0
    %3815 = vmatpush1.bf16.msra.mxu0 %v3744
    %3816 = vmatprep.subr.bf16.mxu0 0
    %3817 = vmatpush1.bf16.msra.mxu0 %v3745
    %3818 = vmatprep.subr.bf16.mxu0 0
    %3819 = vmatpush1.bf16.msra.mxu0 %v3746
    %3820 = vmatprep.subr.bf16.mxu0 0
    %3821 = vmatpush1.bf16.msra.mxu0 %v3747
    %3822 = vmatprep.subr.bf16.mxu0 0
    %3823 = vmatpush1.bf16.msra.mxu0 %v3748
    %3824 = vmatprep.subr.bf16.mxu0 0
    %3825 = vmatpush1.bf16.msra.mxu0 %v3749
    %3826 = vmatprep.subr.bf16.mxu0 0
    %3827 = vmatpush1.bf16.msra.mxu0 %v3750
    %3828 = vmatprep.subr.bf16.mxu0 0
    %3829 = vmatpush1.bf16.msra.mxu0 %v3751
    %3830 = vmatprep.subr.bf16.mxu0 0
    %3831 = vmatpush1.bf16.msra.mxu0 %v3752
    %3832 = vmatprep.subr.bf16.mxu0 0
    %3833 = vmatpush1.bf16.msra.mxu0 %v3753
    %3834 = vmatprep.mubr.bf16.mxu0 %v3536
    %3835 = vmatmul.mubr.bf16.gmra.mrb[0].mxu0 %v3535
    %v3836 = vpop.f32.mrb[0].mxu0
    %v3837 = vadd.f32 %v3608, %v3836
    %v3838 = vpop.f32.mrb[0].mxu0
    %v3839 = vpop.f32.mrb[0].mxu0
    %v3840 = vpop.f32.mrb[0].mxu0
    %3841 = vdwg.mxu0
    %3842 = vmatprep.subr.bf16.mxu0 0
    %3843 = vmatpush1.bf16.msra.mxu0 %v3754
    %3844 = vmatprep.subr.bf16.mxu0 0
    %3845 = vmatpush1.bf16.msra.mxu0 %v3755
    %3846 = vmatprep.subr.bf16.mxu0 0
    %3847 = vmatpush1.bf16.msra.mxu0 %v3756
    %3848 = vmatprep.subr.bf16.mxu0 0
    %3849 = vmatpush1.bf16.msra.mxu0 %v3757
    %3850 = vmatprep.subr.bf16.mxu0 0
    %3851 = vmatpush1.bf16.msra.mxu0 %v3758
    %3852 = vmatprep.subr.bf16.mxu0 0
    %3853 = vmatpush1.bf16.msra.mxu0 %v3759
    %3854 = vmatprep.subr.bf16.mxu0 0
    %3855 = vmatpush1.bf16.msra.mxu0 %v3760
    %3856 = vmatprep.subr.bf16.mxu0 0
    %3857 = vmatpush1.bf16.msra.mxu0 %v3761
    %3858 = vmatprep.subr.bf16.mxu0 0
    %3859 = vmatpush1.bf16.msra.mxu0 %v3762
    %3860 = vmatprep.subr.bf16.mxu0 0
    %3861 = vmatpush1.bf16.msra.mxu0 %v3763
    %3862 = vmatprep.subr.bf16.mxu0 0
    %3863 = vmatpush1.bf16.msra.mxu0 %v3764
    %3864 = vmatprep.subr.bf16.mxu0 0
    %3865 = vmatpush1.bf16.msra.mxu0 %v3765
    %3866 = vmatprep.subr.bf16.mxu0 0
    %3867 = vmatpush1.bf16.msra.mxu0 %v3766
    %3868 = vmatprep.subr.bf16.mxu0 0
    %3869 = vmatpush1.bf16.msra.mxu0 %v3767
    %3870 = vmatprep.subr.bf16.mxu0 0
    %3871 = vmatpush1.bf16.msra.mxu0 %v3768
    %3872 = vmatprep.subr.bf16.mxu0 0
    %3873 = vmatpush1.bf16.msra.mxu0 %v3769
    %3874 = vmatprep.mubr.bf16.mxu0 %v3538
    %3875 = vmatmul.mubr.bf16.gmra.mrb[0].mxu0 %v3537
    %v3876 = vpop.f32.mrb[0].mxu0
    %v3877 = vadd.f32 %v3837, %v3876
    %v3878 = vpop.f32.mrb[0].mxu0
    %v3879 = vpop.f32.mrb[0].mxu0
    %v3880 = vpop.f32.mrb[0].mxu0
    %3881 = vdwg.mxu0
    %v3882 = vsel %vm3519, %v3877, 0.0
    %v3883 = vrot.slane %v3882, 4
    %v3884 = vadd.f32 %v3882, %v3883
    %v3885 = vrot.slane %v3884, 2
    %v3886 = vadd.f32 %v3884, %v3885
    %v3887 = vrot.slane %v3886, 1
    %v3888 = vadd.f32 %v3886, %v3887
    %v3889 = vrcp.pop 2.0
    %v3890 = vmul.f32 %v3888, %v3889
    %v3891 = vsub.f32 %v3877, %v3890
    %v3892 = vmul.f32 %v3891, %v3891
    %v3893 = vsel %vm3519, %v3892, 0.0
    %v3894 = vrot.slane %v3893, 4
    %v3895 = vadd.f32 %v3893, %v3894
    %v3896 = vrot.slane %v3895, 2
    %v3897 = vadd.f32 %v3895, %v3896
    %v3898 = vrot.slane %v3897, 1
    %v3899 = vadd.f32 %v3897, %v3898
    %v3900 = vmul.f32 %v3899, %v3889
    %v3901 = vadd.f32 %v3900, 1e-05
    %v3902 = vrsqrt.pop %v3901
    %v3903 = vmul.f32 %v3891, %v3902
    %v3904 = vld [vmem:[%s7] sm:$0x1]
    %v3906 = vlaneseq
    %v3907 = vshrl.u32 %v3906, 7
    %v3908 = vsub.s32 0, %v3907
    %v3909 = vrot.slane %v3904, %v3908
    %v3911 = vmul.f32 %v3903, %v3909
    %v3912 = vld [vmem:[%s8] sm:$0x1]
    %v3914 = vlaneseq
    %v3915 = vshrl.u32 %v3914, 7
    %v3916 = vsub.s32 0, %v3915
    %v3917 = vrot.slane %v3912, %v3916
    %v3919 = vadd.f32 %v3911, %v3917
    %v3920 = vmax.f32 %v3919, 0.0
    %v3921 = vpack.c.bf16 %v3920, %v3920
    %v3922 = vld [vmem:[%s9] sm:$0xf]
    %v3923 = vld [vmem:[%s9 + $0x4] sm:$0xf]
    %v3924 = vld [vmem:[%s9 + $0x8] sm:$0xf]
    %v3925 = vld [vmem:[%s9 + $0xc] sm:$0xf]
    %v3926 = vld [vmem:[%s9 + $0x10] sm:$0xf]
    %v3927 = vld [vmem:[%s9 + $0x14] sm:$0xf]
    %v3928 = vld [vmem:[%s9 + $0x18] sm:$0xf]
    %v3929 = vld [vmem:[%s9 + $0x1c] sm:$0xf]
    %v3930 = vld [vmem:[%s9 + $0x20] sm:$0xf]
    %v3931 = vld [vmem:[%s9 + $0x24] sm:$0xf]
    %v3932 = vld [vmem:[%s9 + $0x28] sm:$0xf]
    %v3933 = vld [vmem:[%s9 + $0x2c] sm:$0xf]
    %v3934 = vld [vmem:[%s9 + $0x30] sm:$0xf]
    %v3935 = vld [vmem:[%s9 + $0x34] sm:$0xf]
    %v3936 = vld [vmem:[%s9 + $0x38] sm:$0xf]
    %v3937 = vld [vmem:[%s9 + $0x3c] sm:$0xf]
    %v3938 = vld [vmem:[%s10] sm:$0x1]
    %v3940 = vlaneseq
    %v3941 = vshrl.u32 %v3940, 7
    %v3942 = vsub.s32 0, %v3941
    %v3943 = vrot.slane %v3938, %v3942
    %v3961 = vunpack.c.l.b16 %v3922
    %v3962 = vunpack.c.l.b16 %v3923
    %v3963 = vunpack.c.l.b16 %v3924
    %v3964 = vunpack.c.l.b16 %v3925
    %v3965 = vunpack.c.l.b16 %v3926
    %v3966 = vunpack.c.l.b16 %v3927
    %v3967 = vunpack.c.l.b16 %v3928
    %v3968 = vunpack.c.l.b16 %v3929
    %v3969 = vunpack.c.l.b16 %v3930
    %v3970 = vunpack.c.l.b16 %v3931
    %v3971 = vunpack.c.l.b16 %v3932
    %v3972 = vunpack.c.l.b16 %v3933
    %v3973 = vunpack.c.l.b16 %v3934
    %v3974 = vunpack.c.l.b16 %v3935
    %v3975 = vunpack.c.l.b16 %v3936
    %v3976 = vunpack.c.l.b16 %v3937
    %v3977 = vpack.c.b16 %v3962, %v3961
    %v3978 = vpack.c.b16 %v3964, %v3963
    %v3979 = vpack.c.b16 %v3966, %v3965
    %v3980 = vpack.c.b16 %v3968, %v3967
    %v3981 = vpack.c.b16 %v3970, %v3969
    %v3982 = vpack.c.b16 %v3972, %v3971
    %v3983 = vpack.c.b16 %v3974, %v3973
    %v3984 = vpack.c.b16 %v3976, %v3975
    %3993 = vmatprep.subr.bf16.mxu0 0
    %3994 = vmatpush1.bf16.msra.mxu0 %v3977
    %3995 = vmatprep.subr.bf16.mxu0 0
    %3996 = vmatpush1.bf16.msra.mxu0 %v3978
    %3997 = vmatprep.subr.bf16.mxu0 0
    %3998 = vmatpush1.bf16.msra.mxu0 %v3979
    %3999 = vmatprep.subr.bf16.mxu0 0
    %4000 = vmatpush1.bf16.msra.mxu0 %v3980
    %4001 = vmatprep.subr.bf16.mxu0 0
    %4002 = vmatpush1.bf16.msra.mxu0 %v3981
    %4003 = vmatprep.subr.bf16.mxu0 0
    %4004 = vmatpush1.bf16.msra.mxu0 %v3982
    %4005 = vmatprep.subr.bf16.mxu0 0
    %4006 = vmatpush1.bf16.msra.mxu0 %v3983
    %4007 = vmatprep.subr.bf16.mxu0 0
    %4008 = vmatpush1.bf16.msra.mxu0 %v3984
    %4009 = vmatprep.subr.bf16.mxu0 0
    %4010 = vmatpush1.bf16.msra.mxu0 0
    %4011 = vmatprep.subr.bf16.mxu0 0
    %4012 = vmatpush1.bf16.msra.mxu0 0
    %4013 = vmatprep.subr.bf16.mxu0 0
    %4014 = vmatpush1.bf16.msra.mxu0 0
    %4015 = vmatprep.subr.bf16.mxu0 0
    %4016 = vmatpush1.bf16.msra.mxu0 0
    %4017 = vmatprep.subr.bf16.mxu0 0
    %4018 = vmatpush1.bf16.msra.mxu0 0
    %4019 = vmatprep.subr.bf16.mxu0 0
    %4020 = vmatpush1.bf16.msra.mxu0 0
    %4021 = vmatprep.subr.bf16.mxu0 0
    %4022 = vmatpush1.bf16.msra.mxu0 0
    %4023 = vmatprep.subr.bf16.mxu0 0
    %4024 = vmatpush1.bf16.msra.mxu0 0
    %4025 = vmatprep.mubr.bf16.mxu0 0
    %4026 = vmatmul.mubr.bf16.gmra.mrb[0].mxu0 %v3921
    %v4027 = vpop.f32.mrb[0].mxu0
    %v4028 = vadd.f32 %v3943, %v4027
    %v4029 = vpop.f32.mrb[0].mxu0
    %v4030 = vpop.f32.mrb[0].mxu0
    %v4031 = vpop.f32.mrb[0].mxu0
    %4032 = vdwg.mxu0
    %vm4033 = vcmask 25600
    %v4034 = vsel %vm4033, %v4028, -inf
    %4035 = vmax.xlane.f32.xlu0 %v4034
    %v4036 = vpop.xlane.xlu0 %4035
    %v4037 = vsub.f32 %v4028, %v4036
    %v4038 = vmul.f32 %v4037, 1.442695
    %v4039 = vpow.pop %v4038
    %v4040 = vsel %vm4033, %v4039, 0.0
    %4041 = vadd.xlane.f32.xlu0 %v4040
    %v4042 = vpop.xlane.xlu0 %4041
    %v4043 = vrcp.pop %v4042
    %v4044 = vmul.f32 %v4039, %v4043
    %4045 = vst.msk [vmem:[#allocation2] sm:$0x3] %vm4033, %v4044
    // Predicated region
    $region46: #{clip_forward.1} parent=1 // pred_check
      _
    $region47: #{clip_forward.1} parent=1 // pred_check_branch
      %4047 = sbr.rel (0) target = $region49
    $region48: #{clip_forward.1} parent=1 // pred_region
      %s4049 = ssub.s32 32, 32
      %4050 = vsyncadd [#allocation3], %s4049
      %s4052 = sshll.u32 [#allocation2], 4
      %s4053 = int_to_ptr.vmem [resolvable:$true] %s4052
      %4055 = dma.vmem_to_hbm [thread:$0]  %s4053, 32, %s11, [#allocation3]
    $region49: #{clip_forward.1} parent=1 // pred_fallthru
      _
    // Predicated region
    $region50: #{clip_forward.1} parent=1 // pred_check
      _
    $region51: #{clip_forward.1} parent=1 // pred_check_branch
      %4057 = sbr.rel (0) target = $region53
    $region52: #{clip_forward.1} parent=1 // pred_region
      %4058 = dma.done [#allocation3], 32
    $region53: #{clip_forward.1} parent=1 // pred_fallthru
      _
    %4059 = vsyncpa [#allocation3], 1

</llo_original>
